<compile_context>
chip_gen: v5e
topology: v5e:2x2
jax: 0.10.0
libtpu: 0.0.40
codegen_flags: <defaults>
</compile_context>

<pallas_src>
import math

import jax
import jax.numpy as jnp
from jax.experimental import pallas as pl
from jax.experimental.pallas import tpu as pltpu

# ----------------------------- small config (consistent with the module) ------------------------
IMG = 16            # img_size
PATCH = 8           # patch_size
IN_CHANS = 1
EMBED = 32          # embed_dim
DEPTH = 2
HEADS = 4
DEC_EMBED = 32      # decoder_embed_dim
DEC_DEPTH = 1
DEC_HEADS = 4
MLP_RATIO = 4.0
FRAMES = 8          # num_frames
T_PATCH = 2         # t_patch_size
PRED_T = 4          # pred_t_dim

T_GRID = FRAMES // T_PATCH                 # 4
S_GRID = IMG // PATCH                      # 2
NUM_PATCHES = T_GRID * S_GRID * S_GRID     # 16
T_PRED_PATCH = T_PATCH * PRED_T // FRAMES  # 1
PRED_DIM = T_PRED_PATCH * PATCH * PATCH * IN_CHANS  # 64
KDIM = IN_CHANS * T_PATCH * PATCH * PATCH           # 128 (conv3d kernel flattened, lane-dense)
MASK_RATIO = 0.75


def VSPEC():
    # whole-array block resident in VMEM (single-invocation kernel, no grid)
    return pl.BlockSpec(memory_space=pltpu.MemorySpace.VMEM)


# ------------------------------------ in-kernel math helpers ------------------------------------
def _layernorm(x, w, b):
    mean = jnp.mean(x, axis=-1, keepdims=True)
    xc = x - mean
    var = jnp.mean(xc * xc, axis=-1, keepdims=True)
    return xc * jax.lax.rsqrt(var + 1e-5) * w + b


def _gelu(y):
    # TODO(synk): PyTorch nn.GELU default is exact erf-GELU; tanh approximation used here.
    return 0.5 * y * (1.0 + jnp.tanh(0.7978845608028654 * (y + 0.044715 * y * y * y)))


def _stack(x, w_in_ref, w_fc2_ref, vec_ref, tail_ref, head_ref, depth, num_heads, n_samples):
    """Pre-LN transformer blocks + final LayerNorm + head linear on VMEM-resident values.

    x: (rows, C) with rows = n_samples * tokens_per_sample (batch folded into sublanes).
    Slab layouts:
      w_in_ref[d]  : (C, 3C + C + hidden)  = [qkv_w | proj_w | fc1_w]
      w_fc2_ref[d] : (hidden, C)
      vec_ref[d]   : (13C,) = [ln1_w, ln1_b, qkv_b(3C), proj_b, ln2_w, ln2_b, fc1_b(hid), fc2_b]
      tail_ref     : (1, 2C)     = [norm_w | norm_b]
      head_ref     : (C+1, out)  = [head_w ; head_b]
    """
    rows, C = x.shape
    per = rows // n_samples
    hd = C // num_heads
    hidden = w_fc2_ref.shape[1]
    scale = 1.0 / math.sqrt(hd)

    for d in range(depth):
        vec = vec_ref[d]
        o = 0
        ln1_w = vec[o:o + C]; o += C
        ln1_b = vec[o:o + C]; o += C
        qkv_b = vec[o:o + 3 * C]; o += 3 * C
        proj_b = vec[o:o + C]; o += C
        ln2_w = vec[o:o + C]; o += C
        ln2_b = vec[o:o + C]; o += C
        fc1_b = vec[o:o + hidden]; o += hidden
        fc2_b = vec[o:o + C]
        w_all = w_in_ref[d]
        qkv_w = w_all[:, :3 * C]
        proj_w = w_all[:, 3 * C:4 * C]
        fc1_w = w_all[:, 4 * C:]
        fc2_w = w_fc2_ref[d]

        # ---- attention: one fused QKV matmul, per-head scores, one output projection ----
        h = _layernorm(x, ln1_w, ln1_b)
        qkv = jnp.dot(h, qkv_w, preferred_element_type=jnp.float32) + qkv_b     # (rows, 3C)
        ctx = []
        for hh in range(num_heads):
            qs = qkv[:, hh * hd:(hh + 1) * hd].reshape(n_samples, per, hd)
            ks = qkv[:, C + hh * hd:C + (hh + 1) * hd].reshape(n_samples, per, hd)
            vs = qkv[:, 2 * C + hh * hd:2 * C + (hh + 1) * hd].reshape(n_samples, per, hd)
            s = jnp.einsum('bqd,bkd->bqk', qs, ks,
                           preferred_element_type=jnp.float32) * scale
            s = s - jnp.max(s, axis=-1, keepdims=True)
            e = jnp.exp(s)
            p = e / jnp.sum(e, axis=-1, keepdims=True)        # exact softmax (review note)
            c = jnp.einsum('bqk,bkd->bqd', p, vs, preferred_element_type=jnp.float32)
            ctx.append(c.reshape(rows, hd))
        attn = jnp.concatenate(ctx, axis=-1)                   # (rows, C)
        x = x + jnp.dot(attn, proj_w, preferred_element_type=jnp.float32) + proj_b

        # ---- MLP ----
        h = _layernorm(x, ln2_w, ln2_b)
        h = jnp.dot(h, fc1_w, preferred_element_type=jnp.float32) + fc1_b
        h = _gelu(h)
        h = jnp.dot(h, fc2_w, preferred_element_type=jnp.float32) + fc2_b
        x = x + h

    tail = tail_ref[0]                                         # (2C,)
    x = _layernorm(x, tail[:C], tail[C:])
    hw = head_ref[...]                                         # (C+1, out)
    return jnp.dot(x, hw[:C, :], preferred_element_type=jnp.float32) + hw[C:C + 1, :]


# ------------------------------------ fused MAE kernel -------------------------------------------
def mae_kernel(px_ref, keep_ref, rk_ref, mask_ref, pos_ref, pw_ref, pb_ref,
               e_win_ref, e_wfc2_ref, e_vec_ref, e_tail_ref, e_head_ref,
               mtok_ref, dpos_ref,
               d_win_ref, d_wfc2_ref, d_vec_ref, d_tail_ref, d_head_ref,
               tgt_ref, pred_ref, loss_ref):
    N, LK, L = keep_ref.shape
    C = pos_ref.shape[1]
    Cd = dpos_ref.shape[1]
    PD = tgt_ref.shape[2]

    # ---- patch embed (Conv3d as matmul) + pos embed + keep-token gather (one-hot matmul) ----
    tokens = jnp.dot(px_ref[...], pw_ref[...], preferred_element_type=jnp.float32) + pb_ref[...]
    tok3 = tokens.reshape(N, L, C) + pos_ref[...][None]        # gather(x)+gather(pos)==gather(x+pos)
    kept = jnp.einsum('bkl,blc->bkc', keep_ref[...], tok3, preferred_element_type=jnp.float32)
    x = kept.reshape(N * LK, C)

    # ---- encoder blocks + final norm + decoder_embed ----
    lat = _stack(x, e_win_ref, e_wfc2_ref, e_vec_ref, e_tail_ref, e_head_ref,
                 DEPTH, HEADS, N)                              # (N*LK, Cd)

    # ---- restore token order (one-hot matmul) + mask tokens + decoder pos embed ----
    lat3 = lat.reshape(N, LK, Cd)
    mask = mask_ref[...]                                       # (N, L): 1 = masked
    restored = jnp.einsum('blk,bkc->blc', rk_ref[...], lat3, preferred_element_type=jnp.float32)
    restored = restored + mask[:, :, None] * mtok_ref[0][None, None, :]
    xd = (restored + dpos_ref[...][None]).reshape(N * L, Cd)

    # ---- decoder blocks + decoder norm + decoder_pred ----
    y = _stack(xd, d_win_ref, d_wfc2_ref, d_vec_ref, d_tail_ref, d_head_ref,
               DEC_DEPTH, DEC_HEADS, N)                        # (N*L, PD)
    y3 = y.reshape(N, L, PD)

    # ---- masked MSE loss (norm_pix_loss=False) ----
    diff = y3 - tgt_ref[...]
    per = jnp.mean(diff * diff, axis=-1)                       # (N, L)
    loss_ref[...] = jnp.sum(per * mask, keepdims=True) / jnp.sum(mask, keepdims=True)

    # ---- lane-dense prediction store (N, L*PD); static concat avoids a cross-tile reshape ----
    pred_ref[...] = jnp.concatenate([y3[:, l, :] for l in range(L)], axis=-1)


# ------------------------------------ JAX glue (layout / masking / target) -----------------------
def _patch_pixels(imgs):
    """imgs (N,C,T,H,W) -> (N*L, C*kt*kh*kw); flattened kernel order matches Conv3d weights."""
    N, Cc, T, H, W = imgs.shape
    Tg, Hg, Wg = T // T_PATCH, H // PATCH, W // PATCH
    x = imgs.reshape(N, Cc, Tg, T_PATCH, Hg, PATCH, Wg, PATCH)
    x = jnp.transpose(x, (0, 2, 4, 6, 1, 3, 5, 7))
    return x.reshape(N * Tg * Hg * Wg, Cc * T_PATCH * PATCH * PATCH)


def _patchify(imgs, p, u):
    N, Cc, T, H, W = imgs.shape
    t, h, w = T // u, H // p, W // p
    x = imgs.reshape(N, Cc, t, u, h, p, w, p)
    x = jnp.einsum('nctuhpwq->nthwupqc', x)
    return x.reshape(N, t * h * w, u * p * p * Cc)


def mae_forward(params, imgs, mask_ratio, key):
    N = imgs.shape[0]
    L = NUM_PATCHES
    len_keep = int(L * (1 - mask_ratio))

    # Conv3d-as-matmul input rearrangement (pure layout; the matmul runs inside the kernel).
    px = _patch_pixels(imgs)                                   # (N*L, 128) lane-dense

    # Random masking bookkeeping (argsort of uniform noise) in plain JAX.
    noise = jax.random.uniform(key, (N, L))
    ids_shuffle = jnp.argsort(noise, axis=1)
    ids_restore = jnp.argsort(ids_shuffle, axis=1)
    ids_keep = ids_shuffle[:, :len_keep]
    mask = jnp.ones((N, L), jnp.float32).at[:, :len_keep].set(0.0)
    mask = jnp.take_along_axis(mask, ids_restore, axis=1)
    iota = jnp.arange(L)
    keep_oh = (ids_keep[:, :, None] == iota[None, None, :]).astype(jnp.float32)          # (N,lk,L)
    rk_oh = (ids_restore[:, :, None] == iota[None, None, :len_keep]).astype(jnp.float32)  # (N,L,lk)

    # Loss target: index_select over time + patchify (plain JAX; pure layout).
    t_idx = jnp.linspace(0.0, imgs.shape[2] - 1, PRED_T).astype(jnp.int32)
    target = _patchify(imgs[:, :, t_idx], PATCH, T_PRED_PATCH)                           # (N,L,64)

    inputs = [px, keep_oh, rk_oh, mask,
              params["pos_embed"], params["patch_w"], params["patch_b"],
              params["enc_w_in"], params["enc_w_fc2"], params["enc_vec"],
              params["enc_tail"], params["enc_head"],
              params["mask_token"], params["dec_pos_embed"],
              params["dec_w_in"], params["dec_w_fc2"], params["dec_vec"],
              params["dec_tail"], params["dec_head"],
              target]
    pred_flat, loss = pl.pallas_call(
        mae_kernel,
        out_shape=(jax.ShapeDtypeStruct((N, L * PRED_DIM), jnp.float32),
                   jax.ShapeDtypeStruct((1, 1), jnp.float32)),
        in_specs=[VSPEC() for _ in inputs],
        out_specs=(VSPEC(), VSPEC()),
    )(*inputs)
    pred = pred_flat.reshape(N, L, PRED_DIM)
    return loss[0, 0], pred, mask


# ------------------------------------ parameter init ---------------------------------------------
def trunc_normal(key, shape, std=0.02):
    return (jax.random.truncated_normal(key, -2.0, 2.0, shape) * std).astype(jnp.float32)


def xavier_uniform(key, shape):
    fan_in, fan_out = shape
    limit = math.sqrt(6.0 / (fan_in + fan_out))
    return jax.random.uniform(key, shape, jnp.float32, -limit, limit)


def init_stack_slabs(key, dim, depth, out_dim):
    """Transformer-stack parameters packed into the slab layout consumed by `_stack`."""
    hidden = int(dim * MLP_RATIO)
    keys = jax.random.split(key, depth * 4 + 1)
    w_in, w_fc2, vecs = [], [], []
    for d in range(depth):
        kq, kp, k1, k2 = keys[d * 4:(d + 1) * 4]
        qkv_w = xavier_uniform(kq, (dim, 3 * dim))      # x @ W form (matches nn.Linear W^T)
        proj_w = xavier_uniform(kp, (dim, dim))
        fc1_w = xavier_uniform(k1, (dim, hidden))
        fc2_w = xavier_uniform(k2, (hidden, dim))
        w_in.append(jnp.concatenate([qkv_w, proj_w, fc1_w], axis=1))     # (dim, 8*dim)
        w_fc2.append(fc2_w)                                              # (hidden, dim)
        vecs.append(jnp.concatenate([
            jnp.ones((dim,), jnp.float32), jnp.zeros((dim,), jnp.float32),   # ln1 w, b
            jnp.zeros((3 * dim,), jnp.float32),                              # qkv_b
            jnp.zeros((dim,), jnp.float32),                                  # proj_b
            jnp.ones((dim,), jnp.float32), jnp.zeros((dim,), jnp.float32),   # ln2 w, b
            jnp.zeros((hidden,), jnp.float32),                               # fc1_b
            jnp.zeros((dim,), jnp.float32)]))                                # fc2_b
    tail = jnp.concatenate([jnp.ones((dim,), jnp.float32),
                            jnp.zeros((dim,), jnp.float32)])[None]           # (1, 2*dim)
    head = jnp.concatenate([xavier_uniform(keys[-1], (dim, out_dim)),
                            jnp.zeros((1, out_dim), jnp.float32)], axis=0)   # (dim+1, out)
    return jnp.stack(w_in), jnp.stack(w_fc2), jnp.stack(vecs), tail, head


def init_params(key):
    k_pw, k_pb, k_pos, k_dpos, k_mtok, k_enc, k_dec = jax.random.split(key, 7)
    P = {}
    # Conv3d weight flattened to (C*kt*kh*kw, embed_dim) = transpose of xavier(w.view(D, -1)).
    P["patch_w"] = xavier_uniform(k_pw, (KDIM, EMBED))
    bound = 1.0 / math.sqrt(KDIM)
    P["patch_b"] = jax.random.uniform(k_pb, (1, EMBED), jnp.float32, -bound, bound)
    P["pos_embed"] = trunc_normal(k_pos, (NUM_PATCHES, EMBED))
    P["dec_pos_embed"] = trunc_normal(k_dpos, (NUM_PATCHES, DEC_EMBED))
    P["mask_token"] = (jax.random.normal(k_mtok, (1, DEC_EMBED)) * 0.02).astype(jnp.float32)
    (P["enc_w_in"], P["enc_w_fc2"], P["enc_vec"],
     P["enc_tail"], P["enc_head"]) = init_stack_slabs(k_enc, EMBED, DEPTH, DEC_EMBED)
    (P["dec_w_in"], P["dec_w_fc2"], P["dec_vec"],
     P["dec_tail"], P["dec_head"]) = init_stack_slabs(k_dec, DEC_EMBED, DEC_DEPTH, PRED_DIM)
    return P


# ------------------------------------------ main -------------------------------------------------
if __name__ == "__main__":
    root = jax.random.PRNGKey(0)
    pkey, dkey, mkey = jax.random.split(root, 3)
    params = init_params(pkey)
    imgs = jax.random.normal(dkey, (2, IN_CHANS, FRAMES, IMG, IMG), jnp.float32)

    fwd = jax.jit(mae_forward, static_argnums=(2,))
    loss, pred, mask = fwd(params, imgs, MASK_RATIO, mkey)
    jax.block_until_ready((loss, pred, mask))

    assert pred.shape == (2, NUM_PATCHES, PRED_DIM)
    assert mask.shape == (2, NUM_PATCHES)
    assert loss.shape == ()
    assert bool(jnp.isfinite(loss))
    print("KERNEL_OK")
</pallas_src>

<mosaic_0001>
module attributes {stable_mosaic.version = 11 : i64} {
  func.func @mae_kernel(%arg0: memref<32x128xf32, #tpu.memory_space<vmem>>, %arg1: memref<2x4x16xf32, #tpu.memory_space<vmem>>, %arg2: memref<2x16x4xf32, #tpu.memory_space<vmem>>, %arg3: memref<2x16xf32, #tpu.memory_space<vmem>>, %arg4: memref<16x32xf32, #tpu.memory_space<vmem>>, %arg5: memref<128x32xf32, #tpu.memory_space<vmem>>, %arg6: memref<1x32xf32, #tpu.memory_space<vmem>>, %arg7: memref<2x32x256xf32, #tpu.memory_space<vmem>>, %arg8: memref<2x128x32xf32, #tpu.memory_space<vmem>>, %arg9: memref<2x416xf32, #tpu.memory_space<vmem>>, %arg10: memref<1x64xf32, #tpu.memory_space<vmem>>, %arg11: memref<33x32xf32, #tpu.memory_space<vmem>>, %arg12: memref<1x32xf32, #tpu.memory_space<vmem>>, %arg13: memref<16x32xf32, #tpu.memory_space<vmem>>, %arg14: memref<1x32x256xf32, #tpu.memory_space<vmem>>, %arg15: memref<1x128x32xf32, #tpu.memory_space<vmem>>, %arg16: memref<1x416xf32, #tpu.memory_space<vmem>>, %arg17: memref<1x64xf32, #tpu.memory_space<vmem>>, %arg18: memref<33x64xf32, #tpu.memory_space<vmem>>, %arg19: memref<2x16x64xf32, #tpu.memory_space<vmem>>, %arg20: memref<2x1024xf32, #tpu.memory_space<vmem>>, %arg21: memref<1x1xf32, #tpu.memory_space<vmem>>) attributes {dimension_semantics = [], scalar_prefetch = 0 : i64, scratch_operands = 0 : i64, tpu.core_type = #tpu.core_type<tc>} {
    %c0 = arith.constant 0 : index
    %c0_0 = arith.constant 0 : index
    %0 = vector.load %arg0[%c0, %c0_0] : memref<32x128xf32, #tpu.memory_space<vmem>>, vector<32x128xf32>
    %c0_1 = arith.constant 0 : index
    %c0_2 = arith.constant 0 : index
    %1 = vector.load %arg5[%c0_1, %c0_2] : memref<128x32xf32, #tpu.memory_space<vmem>>, vector<128x32xf32>
    %cst = arith.constant dense<0.000000e+00> : vector<32x32xf32>
    %2 = tpu.matmul %0, %1, %cst {dimension_numbers = #tpu.dot_dimension_numbers<[1], [0], [0], [1], [0, 0, 1, 1], [], []>} : vector<32x128xf32>, vector<128x32xf32>, vector<32x32xf32> -> vector<32x32xf32>
    %c0_3 = arith.constant 0 : index
    %c0_4 = arith.constant 0 : index
    %3 = vector.load %arg6[%c0_3, %c0_4] : memref<1x32xf32, #tpu.memory_space<vmem>>, vector<1x32xf32>
    %4 = vector.broadcast %3 : vector<1x32xf32> to vector<32x32xf32>
    %5 = arith.addf %2, %4 : vector<32x32xf32>
    %6 = vector.shape_cast %5 : vector<32x32xf32> to vector<2x16x32xf32>
    %c0_5 = arith.constant 0 : index
    %c0_6 = arith.constant 0 : index
    %7 = vector.load %arg4[%c0_5, %c0_6] : memref<16x32xf32, #tpu.memory_space<vmem>>, vector<16x32xf32>
    %8 = vector.shape_cast %7 : vector<16x32xf32> to vector<1x16x32xf32>
    %9 = vector.broadcast %8 : vector<1x16x32xf32> to vector<2x16x32xf32>
    %10 = arith.addf %6, %9 : vector<2x16x32xf32>
    %c0_7 = arith.constant 0 : index
    %c0_8 = arith.constant 0 : index
    %c0_9 = arith.constant 0 : index
    %11 = vector.load %arg1[%c0_7, %c0_8, %c0_9] : memref<2x4x16xf32, #tpu.memory_space<vmem>>, vector<2x4x16xf32>
    "tpu.trace_start"() <{level = 10 : i32, message = "bkl,blc->bkc"}> : () -> ()
    %cst_10 = arith.constant dense<0.000000e+00> : vector<2x4x32xf32>
    %12 = tpu.matmul %11, %10, %cst_10 {dimension_numbers = #tpu.dot_dimension_numbers<[2], [1], [1], [2], [0, 0, 0, 1, 1, 2], [0], [0]>} : vector<2x4x16xf32>, vector<2x16x32xf32>, vector<2x4x32xf32> -> vector<2x4x32xf32>
    "tpu.trace_stop"() : () -> ()
    %13 = vector.shape_cast %12 : vector<2x4x32xf32> to vector<8x32xf32>
    %c0_11 = arith.constant 0 : index
    %c0_12 = arith.constant 0 : index
    %14 = vector.load %arg9[%c0_11, %c0_12] : memref<2x416xf32, #tpu.memory_space<vmem>>, vector<1x416xf32>
    %15 = vector.shape_cast %14 : vector<1x416xf32> to vector<416xf32>
    %16 = vector.extract_strided_slice %15 {offsets = [0], sizes = [32], strides = [1]} : vector<416xf32> to vector<32xf32>
    %17 = vector.extract_strided_slice %15 {offsets = [32], sizes = [32], strides = [1]} : vector<416xf32> to vector<32xf32>
    %18 = vector.extract_strided_slice %15 {offsets = [64], sizes = [96], strides = [1]} : vector<416xf32> to vector<96xf32>
    %19 = vector.extract_strided_slice %15 {offsets = [160], sizes = [32], strides = [1]} : vector<416xf32> to vector<32xf32>
    %20 = vector.extract_strided_slice %15 {offsets = [192], sizes = [32], strides = [1]} : vector<416xf32> to vector<32xf32>
    %21 = vector.extract_strided_slice %15 {offsets = [224], sizes = [32], strides = [1]} : vector<416xf32> to vector<32xf32>
    %22 = vector.extract_strided_slice %15 {offsets = [256], sizes = [128], strides = [1]} : vector<416xf32> to vector<128xf32>
    %23 = vector.extract_strided_slice %15 {offsets = [384], sizes = [32], strides = [1]} : vector<416xf32> to vector<32xf32>
    %c0_13 = arith.constant 0 : index
    %c0_14 = arith.constant 0 : index
    %c0_15 = arith.constant 0 : index
    %24 = vector.load %arg7[%c0_13, %c0_14, %c0_15] : memref<2x32x256xf32, #tpu.memory_space<vmem>>, vector<1x32x256xf32>
    %25 = vector.shape_cast %24 : vector<1x32x256xf32> to vector<32x256xf32>
    %26 = vector.extract_strided_slice %25 {offsets = [0, 0], sizes = [32, 96], strides = [1, 1]} : vector<32x256xf32> to vector<32x96xf32>
    %27 = vector.extract_strided_slice %25 {offsets = [0, 96], sizes = [32, 32], strides = [1, 1]} : vector<32x256xf32> to vector<32x32xf32>
    %28 = vector.extract_strided_slice %25 {offsets = [0, 128], sizes = [32, 128], strides = [1, 1]} : vector<32x256xf32> to vector<32x128xf32>
    %c0_16 = arith.constant 0 : index
    %c0_17 = arith.constant 0 : index
    %c0_18 = arith.constant 0 : index
    %29 = vector.load %arg8[%c0_16, %c0_17, %c0_18] : memref<2x128x32xf32, #tpu.memory_space<vmem>>, vector<1x128x32xf32>
    %30 = vector.shape_cast %29 : vector<1x128x32xf32> to vector<128x32xf32>
    %cst_19 = arith.constant dense<0.000000e+00> : vector<8xf32>
    %31 = vector.multi_reduction <add>, %13, %cst_19 [1] : vector<8x32xf32> to vector<8xf32>
    %32 = vector.shape_cast %31 : vector<8xf32> to vector<8x1xf32>
    %cst_20 = arith.constant 3.200000e+01 : f32
    %33 = vector.broadcast %cst_20 : f32 to vector<8x1xf32>
    %34 = arith.divf %32, %33 : vector<8x1xf32>
    %35 = vector.broadcast %34 : vector<8x1xf32> to vector<8x32xf32>
    %36 = arith.subf %13, %35 : vector<8x32xf32>
    %37 = arith.mulf %36, %36 : vector<8x32xf32>
    %cst_21 = arith.constant dense<0.000000e+00> : vector<8xf32>
    %38 = vector.multi_reduction <add>, %37, %cst_21 [1] : vector<8x32xf32> to vector<8xf32>
    %39 = vector.shape_cast %38 : vector<8xf32> to vector<8x1xf32>
    %cst_22 = arith.constant 3.200000e+01 : f32
    %40 = vector.broadcast %cst_22 : f32 to vector<8x1xf32>
    %41 = arith.divf %39, %40 : vector<8x1xf32>
    %cst_23 = arith.constant 9.99999974E-6 : f32
    %42 = vector.broadcast %cst_23 : f32 to vector<8x1xf32>
    %43 = arith.addf %41, %42 : vector<8x1xf32>
    %44 = math.rsqrt %43 : vector<8x1xf32>
    %45 = vector.broadcast %44 : vector<8x1xf32> to vector<8x32xf32>
    %46 = arith.mulf %36, %45 : vector<8x32xf32>
    %47 = vector.shape_cast %16 : vector<32xf32> to vector<1x32xf32>
    %48 = vector.broadcast %47 : vector<1x32xf32> to vector<8x32xf32>
    %49 = arith.mulf %46, %48 : vector<8x32xf32>
    %50 = vector.shape_cast %17 : vector<32xf32> to vector<1x32xf32>
    %51 = vector.broadcast %50 : vector<1x32xf32> to vector<8x32xf32>
    %52 = arith.addf %49, %51 : vector<8x32xf32>
    %cst_24 = arith.constant dense<0.000000e+00> : vector<8x96xf32>
    %53 = tpu.matmul %52, %26, %cst_24 {dimension_numbers = #tpu.dot_dimension_numbers<[1], [0], [0], [1], [0, 0, 1, 1], [], []>} : vector<8x32xf32>, vector<32x96xf32>, vector<8x96xf32> -> vector<8x96xf32>
    %54 = vector.shape_cast %18 : vector<96xf32> to vector<1x96xf32>
    %55 = vector.broadcast %54 : vector<1x96xf32> to vector<8x96xf32>
    %56 = arith.addf %53, %55 : vector<8x96xf32>
    %57 = vector.extract_strided_slice %56 {offsets = [0, 0], sizes = [8, 8], strides = [1, 1]} : vector<8x96xf32> to vector<8x8xf32>
    %58 = vector.shape_cast %57 : vector<8x8xf32> to vector<2x4x8xf32>
    %59 = vector.extract_strided_slice %56 {offsets = [0, 32], sizes = [8, 8], strides = [1, 1]} : vector<8x96xf32> to vector<8x8xf32>
    %60 = vector.shape_cast %59 : vector<8x8xf32> to vector<2x4x8xf32>
    %61 = vector.extract_strided_slice %56 {offsets = [0, 64], sizes = [8, 8], strides = [1, 1]} : vector<8x96xf32> to vector<8x8xf32>
    %62 = vector.shape_cast %61 : vector<8x8xf32> to vector<2x4x8xf32>
    "tpu.trace_start"() <{level = 10 : i32, message = "bqd,bkd->bqk"}> : () -> ()
    %cst_25 = arith.constant dense<0.000000e+00> : vector<2x4x4xf32>
    %63 = tpu.matmul %58, %60, %cst_25 {dimension_numbers = #tpu.dot_dimension_numbers<[2], [2], [1], [1], [0, 0, 0, 1, 1, 1], [0], [0]>} : vector<2x4x8xf32>, vector<2x4x8xf32>, vector<2x4x4xf32> -> vector<2x4x4xf32>
    "tpu.trace_stop"() : () -> ()
    %cst_26 = arith.constant 0.353553385 : f32
    %64 = vector.broadcast %cst_26 : f32 to vector<2x4x4xf32>
    %65 = arith.mulf %63, %64 : vector<2x4x4xf32>
    %cst_27 = arith.constant dense<0xFF800000> : vector<2x4xf32>
    %66 = vector.multi_reduction <maximumf>, %65, %cst_27 [2] : vector<2x4x4xf32> to vector<2x4xf32>
    %67 = vector.shape_cast %66 : vector<2x4xf32> to vector<2x4x1xf32>
    %68 = vector.broadcast %67 : vector<2x4x1xf32> to vector<2x4x4xf32>
    %69 = arith.subf %65, %68 : vector<2x4x4xf32>
    %70 = math.exp %69 : vector<2x4x4xf32>
    %cst_28 = arith.constant dense<0.000000e+00> : vector<2x4xf32>
    %71 = vector.multi_reduction <add>, %70, %cst_28 [2] : vector<2x4x4xf32> to vector<2x4xf32>
    %72 = vector.shape_cast %71 : vector<2x4xf32> to vector<2x4x1xf32>
    %73 = vector.broadcast %72 : vector<2x4x1xf32> to vector<2x4x4xf32>
    %74 = arith.divf %70, %73 : vector<2x4x4xf32>
    "tpu.trace_start"() <{level = 10 : i32, message = "bqk,bkd->bqd"}> : () -> ()
    %cst_29 = arith.constant dense<0.000000e+00> : vector<2x4x8xf32>
    %75 = tpu.matmul %74, %62, %cst_29 {dimension_numbers = #tpu.dot_dimension_numbers<[2], [1], [1], [2], [0, 0, 0, 1, 1, 2], [0], [0]>} : vector<2x4x4xf32>, vector<2x4x8xf32>, vector<2x4x8xf32> -> vector<2x4x8xf32>
    "tpu.trace_stop"() : () -> ()
    %76 = vector.shape_cast %75 : vector<2x4x8xf32> to vector<8x8xf32>
    %77 = vector.extract_strided_slice %56 {offsets = [0, 8], sizes = [8, 8], strides = [1, 1]} : vector<8x96xf32> to vector<8x8xf32>
    %78 = vector.shape_cast %77 : vector<8x8xf32> to vector<2x4x8xf32>
    %79 = vector.extract_strided_slice %56 {offsets = [0, 40], sizes = [8, 8], strides = [1, 1]} : vector<8x96xf32> to vector<8x8xf32>
    %80 = vector.shape_cast %79 : vector<8x8xf32> to vector<2x4x8xf32>
    %81 = vector.extract_strided_slice %56 {offsets = [0, 72], sizes = [8, 8], strides = [1, 1]} : vector<8x96xf32> to vector<8x8xf32>
    %82 = vector.shape_cast %81 : vector<8x8xf32> to vector<2x4x8xf32>
    "tpu.trace_start"() <{level = 10 : i32, message = "bqd,bkd->bqk"}> : () -> ()
    %cst_30 = arith.constant dense<0.000000e+00> : vector<2x4x4xf32>
    %83 = tpu.matmul %78, %80, %cst_30 {dimension_numbers = #tpu.dot_dimension_numbers<[2], [2], [1], [1], [0, 0, 0, 1, 1, 1], [0], [0]>} : vector<2x4x8xf32>, vector<2x4x8xf32>, vector<2x4x4xf32> -> vector<2x4x4xf32>
    "tpu.trace_stop"() : () -> ()
    %cst_31 = arith.constant 0.353553385 : f32
    %84 = vector.broadcast %cst_31 : f32 to vector<2x4x4xf32>
    %85 = arith.mulf %83, %84 : vector<2x4x4xf32>
    %cst_32 = arith.constant dense<0xFF800000> : vector<2x4xf32>
    %86 = vector.multi_reduction <maximumf>, %85, %cst_32 [2] : vector<2x4x4xf32> to vector<2x4xf32>
    %87 = vector.shape_cast %86 : vector<2x4xf32> to vector<2x4x1xf32>
    %88 = vector.broadcast %87 : vector<2x4x1xf32> to vector<2x4x4xf32>
    %89 = arith.subf %85, %88 : vector<2x4x4xf32>
    %90 = math.exp %89 : vector<2x4x4xf32>
    %cst_33 = arith.constant dense<0.000000e+00> : vector<2x4xf32>
    %91 = vector.multi_reduction <add>, %90, %cst_33 [2] : vector<2x4x4xf32> to vector<2x4xf32>
    %92 = vector.shape_cast %91 : vector<2x4xf32> to vector<2x4x1xf32>
    %93 = vector.broadcast %92 : vector<2x4x1xf32> to vector<2x4x4xf32>
    %94 = arith.divf %90, %93 : vector<2x4x4xf32>
    "tpu.trace_start"() <{level = 10 : i32, message = "bqk,bkd->bqd"}> : () -> ()
    %cst_34 = arith.constant dense<0.000000e+00> : vector<2x4x8xf32>
    %95 = tpu.matmul %94, %82, %cst_34 {dimension_numbers = #tpu.dot_dimension_numbers<[2], [1], [1], [2], [0, 0, 0, 1, 1, 2], [0], [0]>} : vector<2x4x4xf32>, vector<2x4x8xf32>, vector<2x4x8xf32> -> vector<2x4x8xf32>
    "tpu.trace_stop"() : () -> ()
    %96 = vector.shape_cast %95 : vector<2x4x8xf32> to vector<8x8xf32>
    %97 = vector.extract_strided_slice %56 {offsets = [0, 16], sizes = [8, 8], strides = [1, 1]} : vector<8x96xf32> to vector<8x8xf32>
    %98 = vector.shape_cast %97 : vector<8x8xf32> to vector<2x4x8xf32>
    %99 = vector.extract_strided_slice %56 {offsets = [0, 48], sizes = [8, 8], strides = [1, 1]} : vector<8x96xf32> to vector<8x8xf32>
    %100 = vector.shape_cast %99 : vector<8x8xf32> to vector<2x4x8xf32>
    %101 = vector.extract_strided_slice %56 {offsets = [0, 80], sizes = [8, 8], strides = [1, 1]} : vector<8x96xf32> to vector<8x8xf32>
    %102 = vector.shape_cast %101 : vector<8x8xf32> to vector<2x4x8xf32>
    "tpu.trace_start"() <{level = 10 : i32, message = "bqd,bkd->bqk"}> : () -> ()
    %cst_35 = arith.constant dense<0.000000e+00> : vector<2x4x4xf32>
    %103 = tpu.matmul %98, %100, %cst_35 {dimension_numbers = #tpu.dot_dimension_numbers<[2], [2], [1], [1], [0, 0, 0, 1, 1, 1], [0], [0]>} : vector<2x4x8xf32>, vector<2x4x8xf32>, vector<2x4x4xf32> -> vector<2x4x4xf32>
    "tpu.trace_stop"() : () -> ()
    %cst_36 = arith.constant 0.353553385 : f32
    %104 = vector.broadcast %cst_36 : f32 to vector<2x4x4xf32>
    %105 = arith.mulf %103, %104 : vector<2x4x4xf32>
    %cst_37 = arith.constant dense<0xFF800000> : vector<2x4xf32>
    %106 = vector.multi_reduction <maximumf>, %105, %cst_37 [2] : vector<2x4x4xf32> to vector<2x4xf32>
    %107 = vector.shape_cast %106 : vector<2x4xf32> to vector<2x4x1xf32>
    %108 = vector.broadcast %107 : vector<2x4x1xf32> to vector<2x4x4xf32>
    %109 = arith.subf %105, %108 : vector<2x4x4xf32>
    %110 = math.exp %109 : vector<2x4x4xf32>
    %cst_38 = arith.constant dense<0.000000e+00> : vector<2x4xf32>
    %111 = vector.multi_reduction <add>, %110, %cst_38 [2] : vector<2x4x4xf32> to vector<2x4xf32>
    %112 = vector.shape_cast %111 : vector<2x4xf32> to vector<2x4x1xf32>
    %113 = vector.broadcast %112 : vector<2x4x1xf32> to vector<2x4x4xf32>
    %114 = arith.divf %110, %113 : vector<2x4x4xf32>
    "tpu.trace_start"() <{level = 10 : i32, message = "bqk,bkd->bqd"}> : () -> ()
    %cst_39 = arith.constant dense<0.000000e+00> : vector<2x4x8xf32>
    %115 = tpu.matmul %114, %102, %cst_39 {dimension_numbers = #tpu.dot_dimension_numbers<[2], [1], [1], [2], [0, 0, 0, 1, 1, 2], [0], [0]>} : vector<2x4x4xf32>, vector<2x4x8xf32>, vector<2x4x8xf32> -> vector<2x4x8xf32>
    "tpu.trace_stop"() : () -> ()
    %116 = vector.shape_cast %115 : vector<2x4x8xf32> to vector<8x8xf32>
    %117 = vector.extract_strided_slice %56 {offsets = [0, 24], sizes = [8, 8], strides = [1, 1]} : vector<8x96xf32> to vector<8x8xf32>
    %118 = vector.shape_cast %117 : vector<8x8xf32> to vector<2x4x8xf32>
    %119 = vector.extract_strided_slice %56 {offsets = [0, 56], sizes = [8, 8], strides = [1, 1]} : vector<8x96xf32> to vector<8x8xf32>
    %120 = vector.shape_cast %119 : vector<8x8xf32> to vector<2x4x8xf32>
    %121 = vector.extract_strided_slice %56 {offsets = [0, 88], sizes = [8, 8], strides = [1, 1]} : vector<8x96xf32> to vector<8x8xf32>
    %122 = vector.shape_cast %121 : vector<8x8xf32> to vector<2x4x8xf32>
    "tpu.trace_start"() <{level = 10 : i32, message = "bqd,bkd->bqk"}> : () -> ()
    %cst_40 = arith.constant dense<0.000000e+00> : vector<2x4x4xf32>
    %123 = tpu.matmul %118, %120, %cst_40 {dimension_numbers = #tpu.dot_dimension_numbers<[2], [2], [1], [1], [0, 0, 0, 1, 1, 1], [0], [0]>} : vector<2x4x8xf32>, vector<2x4x8xf32>, vector<2x4x4xf32> -> vector<2x4x4xf32>
    "tpu.trace_stop"() : () -> ()
    %cst_41 = arith.constant 0.353553385 : f32
    %124 = vector.broadcast %cst_41 : f32 to vector<2x4x4xf32>
    %125 = arith.mulf %123, %124 : vector<2x4x4xf32>
    %cst_42 = arith.constant dense<0xFF800000> : vector<2x4xf32>
    %126 = vector.multi_reduction <maximumf>, %125, %cst_42 [2] : vector<2x4x4xf32> to vector<2x4xf32>
    %127 = vector.shape_cast %126 : vector<2x4xf32> to vector<2x4x1xf32>
    %128 = vector.broadcast %127 : vector<2x4x1xf32> to vector<2x4x4xf32>
    %129 = arith.subf %125, %128 : vector<2x4x4xf32>
    %130 = math.exp %129 : vector<2x4x4xf32>
    %cst_43 = arith.constant dense<0.000000e+00> : vector<2x4xf32>
    %131 = vector.multi_reduction <add>, %130, %cst_43 [2] : vector<2x4x4xf32> to vector<2x4xf32>
    %132 = vector.shape_cast %131 : vector<2x4xf32> to vector<2x4x1xf32>
    %133 = vector.broadcast %132 : vector<2x4x1xf32> to vector<2x4x4xf32>
    %134 = arith.divf %130, %133 : vector<2x4x4xf32>
    "tpu.trace_start"() <{level = 10 : i32, message = "bqk,bkd->bqd"}> : () -> ()
    %cst_44 = arith.constant dense<0.000000e+00> : vector<2x4x8xf32>
    %135 = tpu.matmul %134, %122, %cst_44 {dimension_numbers = #tpu.dot_dimension_numbers<[2], [1], [1], [2], [0, 0, 0, 1, 1, 2], [0], [0]>} : vector<2x4x4xf32>, vector<2x4x8xf32>, vector<2x4x8xf32> -> vector<2x4x8xf32>
    "tpu.trace_stop"() : () -> ()
    %136 = vector.shape_cast %135 : vector<2x4x8xf32> to vector<8x8xf32>
    %137 = tpu.concatenate %76, %96, %116, %136 in 1 : vector<8x8xf32>, vector<8x8xf32>, vector<8x8xf32>, vector<8x8xf32> -> vector<8x32xf32>
    %cst_45 = arith.constant dense<0.000000e+00> : vector<8x32xf32>
    %138 = tpu.matmul %137, %27, %cst_45 {dimension_numbers = #tpu.dot_dimension_numbers<[1], [0], [0], [1], [0, 0, 1, 1], [], []>} : vector<8x32xf32>, vector<32x32xf32>, vector<8x32xf32> -> vector<8x32xf32>
    %139 = arith.addf %13, %138 : vector<8x32xf32>
    %140 = vector.shape_cast %19 : vector<32xf32> to vector<1x32xf32>
    %141 = vector.broadcast %140 : vector<1x32xf32> to vector<8x32xf32>
    %142 = arith.addf %139, %141 : vector<8x32xf32>
    %cst_46 = arith.constant dense<0.000000e+00> : vector<8xf32>
    %143 = vector.multi_reduction <add>, %142, %cst_46 [1] : vector<8x32xf32> to vector<8xf32>
    %144 = vector.shape_cast %143 : vector<8xf32> to vector<8x1xf32>
    %cst_47 = arith.constant 3.200000e+01 : f32
    %145 = vector.broadcast %cst_47 : f32 to vector<8x1xf32>
    %146 = arith.divf %144, %145 : vector<8x1xf32>
    %147 = vector.broadcast %146 : vector<8x1xf32> to vector<8x32xf32>
    %148 = arith.subf %142, %147 : vector<8x32xf32>
    %149 = arith.mulf %148, %148 : vector<8x32xf32>
    %cst_48 = arith.constant dense<0.000000e+00> : vector<8xf32>
    %150 = vector.multi_reduction <add>, %149, %cst_48 [1] : vector<8x32xf32> to vector<8xf32>
    %151 = vector.shape_cast %150 : vector<8xf32> to vector<8x1xf32>
    %cst_49 = arith.constant 3.200000e+01 : f32
    %152 = vector.broadcast %cst_49 : f32 to vector<8x1xf32>
    %153 = arith.divf %151, %152 : vector<8x1xf32>
    %cst_50 = arith.constant 9.99999974E-6 : f32
    %154 = vector.broadcast %cst_50 : f32 to vector<8x1xf32>
    %155 = arith.addf %153, %154 : vector<8x1xf32>
    %156 = math.rsqrt %155 : vector<8x1xf32>
    %157 = vector.broadcast %156 : vector<8x1xf32> to vector<8x32xf32>
    %158 = arith.mulf %148, %157 : vector<8x32xf32>
    %159 = vector.shape_cast %20 : vector<32xf32> to vector<1x32xf32>
    %160 = vector.broadcast %159 : vector<1x32xf32> to vector<8x32xf32>
    %161 = arith.mulf %158, %160 : vector<8x32xf32>
    %162 = vector.shape_cast %21 : vector<32xf32> to vector<1x32xf32>
    %163 = vector.broadcast %162 : vector<1x32xf32> to vector<8x32xf32>
    %164 = arith.addf %161, %163 : vector<8x32xf32>
    %cst_51 = arith.constant dense<0.000000e+00> : vector<8x128xf32>
    %165 = tpu.matmul %164, %28, %cst_51 {dimension_numbers = #tpu.dot_dimension_numbers<[1], [0], [0], [1], [0, 0, 1, 1], [], []>} : vector<8x32xf32>, vector<32x128xf32>, vector<8x128xf32> -> vector<8x128xf32>
    %166 = vector.shape_cast %22 : vector<128xf32> to vector<1x128xf32>
    %167 = vector.broadcast %166 : vector<1x128xf32> to vector<8x128xf32>
    %168 = arith.addf %165, %167 : vector<8x128xf32>
    %cst_52 = arith.constant 5.000000e-01 : f32
    %169 = vector.broadcast %cst_52 : f32 to vector<8x128xf32>
    %170 = arith.mulf %169, %168 : vector<8x128xf32>
    %cst_53 = arith.constant 4.471500e-02 : f32
    %171 = vector.broadcast %cst_53 : f32 to vector<8x128xf32>
    %172 = arith.mulf %171, %168 : vector<8x128xf32>
    %173 = arith.mulf %172, %168 : vector<8x128xf32>
    %174 = arith.mulf %173, %168 : vector<8x128xf32>
    %175 = arith.addf %168, %174 : vector<8x128xf32>
    %cst_54 = arith.constant 0.797884583 : f32
    %176 = vector.broadcast %cst_54 : f32 to vector<8x128xf32>
    %177 = arith.mulf %176, %175 : vector<8x128xf32>
    %178 = math.tanh %177 : vector<8x128xf32>
    %cst_55 = arith.constant 1.000000e+00 : f32
    %179 = vector.broadcast %cst_55 : f32 to vector<8x128xf32>
    %180 = arith.addf %179, %178 : vector<8x128xf32>
    %181 = arith.mulf %170, %180 : vector<8x128xf32>
    %cst_56 = arith.constant dense<0.000000e+00> : vector<8x32xf32>
    %182 = tpu.matmul %181, %30, %cst_56 {dimension_numbers = #tpu.dot_dimension_numbers<[1], [0], [0], [1], [0, 0, 1, 1], [], []>} : vector<8x128xf32>, vector<128x32xf32>, vector<8x32xf32> -> vector<8x32xf32>
    %183 = vector.shape_cast %23 : vector<32xf32> to vector<1x32xf32>
    %184 = vector.broadcast %183 : vector<1x32xf32> to vector<8x32xf32>
    %185 = arith.addf %182, %184 : vector<8x32xf32>
    %186 = arith.addf %142, %185 : vector<8x32xf32>
    %c1 = arith.constant 1 : index
    %c0_57 = arith.constant 0 : index
    %187 = vector.load %arg9[%c1, %c0_57] : memref<2x416xf32, #tpu.memory_space<vmem>>, vector<1x416xf32>
    %188 = vector.shape_cast %187 : vector<1x416xf32> to vector<416xf32>
    %189 = vector.extract_strided_slice %188 {offsets = [0], sizes = [32], strides = [1]} : vector<416xf32> to vector<32xf32>
    %190 = vector.extract_strided_slice %188 {offsets = [32], sizes = [32], strides = [1]} : vector<416xf32> to vector<32xf32>
    %191 = vector.extract_strided_slice %188 {offsets = [64], sizes = [96], strides = [1]} : vector<416xf32> to vector<96xf32>
    %192 = vector.extract_strided_slice %188 {offsets = [160], sizes = [32], strides = [1]} : vector<416xf32> to vector<32xf32>
    %193 = vector.extract_strided_slice %188 {offsets = [192], sizes = [32], strides = [1]} : vector<416xf32> to vector<32xf32>
    %194 = vector.extract_strided_slice %188 {offsets = [224], sizes = [32], strides = [1]} : vector<416xf32> to vector<32xf32>
    %195 = vector.extract_strided_slice %188 {offsets = [256], sizes = [128], strides = [1]} : vector<416xf32> to vector<128xf32>
    %196 = vector.extract_strided_slice %188 {offsets = [384], sizes = [32], strides = [1]} : vector<416xf32> to vector<32xf32>
    %c1_58 = arith.constant 1 : index
    %c0_59 = arith.constant 0 : index
    %c0_60 = arith.constant 0 : index
    %197 = vector.load %arg7[%c1_58, %c0_59, %c0_60] : memref<2x32x256xf32, #tpu.memory_space<vmem>>, vector<1x32x256xf32>
    %198 = vector.shape_cast %197 : vector<1x32x256xf32> to vector<32x256xf32>
    %199 = vector.extract_strided_slice %198 {offsets = [0, 0], sizes = [32, 96], strides = [1, 1]} : vector<32x256xf32> to vector<32x96xf32>
    %200 = vector.extract_strided_slice %198 {offsets = [0, 96], sizes = [32, 32], strides = [1, 1]} : vector<32x256xf32> to vector<32x32xf32>
    %201 = vector.extract_strided_slice %198 {offsets = [0, 128], sizes = [32, 128], strides = [1, 1]} : vector<32x256xf32> to vector<32x128xf32>
    %c1_61 = arith.constant 1 : index
    %c0_62 = arith.constant 0 : index
    %c0_63 = arith.constant 0 : index
    %202 = vector.load %arg8[%c1_61, %c0_62, %c0_63] : memref<2x128x32xf32, #tpu.memory_space<vmem>>, vector<1x128x32xf32>
    %203 = vector.shape_cast %202 : vector<1x128x32xf32> to vector<128x32xf32>
    %cst_64 = arith.constant dense<0.000000e+00> : vector<8xf32>
    %204 = vector.multi_reduction <add>, %186, %cst_64 [1] : vector<8x32xf32> to vector<8xf32>
    %205 = vector.shape_cast %204 : vector<8xf32> to vector<8x1xf32>
    %cst_65 = arith.constant 3.200000e+01 : f32
    %206 = vector.broadcast %cst_65 : f32 to vector<8x1xf32>
    %207 = arith.divf %205, %206 : vector<8x1xf32>
    %208 = vector.broadcast %207 : vector<8x1xf32> to vector<8x32xf32>
    %209 = arith.subf %186, %208 : vector<8x32xf32>
    %210 = arith.mulf %209, %209 : vector<8x32xf32>
    %cst_66 = arith.constant dense<0.000000e+00> : vector<8xf32>
    %211 = vector.multi_reduction <add>, %210, %cst_66 [1] : vector<8x32xf32> to vector<8xf32>
    %212 = vector.shape_cast %211 : vector<8xf32> to vector<8x1xf32>
    %cst_67 = arith.constant 3.200000e+01 : f32
    %213 = vector.broadcast %cst_67 : f32 to vector<8x1xf32>
    %214 = arith.divf %212, %213 : vector<8x1xf32>
    %cst_68 = arith.constant 9.99999974E-6 : f32
    %215 = vector.broadcast %cst_68 : f32 to vector<8x1xf32>
    %216 = arith.addf %214, %215 : vector<8x1xf32>
    %217 = math.rsqrt %216 : vector<8x1xf32>
    %218 = vector.broadcast %217 : vector<8x1xf32> to vector<8x32xf32>
    %219 = arith.mulf %209, %218 : vector<8x32xf32>
    %220 = vector.shape_cast %189 : vector<32xf32> to vector<1x32xf32>
    %221 = vector.broadcast %220 : vector<1x32xf32> to vector<8x32xf32>
    %222 = arith.mulf %219, %221 : vector<8x32xf32>
    %223 = vector.shape_cast %190 : vector<32xf32> to vector<1x32xf32>
    %224 = vector.broadcast %223 : vector<1x32xf32> to vector<8x32xf32>
    %225 = arith.addf %222, %224 : vector<8x32xf32>
    %cst_69 = arith.constant dense<0.000000e+00> : vector<8x96xf32>
    %226 = tpu.matmul %225, %199, %cst_69 {dimension_numbers = #tpu.dot_dimension_numbers<[1], [0], [0], [1], [0, 0, 1, 1], [], []>} : vector<8x32xf32>, vector<32x96xf32>, vector<8x96xf32> -> vector<8x96xf32>
    %227 = vector.shape_cast %191 : vector<96xf32> to vector<1x96xf32>
    %228 = vector.broadcast %227 : vector<1x96xf32> to vector<8x96xf32>
    %229 = arith.addf %226, %228 : vector<8x96xf32>
    %230 = vector.extract_strided_slice %229 {offsets = [0, 0], sizes = [8, 8], strides = [1, 1]} : vector<8x96xf32> to vector<8x8xf32>
    %231 = vector.shape_cast %230 : vector<8x8xf32> to vector<2x4x8xf32>
    %232 = vector.extract_strided_slice %229 {offsets = [0, 32], sizes = [8, 8], strides = [1, 1]} : vector<8x96xf32> to vector<8x8xf32>
    %233 = vector.shape_cast %232 : vector<8x8xf32> to vector<2x4x8xf32>
    %234 = vector.extract_strided_slice %229 {offsets = [0, 64], sizes = [8, 8], strides = [1, 1]} : vector<8x96xf32> to vector<8x8xf32>
    %235 = vector.shape_cast %234 : vector<8x8xf32> to vector<2x4x8xf32>
    "tpu.trace_start"() <{level = 10 : i32, message = "bqd,bkd->bqk"}> : () -> ()
    %cst_70 = arith.constant dense<0.000000e+00> : vector<2x4x4xf32>
    %236 = tpu.matmul %231, %233, %cst_70 {dimension_numbers = #tpu.dot_dimension_numbers<[2], [2], [1], [1], [0, 0, 0, 1, 1, 1], [0], [0]>} : vector<2x4x8xf32>, vector<2x4x8xf32>, vector<2x4x4xf32> -> vector<2x4x4xf32>
    "tpu.trace_stop"() : () -> ()
    %cst_71 = arith.constant 0.353553385 : f32
    %237 = vector.broadcast %cst_71 : f32 to vector<2x4x4xf32>
    %238 = arith.mulf %236, %237 : vector<2x4x4xf32>
    %cst_72 = arith.constant dense<0xFF800000> : vector<2x4xf32>
    %239 = vector.multi_reduction <maximumf>, %238, %cst_72 [2] : vector<2x4x4xf32> to vector<2x4xf32>
    %240 = vector.shape_cast %239 : vector<2x4xf32> to vector<2x4x1xf32>
    %241 = vector.broadcast %240 : vector<2x4x1xf32> to vector<2x4x4xf32>
    %242 = arith.subf %238, %241 : vector<2x4x4xf32>
    %243 = math.exp %242 : vector<2x4x4xf32>
    %cst_73 = arith.constant dense<0.000000e+00> : vector<2x4xf32>
    %244 = vector.multi_reduction <add>, %243, %cst_73 [2] : vector<2x4x4xf32> to vector<2x4xf32>
    %245 = vector.shape_cast %244 : vector<2x4xf32> to vector<2x4x1xf32>
    %246 = vector.broadcast %245 : vector<2x4x1xf32> to vector<2x4x4xf32>
    %247 = arith.divf %243, %246 : vector<2x4x4xf32>
    "tpu.trace_start"() <{level = 10 : i32, message = "bqk,bkd->bqd"}> : () -> ()
    %cst_74 = arith.constant dense<0.000000e+00> : vector<2x4x8xf32>
    %248 = tpu.matmul %247, %235, %cst_74 {dimension_numbers = #tpu.dot_dimension_numbers<[2], [1], [1], [2], [0, 0, 0, 1, 1, 2], [0], [0]>} : vector<2x4x4xf32>, vector<2x4x8xf32>, vector<2x4x8xf32> -> vector<2x4x8xf32>
    "tpu.trace_stop"() : () -> ()
    %249 = vector.shape_cast %248 : vector<2x4x8xf32> to vector<8x8xf32>
    %250 = vector.extract_strided_slice %229 {offsets = [0, 8], sizes = [8, 8], strides = [1, 1]} : vector<8x96xf32> to vector<8x8xf32>
    %251 = vector.shape_cast %250 : vector<8x8xf32> to vector<2x4x8xf32>
    %252 = vector.extract_strided_slice %229 {offsets = [0, 40], sizes = [8, 8], strides = [1, 1]} : vector<8x96xf32> to vector<8x8xf32>
    %253 = vector.shape_cast %252 : vector<8x8xf32> to vector<2x4x8xf32>
    %254 = vector.extract_strided_slice %229 {offsets = [0, 72], sizes = [8, 8], strides = [1, 1]} : vector<8x96xf32> to vector<8x8xf32>
    %255 = vector.shape_cast %254 : vector<8x8xf32> to vector<2x4x8xf32>
    "tpu.trace_start"() <{level = 10 : i32, message = "bqd,bkd->bqk"}> : () -> ()
    %cst_75 = arith.constant dense<0.000000e+00> : vector<2x4x4xf32>
    %256 = tpu.matmul %251, %253, %cst_75 {dimension_numbers = #tpu.dot_dimension_numbers<[2], [2], [1], [1], [0, 0, 0, 1, 1, 1], [0], [0]>} : vector<2x4x8xf32>, vector<2x4x8xf32>, vector<2x4x4xf32> -> vector<2x4x4xf32>
    "tpu.trace_stop"() : () -> ()
    %cst_76 = arith.constant 0.353553385 : f32
    %257 = vector.broadcast %cst_76 : f32 to vector<2x4x4xf32>
    %258 = arith.mulf %256, %257 : vector<2x4x4xf32>
    %cst_77 = arith.constant dense<0xFF800000> : vector<2x4xf32>
    %259 = vector.multi_reduction <maximumf>, %258, %cst_77 [2] : vector<2x4x4xf32> to vector<2x4xf32>
    %260 = vector.shape_cast %259 : vector<2x4xf32> to vector<2x4x1xf32>
    %261 = vector.broadcast %260 : vector<2x4x1xf32> to vector<2x4x4xf32>
    %262 = arith.subf %258, %261 : vector<2x4x4xf32>
    %263 = math.exp %262 : vector<2x4x4xf32>
    %cst_78 = arith.constant dense<0.000000e+00> : vector<2x4xf32>
    %264 = vector.multi_reduction <add>, %263, %cst_78 [2] : vector<2x4x4xf32> to vector<2x4xf32>
    %265 = vector.shape_cast %264 : vector<2x4xf32> to vector<2x4x1xf32>
    %266 = vector.broadcast %265 : vector<2x4x1xf32> to vector<2x4x4xf32>
    %267 = arith.divf %263, %266 : vector<2x4x4xf32>
    "tpu.trace_start"() <{level = 10 : i32, message = "bqk,bkd->bqd"}> : () -> ()
    %cst_79 = arith.constant dense<0.000000e+00> : vector<2x4x8xf32>
    %268 = tpu.matmul %267, %255, %cst_79 {dimension_numbers = #tpu.dot_dimension_numbers<[2], [1], [1], [2], [0, 0, 0, 1, 1, 2], [0], [0]>} : vector<2x4x4xf32>, vector<2x4x8xf32>, vector<2x4x8xf32> -> vector<2x4x8xf32>
    "tpu.trace_stop"() : () -> ()
    %269 = vector.shape_cast %268 : vector<2x4x8xf32> to vector<8x8xf32>
    %270 = vector.extract_strided_slice %229 {offsets = [0, 16], sizes = [8, 8], strides = [1, 1]} : vector<8x96xf32> to vector<8x8xf32>
    %271 = vector.shape_cast %270 : vector<8x8xf32> to vector<2x4x8xf32>
    %272 = vector.extract_strided_slice %229 {offsets = [0, 48], sizes = [8, 8], strides = [1, 1]} : vector<8x96xf32> to vector<8x8xf32>
    %273 = vector.shape_cast %272 : vector<8x8xf32> to vector<2x4x8xf32>
    %274 = vector.extract_strided_slice %229 {offsets = [0, 80], sizes = [8, 8], strides = [1, 1]} : vector<8x96xf32> to vector<8x8xf32>
    %275 = vector.shape_cast %274 : vector<8x8xf32> to vector<2x4x8xf32>
    "tpu.trace_start"() <{level = 10 : i32, message = "bqd,bkd->bqk"}> : () -> ()
    %cst_80 = arith.constant dense<0.000000e+00> : vector<2x4x4xf32>
    %276 = tpu.matmul %271, %273, %cst_80 {dimension_numbers = #tpu.dot_dimension_numbers<[2], [2], [1], [1], [0, 0, 0, 1, 1, 1], [0], [0]>} : vector<2x4x8xf32>, vector<2x4x8xf32>, vector<2x4x4xf32> -> vector<2x4x4xf32>
    "tpu.trace_stop"() : () -> ()
    %cst_81 = arith.constant 0.353553385 : f32
    %277 = vector.broadcast %cst_81 : f32 to vector<2x4x4xf32>
    %278 = arith.mulf %276, %277 : vector<2x4x4xf32>
    %cst_82 = arith.constant dense<0xFF800000> : vector<2x4xf32>
    %279 = vector.multi_reduction <maximumf>, %278, %cst_82 [2] : vector<2x4x4xf32> to vector<2x4xf32>
    %280 = vector.shape_cast %279 : vector<2x4xf32> to vector<2x4x1xf32>
    %281 = vector.broadcast %280 : vector<2x4x1xf32> to vector<2x4x4xf32>
    %282 = arith.subf %278, %281 : vector<2x4x4xf32>
    %283 = math.exp %282 : vector<2x4x4xf32>
    %cst_83 = arith.constant dense<0.000000e+00> : vector<2x4xf32>
    %284 = vector.multi_reduction <add>, %283, %cst_83 [2] : vector<2x4x4xf32> to vector<2x4xf32>
    %285 = vector.shape_cast %284 : vector<2x4xf32> to vector<2x4x1xf32>
    %286 = vector.broadcast %285 : vector<2x4x1xf32> to vector<2x4x4xf32>
    %287 = arith.divf %283, %286 : vector<2x4x4xf32>
    "tpu.trace_start"() <{level = 10 : i32, message = "bqk,bkd->bqd"}> : () -> ()
    %cst_84 = arith.constant dense<0.000000e+00> : vector<2x4x8xf32>
    %288 = tpu.matmul %287, %275, %cst_84 {dimension_numbers = #tpu.dot_dimension_numbers<[2], [1], [1], [2], [0, 0, 0, 1, 1, 2], [0], [0]>} : vector<2x4x4xf32>, vector<2x4x8xf32>, vector<2x4x8xf32> -> vector<2x4x8xf32>
    "tpu.trace_stop"() : () -> ()
    %289 = vector.shape_cast %288 : vector<2x4x8xf32> to vector<8x8xf32>
    %290 = vector.extract_strided_slice %229 {offsets = [0, 24], sizes = [8, 8], strides = [1, 1]} : vector<8x96xf32> to vector<8x8xf32>
    %291 = vector.shape_cast %290 : vector<8x8xf32> to vector<2x4x8xf32>
    %292 = vector.extract_strided_slice %229 {offsets = [0, 56], sizes = [8, 8], strides = [1, 1]} : vector<8x96xf32> to vector<8x8xf32>
    %293 = vector.shape_cast %292 : vector<8x8xf32> to vector<2x4x8xf32>
    %294 = vector.extract_strided_slice %229 {offsets = [0, 88], sizes = [8, 8], strides = [1, 1]} : vector<8x96xf32> to vector<8x8xf32>
    %295 = vector.shape_cast %294 : vector<8x8xf32> to vector<2x4x8xf32>
    "tpu.trace_start"() <{level = 10 : i32, message = "bqd,bkd->bqk"}> : () -> ()
    %cst_85 = arith.constant dense<0.000000e+00> : vector<2x4x4xf32>
    %296 = tpu.matmul %291, %293, %cst_85 {dimension_numbers = #tpu.dot_dimension_numbers<[2], [2], [1], [1], [0, 0, 0, 1, 1, 1], [0], [0]>} : vector<2x4x8xf32>, vector<2x4x8xf32>, vector<2x4x4xf32> -> vector<2x4x4xf32>
    "tpu.trace_stop"() : () -> ()
    %cst_86 = arith.constant 0.353553385 : f32
    %297 = vector.broadcast %cst_86 : f32 to vector<2x4x4xf32>
    %298 = arith.mulf %296, %297 : vector<2x4x4xf32>
    %cst_87 = arith.constant dense<0xFF800000> : vector<2x4xf32>
    %299 = vector.multi_reduction <maximumf>, %298, %cst_87 [2] : vector<2x4x4xf32> to vector<2x4xf32>
    %300 = vector.shape_cast %299 : vector<2x4xf32> to vector<2x4x1xf32>
    %301 = vector.broadcast %300 : vector<2x4x1xf32> to vector<2x4x4xf32>
    %302 = arith.subf %298, %301 : vector<2x4x4xf32>
    %303 = math.exp %302 : vector<2x4x4xf32>
    %cst_88 = arith.constant dense<0.000000e+00> : vector<2x4xf32>
    %304 = vector.multi_reduction <add>, %303, %cst_88 [2] : vector<2x4x4xf32> to vector<2x4xf32>
    %305 = vector.shape_cast %304 : vector<2x4xf32> to vector<2x4x1xf32>
    %306 = vector.broadcast %305 : vector<2x4x1xf32> to vector<2x4x4xf32>
    %307 = arith.divf %303, %306 : vector<2x4x4xf32>
    "tpu.trace_start"() <{level = 10 : i32, message = "bqk,bkd->bqd"}> : () -> ()
    %cst_89 = arith.constant dense<0.000000e+00> : vector<2x4x8xf32>
    %308 = tpu.matmul %307, %295, %cst_89 {dimension_numbers = #tpu.dot_dimension_numbers<[2], [1], [1], [2], [0, 0, 0, 1, 1, 2], [0], [0]>} : vector<2x4x4xf32>, vector<2x4x8xf32>, vector<2x4x8xf32> -> vector<2x4x8xf32>
    "tpu.trace_stop"() : () -> ()
    %309 = vector.shape_cast %308 : vector<2x4x8xf32> to vector<8x8xf32>
    %310 = tpu.concatenate %249, %269, %289, %309 in 1 : vector<8x8xf32>, vector<8x8xf32>, vector<8x8xf32>, vector<8x8xf32> -> vector<8x32xf32>
    %cst_90 = arith.constant dense<0.000000e+00> : vector<8x32xf32>
    %311 = tpu.matmul %310, %200, %cst_90 {dimension_numbers = #tpu.dot_dimension_numbers<[1], [0], [0], [1], [0, 0, 1, 1], [], []>} : vector<8x32xf32>, vector<32x32xf32>, vector<8x32xf32> -> vector<8x32xf32>
    %312 = arith.addf %186, %311 : vector<8x32xf32>
    %313 = vector.shape_cast %192 : vector<32xf32> to vector<1x32xf32>
    %314 = vector.broadcast %313 : vector<1x32xf32> to vector<8x32xf32>
    %315 = arith.addf %312, %314 : vector<8x32xf32>
    %cst_91 = arith.constant dense<0.000000e+00> : vector<8xf32>
    %316 = vector.multi_reduction <add>, %315, %cst_91 [1] : vector<8x32xf32> to vector<8xf32>
    %317 = vector.shape_cast %316 : vector<8xf32> to vector<8x1xf32>
    %cst_92 = arith.constant 3.200000e+01 : f32
    %318 = vector.broadcast %cst_92 : f32 to vector<8x1xf32>
    %319 = arith.divf %317, %318 : vector<8x1xf32>
    %320 = vector.broadcast %319 : vector<8x1xf32> to vector<8x32xf32>
    %321 = arith.subf %315, %320 : vector<8x32xf32>
    %322 = arith.mulf %321, %321 : vector<8x32xf32>
    %cst_93 = arith.constant dense<0.000000e+00> : vector<8xf32>
    %323 = vector.multi_reduction <add>, %322, %cst_93 [1] : vector<8x32xf32> to vector<8xf32>
    %324 = vector.shape_cast %323 : vector<8xf32> to vector<8x1xf32>
    %cst_94 = arith.constant 3.200000e+01 : f32
    %325 = vector.broadcast %cst_94 : f32 to vector<8x1xf32>
    %326 = arith.divf %324, %325 : vector<8x1xf32>
    %cst_95 = arith.constant 9.99999974E-6 : f32
    %327 = vector.broadcast %cst_95 : f32 to vector<8x1xf32>
    %328 = arith.addf %326, %327 : vector<8x1xf32>
    %329 = math.rsqrt %328 : vector<8x1xf32>
    %330 = vector.broadcast %329 : vector<8x1xf32> to vector<8x32xf32>
    %331 = arith.mulf %321, %330 : vector<8x32xf32>
    %332 = vector.shape_cast %193 : vector<32xf32> to vector<1x32xf32>
    %333 = vector.broadcast %332 : vector<1x32xf32> to vector<8x32xf32>
    %334 = arith.mulf %331, %333 : vector<8x32xf32>
    %335 = vector.shape_cast %194 : vector<32xf32> to vector<1x32xf32>
    %336 = vector.broadcast %335 : vector<1x32xf32> to vector<8x32xf32>
    %337 = arith.addf %334, %336 : vector<8x32xf32>
    %cst_96 = arith.constant dense<0.000000e+00> : vector<8x128xf32>
    %338 = tpu.matmul %337, %201, %cst_96 {dimension_numbers = #tpu.dot_dimension_numbers<[1], [0], [0], [1], [0, 0, 1, 1], [], []>} : vector<8x32xf32>, vector<32x128xf32>, vector<8x128xf32> -> vector<8x128xf32>
    %339 = vector.shape_cast %195 : vector<128xf32> to vector<1x128xf32>
    %340 = vector.broadcast %339 : vector<1x128xf32> to vector<8x128xf32>
    %341 = arith.addf %338, %340 : vector<8x128xf32>
    %cst_97 = arith.constant 5.000000e-01 : f32
    %342 = vector.broadcast %cst_97 : f32 to vector<8x128xf32>
    %343 = arith.mulf %342, %341 : vector<8x128xf32>
    %cst_98 = arith.constant 4.471500e-02 : f32
    %344 = vector.broadcast %cst_98 : f32 to vector<8x128xf32>
    %345 = arith.mulf %344, %341 : vector<8x128xf32>
    %346 = arith.mulf %345, %341 : vector<8x128xf32>
    %347 = arith.mulf %346, %341 : vector<8x128xf32>
    %348 = arith.addf %341, %347 : vector<8x128xf32>
    %cst_99 = arith.constant 0.797884583 : f32
    %349 = vector.broadcast %cst_99 : f32 to vector<8x128xf32>
    %350 = arith.mulf %349, %348 : vector<8x128xf32>
    %351 = math.tanh %350 : vector<8x128xf32>
    %cst_100 = arith.constant 1.000000e+00 : f32
    %352 = vector.broadcast %cst_100 : f32 to vector<8x128xf32>
    %353 = arith.addf %352, %351 : vector<8x128xf32>
    %354 = arith.mulf %343, %353 : vector<8x128xf32>
    %cst_101 = arith.constant dense<0.000000e+00> : vector<8x32xf32>
    %355 = tpu.matmul %354, %203, %cst_101 {dimension_numbers = #tpu.dot_dimension_numbers<[1], [0], [0], [1], [0, 0, 1, 1], [], []>} : vector<8x128xf32>, vector<128x32xf32>, vector<8x32xf32> -> vector<8x32xf32>
    %356 = vector.shape_cast %196 : vector<32xf32> to vector<1x32xf32>
    %357 = vector.broadcast %356 : vector<1x32xf32> to vector<8x32xf32>
    %358 = arith.addf %355, %357 : vector<8x32xf32>
    %359 = arith.addf %315, %358 : vector<8x32xf32>
    %c0_102 = arith.constant 0 : index
    %c0_103 = arith.constant 0 : index
    %360 = vector.load %arg10[%c0_102, %c0_103] : memref<1x64xf32, #tpu.memory_space<vmem>>, vector<1x64xf32>
    %361 = vector.shape_cast %360 : vector<1x64xf32> to vector<64xf32>
    %362 = vector.extract_strided_slice %361 {offsets = [0], sizes = [32], strides = [1]} : vector<64xf32> to vector<32xf32>
    %363 = vector.extract_strided_slice %361 {offsets = [32], sizes = [32], strides = [1]} : vector<64xf32> to vector<32xf32>
    %cst_104 = arith.constant dense<0.000000e+00> : vector<8xf32>
    %364 = vector.multi_reduction <add>, %359, %cst_104 [1] : vector<8x32xf32> to vector<8xf32>
    %365 = vector.shape_cast %364 : vector<8xf32> to vector<8x1xf32>
    %cst_105 = arith.constant 3.200000e+01 : f32
    %366 = vector.broadcast %cst_105 : f32 to vector<8x1xf32>
    %367 = arith.divf %365, %366 : vector<8x1xf32>
    %368 = vector.broadcast %367 : vector<8x1xf32> to vector<8x32xf32>
    %369 = arith.subf %359, %368 : vector<8x32xf32>
    %370 = arith.mulf %369, %369 : vector<8x32xf32>
    %cst_106 = arith.constant dense<0.000000e+00> : vector<8xf32>
    %371 = vector.multi_reduction <add>, %370, %cst_106 [1] : vector<8x32xf32> to vector<8xf32>
    %372 = vector.shape_cast %371 : vector<8xf32> to vector<8x1xf32>
    %cst_107 = arith.constant 3.200000e+01 : f32
    %373 = vector.broadcast %cst_107 : f32 to vector<8x1xf32>
    %374 = arith.divf %372, %373 : vector<8x1xf32>
    %cst_108 = arith.constant 9.99999974E-6 : f32
    %375 = vector.broadcast %cst_108 : f32 to vector<8x1xf32>
    %376 = arith.addf %374, %375 : vector<8x1xf32>
    %377 = math.rsqrt %376 : vector<8x1xf32>
    %378 = vector.broadcast %377 : vector<8x1xf32> to vector<8x32xf32>
    %379 = arith.mulf %369, %378 : vector<8x32xf32>
    %380 = vector.shape_cast %362 : vector<32xf32> to vector<1x32xf32>
    %381 = vector.broadcast %380 : vector<1x32xf32> to vector<8x32xf32>
    %382 = arith.mulf %379, %381 : vector<8x32xf32>
    %383 = vector.shape_cast %363 : vector<32xf32> to vector<1x32xf32>
    %384 = vector.broadcast %383 : vector<1x32xf32> to vector<8x32xf32>
    %385 = arith.addf %382, %384 : vector<8x32xf32>
    %c0_109 = arith.constant 0 : index
    %c0_110 = arith.constant 0 : index
    %386 = vector.load %arg11[%c0_109, %c0_110] : memref<33x32xf32, #tpu.memory_space<vmem>>, vector<33x32xf32>
    %387 = vector.extract_strided_slice %386 {offsets = [0, 0], sizes = [32, 32], strides = [1, 1]} : vector<33x32xf32> to vector<32x32xf32>
    %cst_111 = arith.constant dense<0.000000e+00> : vector<8x32xf32>
    %388 = tpu.matmul %385, %387, %cst_111 {dimension_numbers = #tpu.dot_dimension_numbers<[1], [0], [0], [1], [0, 0, 1, 1], [], []>} : vector<8x32xf32>, vector<32x32xf32>, vector<8x32xf32> -> vector<8x32xf32>
    %389 = vector.extract_strided_slice %386 {offsets = [32, 0], sizes = [1, 32], strides = [1, 1]} : vector<33x32xf32> to vector<1x32xf32>
    %390 = vector.broadcast %389 : vector<1x32xf32> to vector<8x32xf32>
    %391 = arith.addf %388, %390 : vector<8x32xf32>
    %392 = vector.shape_cast %391 : vector<8x32xf32> to vector<2x4x32xf32>
    %c0_112 = arith.constant 0 : index
    %c0_113 = arith.constant 0 : index
    %393 = vector.load %arg3[%c0_112, %c0_113] : memref<2x16xf32, #tpu.memory_space<vmem>>, vector<2x16xf32>
    %c0_114 = arith.constant 0 : index
    %c0_115 = arith.constant 0 : index
    %c0_116 = arith.constant 0 : index
    %394 = vector.load %arg2[%c0_114, %c0_115, %c0_116] : memref<2x16x4xf32, #tpu.memory_space<vmem>>, vector<2x16x4xf32>
    "tpu.trace_start"() <{level = 10 : i32, message = "blk,bkc->blc"}> : () -> ()
    %cst_117 = arith.constant dense<0.000000e+00> : vector<2x16x32xf32>
    %395 = tpu.matmul %394, %392, %cst_117 {dimension_numbers = #tpu.dot_dimension_numbers<[2], [1], [1], [2], [0, 0, 0, 1, 1, 2], [0], [0]>} : vector<2x16x4xf32>, vector<2x4x32xf32>, vector<2x16x32xf32> -> vector<2x16x32xf32>
    "tpu.trace_stop"() : () -> ()
    %396 = vector.shape_cast %393 : vector<2x16xf32> to vector<2x16x1xf32>
    %c0_118 = arith.constant 0 : index
    %c0_119 = arith.constant 0 : index
    %397 = vector.load %arg12[%c0_118, %c0_119] : memref<1x32xf32, #tpu.memory_space<vmem>>, vector<1x32xf32>
    %398 = vector.shape_cast %397 : vector<1x32xf32> to vector<32xf32>
    %399 = vector.shape_cast %398 : vector<32xf32> to vector<1x1x32xf32>
    %400 = vector.broadcast %396 : vector<2x16x1xf32> to vector<2x16x32xf32>
    %401 = vector.broadcast %399 : vector<1x1x32xf32> to vector<2x16x32xf32>
    %402 = arith.mulf %400, %401 : vector<2x16x32xf32>
    %403 = arith.addf %395, %402 : vector<2x16x32xf32>
    %c0_120 = arith.constant 0 : index
    %c0_121 = arith.constant 0 : index
    %404 = vector.load %arg13[%c0_120, %c0_121] : memref<16x32xf32, #tpu.memory_space<vmem>>, vector<16x32xf32>
    %405 = vector.shape_cast %404 : vector<16x32xf32> to vector<1x16x32xf32>
    %406 = vector.broadcast %405 : vector<1x16x32xf32> to vector<2x16x32xf32>
    %407 = arith.addf %403, %406 : vector<2x16x32xf32>
    %408 = vector.shape_cast %407 : vector<2x16x32xf32> to vector<32x32xf32>
    %c0_122 = arith.constant 0 : index
    %c0_123 = arith.constant 0 : index
    %409 = vector.load %arg16[%c0_122, %c0_123] : memref<1x416xf32, #tpu.memory_space<vmem>>, vector<1x416xf32>
    %410 = vector.shape_cast %409 : vector<1x416xf32> to vector<416xf32>
    %411 = vector.extract_strided_slice %410 {offsets = [0], sizes = [32], strides = [1]} : vector<416xf32> to vector<32xf32>
    %412 = vector.extract_strided_slice %410 {offsets = [32], sizes = [32], strides = [1]} : vector<416xf32> to vector<32xf32>
    %413 = vector.extract_strided_slice %410 {offsets = [64], sizes = [96], strides = [1]} : vector<416xf32> to vector<96xf32>
    %414 = vector.extract_strided_slice %410 {offsets = [160], sizes = [32], strides = [1]} : vector<416xf32> to vector<32xf32>
    %415 = vector.extract_strided_slice %410 {offsets = [192], sizes = [32], strides = [1]} : vector<416xf32> to vector<32xf32>
    %416 = vector.extract_strided_slice %410 {offsets = [224], sizes = [32], strides = [1]} : vector<416xf32> to vector<32xf32>
    %417 = vector.extract_strided_slice %410 {offsets = [256], sizes = [128], strides = [1]} : vector<416xf32> to vector<128xf32>
    %418 = vector.extract_strided_slice %410 {offsets = [384], sizes = [32], strides = [1]} : vector<416xf32> to vector<32xf32>
    %c0_124 = arith.constant 0 : index
    %c0_125 = arith.constant 0 : index
    %c0_126 = arith.constant 0 : index
    %419 = vector.load %arg14[%c0_124, %c0_125, %c0_126] : memref<1x32x256xf32, #tpu.memory_space<vmem>>, vector<1x32x256xf32>
    %420 = vector.shape_cast %419 : vector<1x32x256xf32> to vector<32x256xf32>
    %421 = vector.extract_strided_slice %420 {offsets = [0, 0], sizes = [32, 96], strides = [1, 1]} : vector<32x256xf32> to vector<32x96xf32>
    %422 = vector.extract_strided_slice %420 {offsets = [0, 96], sizes = [32, 32], strides = [1, 1]} : vector<32x256xf32> to vector<32x32xf32>
    %423 = vector.extract_strided_slice %420 {offsets = [0, 128], sizes = [32, 128], strides = [1, 1]} : vector<32x256xf32> to vector<32x128xf32>
    %c0_127 = arith.constant 0 : index
    %c0_128 = arith.constant 0 : index
    %c0_129 = arith.constant 0 : index
    %424 = vector.load %arg15[%c0_127, %c0_128, %c0_129] : memref<1x128x32xf32, #tpu.memory_space<vmem>>, vector<1x128x32xf32>
    %425 = vector.shape_cast %424 : vector<1x128x32xf32> to vector<128x32xf32>
    %cst_130 = arith.constant dense<0.000000e+00> : vector<32xf32>
    %426 = vector.multi_reduction <add>, %408, %cst_130 [1] : vector<32x32xf32> to vector<32xf32>
    %427 = vector.shape_cast %426 : vector<32xf32> to vector<32x1xf32>
    %cst_131 = arith.constant 3.200000e+01 : f32
    %428 = vector.broadcast %cst_131 : f32 to vector<32x1xf32>
    %429 = arith.divf %427, %428 : vector<32x1xf32>
    %430 = vector.broadcast %429 : vector<32x1xf32> to vector<32x32xf32>
    %431 = arith.subf %408, %430 : vector<32x32xf32>
    %432 = arith.mulf %431, %431 : vector<32x32xf32>
    %cst_132 = arith.constant dense<0.000000e+00> : vector<32xf32>
    %433 = vector.multi_reduction <add>, %432, %cst_132 [1] : vector<32x32xf32> to vector<32xf32>
    %434 = vector.shape_cast %433 : vector<32xf32> to vector<32x1xf32>
    %cst_133 = arith.constant 3.200000e+01 : f32
    %435 = vector.broadcast %cst_133 : f32 to vector<32x1xf32>
    %436 = arith.divf %434, %435 : vector<32x1xf32>
    %cst_134 = arith.constant 9.99999974E-6 : f32
    %437 = vector.broadcast %cst_134 : f32 to vector<32x1xf32>
    %438 = arith.addf %436, %437 : vector<32x1xf32>
    %439 = math.rsqrt %438 : vector<32x1xf32>
    %440 = vector.broadcast %439 : vector<32x1xf32> to vector<32x32xf32>
    %441 = arith.mulf %431, %440 : vector<32x32xf32>
    %442 = vector.shape_cast %411 : vector<32xf32> to vector<1x32xf32>
    %443 = vector.broadcast %442 : vector<1x32xf32> to vector<32x32xf32>
    %444 = arith.mulf %441, %443 : vector<32x32xf32>
    %445 = vector.shape_cast %412 : vector<32xf32> to vector<1x32xf32>
    %446 = vector.broadcast %445 : vector<1x32xf32> to vector<32x32xf32>
    %447 = arith.addf %444, %446 : vector<32x32xf32>
    %cst_135 = arith.constant dense<0.000000e+00> : vector<32x96xf32>
    %448 = tpu.matmul %447, %421, %cst_135 {dimension_numbers = #tpu.dot_dimension_numbers<[1], [0], [0], [1], [0, 0, 1, 1], [], []>} : vector<32x32xf32>, vector<32x96xf32>, vector<32x96xf32> -> vector<32x96xf32>
    %449 = vector.shape_cast %413 : vector<96xf32> to vector<1x96xf32>
    %450 = vector.broadcast %449 : vector<1x96xf32> to vector<32x96xf32>
    %451 = arith.addf %448, %450 : vector<32x96xf32>
    %452 = vector.extract_strided_slice %451 {offsets = [0, 0], sizes = [32, 8], strides = [1, 1]} : vector<32x96xf32> to vector<32x8xf32>
    %453 = vector.shape_cast %452 : vector<32x8xf32> to vector<2x16x8xf32>
    %454 = vector.extract_strided_slice %451 {offsets = [0, 32], sizes = [32, 8], strides = [1, 1]} : vector<32x96xf32> to vector<32x8xf32>
    %455 = vector.shape_cast %454 : vector<32x8xf32> to vector<2x16x8xf32>
    %456 = vector.extract_strided_slice %451 {offsets = [0, 64], sizes = [32, 8], strides = [1, 1]} : vector<32x96xf32> to vector<32x8xf32>
    %457 = vector.shape_cast %456 : vector<32x8xf32> to vector<2x16x8xf32>
    "tpu.trace_start"() <{level = 10 : i32, message = "bqd,bkd->bqk"}> : () -> ()
    %cst_136 = arith.constant dense<0.000000e+00> : vector<2x16x16xf32>
    %458 = tpu.matmul %453, %455, %cst_136 {dimension_numbers = #tpu.dot_dimension_numbers<[2], [2], [1], [1], [0, 0, 0, 1, 1, 1], [0], [0]>} : vector<2x16x8xf32>, vector<2x16x8xf32>, vector<2x16x16xf32> -> vector<2x16x16xf32>
    "tpu.trace_stop"() : () -> ()
    %cst_137 = arith.constant 0.353553385 : f32
    %459 = vector.broadcast %cst_137 : f32 to vector<2x16x16xf32>
    %460 = arith.mulf %458, %459 : vector<2x16x16xf32>
    %cst_138 = arith.constant dense<0xFF800000> : vector<2x16xf32>
    %461 = vector.multi_reduction <maximumf>, %460, %cst_138 [2] : vector<2x16x16xf32> to vector<2x16xf32>
    %462 = vector.shape_cast %461 : vector<2x16xf32> to vector<2x16x1xf32>
    %463 = vector.broadcast %462 : vector<2x16x1xf32> to vector<2x16x16xf32>
    %464 = arith.subf %460, %463 : vector<2x16x16xf32>
    %465 = math.exp %464 : vector<2x16x16xf32>
    %cst_139 = arith.constant dense<0.000000e+00> : vector<2x16xf32>
    %466 = vector.multi_reduction <add>, %465, %cst_139 [2] : vector<2x16x16xf32> to vector<2x16xf32>
    %467 = vector.shape_cast %466 : vector<2x16xf32> to vector<2x16x1xf32>
    %468 = vector.broadcast %467 : vector<2x16x1xf32> to vector<2x16x16xf32>
    %469 = arith.divf %465, %468 : vector<2x16x16xf32>
    "tpu.trace_start"() <{level = 10 : i32, message = "bqk,bkd->bqd"}> : () -> ()
    %cst_140 = arith.constant dense<0.000000e+00> : vector<2x16x8xf32>
    %470 = tpu.matmul %469, %457, %cst_140 {dimension_numbers = #tpu.dot_dimension_numbers<[2], [1], [1], [2], [0, 0, 0, 1, 1, 2], [0], [0]>} : vector<2x16x16xf32>, vector<2x16x8xf32>, vector<2x16x8xf32> -> vector<2x16x8xf32>
    "tpu.trace_stop"() : () -> ()
    %471 = vector.shape_cast %470 : vector<2x16x8xf32> to vector<32x8xf32>
    %472 = vector.extract_strided_slice %451 {offsets = [0, 8], sizes = [32, 8], strides = [1, 1]} : vector<32x96xf32> to vector<32x8xf32>
    %473 = vector.shape_cast %472 : vector<32x8xf32> to vector<2x16x8xf32>
    %474 = vector.extract_strided_slice %451 {offsets = [0, 40], sizes = [32, 8], strides = [1, 1]} : vector<32x96xf32> to vector<32x8xf32>
    %475 = vector.shape_cast %474 : vector<32x8xf32> to vector<2x16x8xf32>
    %476 = vector.extract_strided_slice %451 {offsets = [0, 72], sizes = [32, 8], strides = [1, 1]} : vector<32x96xf32> to vector<32x8xf32>
    %477 = vector.shape_cast %476 : vector<32x8xf32> to vector<2x16x8xf32>
    "tpu.trace_start"() <{level = 10 : i32, message = "bqd,bkd->bqk"}> : () -> ()
    %cst_141 = arith.constant dense<0.000000e+00> : vector<2x16x16xf32>
    %478 = tpu.matmul %473, %475, %cst_141 {dimension_numbers = #tpu.dot_dimension_numbers<[2], [2], [1], [1], [0, 0, 0, 1, 1, 1], [0], [0]>} : vector<2x16x8xf32>, vector<2x16x8xf32>, vector<2x16x16xf32> -> vector<2x16x16xf32>
    "tpu.trace_stop"() : () -> ()
    %cst_142 = arith.constant 0.353553385 : f32
    %479 = vector.broadcast %cst_142 : f32 to vector<2x16x16xf32>
    %480 = arith.mulf %478, %479 : vector<2x16x16xf32>
    %cst_143 = arith.constant dense<0xFF800000> : vector<2x16xf32>
    %481 = vector.multi_reduction <maximumf>, %480, %cst_143 [2] : vector<2x16x16xf32> to vector<2x16xf32>
    %482 = vector.shape_cast %481 : vector<2x16xf32> to vector<2x16x1xf32>
    %483 = vector.broadcast %482 : vector<2x16x1xf32> to vector<2x16x16xf32>
    %484 = arith.subf %480, %483 : vector<2x16x16xf32>
    %485 = math.exp %484 : vector<2x16x16xf32>
    %cst_144 = arith.constant dense<0.000000e+00> : vector<2x16xf32>
    %486 = vector.multi_reduction <add>, %485, %cst_144 [2] : vector<2x16x16xf32> to vector<2x16xf32>
    %487 = vector.shape_cast %486 : vector<2x16xf32> to vector<2x16x1xf32>
    %488 = vector.broadcast %487 : vector<2x16x1xf32> to vector<2x16x16xf32>
    %489 = arith.divf %485, %488 : vector<2x16x16xf32>
    "tpu.trace_start"() <{level = 10 : i32, message = "bqk,bkd->bqd"}> : () -> ()
    %cst_145 = arith.constant dense<0.000000e+00> : vector<2x16x8xf32>
    %490 = tpu.matmul %489, %477, %cst_145 {dimension_numbers = #tpu.dot_dimension_numbers<[2], [1], [1], [2], [0, 0, 0, 1, 1, 2], [0], [0]>} : vector<2x16x16xf32>, vector<2x16x8xf32>, vector<2x16x8xf32> -> vector<2x16x8xf32>
    "tpu.trace_stop"() : () -> ()
    %491 = vector.shape_cast %490 : vector<2x16x8xf32> to vector<32x8xf32>
    %492 = vector.extract_strided_slice %451 {offsets = [0, 16], sizes = [32, 8], strides = [1, 1]} : vector<32x96xf32> to vector<32x8xf32>
    %493 = vector.shape_cast %492 : vector<32x8xf32> to vector<2x16x8xf32>
    %494 = vector.extract_strided_slice %451 {offsets = [0, 48], sizes = [32, 8], strides = [1, 1]} : vector<32x96xf32> to vector<32x8xf32>
    %495 = vector.shape_cast %494 : vector<32x8xf32> to vector<2x16x8xf32>
    %496 = vector.extract_strided_slice %451 {offsets = [0, 80], sizes = [32, 8], strides = [1, 1]} : vector<32x96xf32> to vector<32x8xf32>
    %497 = vector.shape_cast %496 : vector<32x8xf32> to vector<2x16x8xf32>
    "tpu.trace_start"() <{level = 10 : i32, message = "bqd,bkd->bqk"}> : () -> ()
    %cst_146 = arith.constant dense<0.000000e+00> : vector<2x16x16xf32>
    %498 = tpu.matmul %493, %495, %cst_146 {dimension_numbers = #tpu.dot_dimension_numbers<[2], [2], [1], [1], [0, 0, 0, 1, 1, 1], [0], [0]>} : vector<2x16x8xf32>, vector<2x16x8xf32>, vector<2x16x16xf32> -> vector<2x16x16xf32>
    "tpu.trace_stop"() : () -> ()
    %cst_147 = arith.constant 0.353553385 : f32
    %499 = vector.broadcast %cst_147 : f32 to vector<2x16x16xf32>
    %500 = arith.mulf %498, %499 : vector<2x16x16xf32>
    %cst_148 = arith.constant dense<0xFF800000> : vector<2x16xf32>
    %501 = vector.multi_reduction <maximumf>, %500, %cst_148 [2] : vector<2x16x16xf32> to vector<2x16xf32>
    %502 = vector.shape_cast %501 : vector<2x16xf32> to vector<2x16x1xf32>
    %503 = vector.broadcast %502 : vector<2x16x1xf32> to vector<2x16x16xf32>
    %504 = arith.subf %500, %503 : vector<2x16x16xf32>
    %505 = math.exp %504 : vector<2x16x16xf32>
    %cst_149 = arith.constant dense<0.000000e+00> : vector<2x16xf32>
    %506 = vector.multi_reduction <add>, %505, %cst_149 [2] : vector<2x16x16xf32> to vector<2x16xf32>
    %507 = vector.shape_cast %506 : vector<2x16xf32> to vector<2x16x1xf32>
    %508 = vector.broadcast %507 : vector<2x16x1xf32> to vector<2x16x16xf32>
    %509 = arith.divf %505, %508 : vector<2x16x16xf32>
    "tpu.trace_start"() <{level = 10 : i32, message = "bqk,bkd->bqd"}> : () -> ()
    %cst_150 = arith.constant dense<0.000000e+00> : vector<2x16x8xf32>
    %510 = tpu.matmul %509, %497, %cst_150 {dimension_numbers = #tpu.dot_dimension_numbers<[2], [1], [1], [2], [0, 0, 0, 1, 1, 2], [0], [0]>} : vector<2x16x16xf32>, vector<2x16x8xf32>, vector<2x16x8xf32> -> vector<2x16x8xf32>
    "tpu.trace_stop"() : () -> ()
    %511 = vector.shape_cast %510 : vector<2x16x8xf32> to vector<32x8xf32>
    %512 = vector.extract_strided_slice %451 {offsets = [0, 24], sizes = [32, 8], strides = [1, 1]} : vector<32x96xf32> to vector<32x8xf32>
    %513 = vector.shape_cast %512 : vector<32x8xf32> to vector<2x16x8xf32>
    %514 = vector.extract_strided_slice %451 {offsets = [0, 56], sizes = [32, 8], strides = [1, 1]} : vector<32x96xf32> to vector<32x8xf32>
    %515 = vector.shape_cast %514 : vector<32x8xf32> to vector<2x16x8xf32>
    %516 = vector.extract_strided_slice %451 {offsets = [0, 88], sizes = [32, 8], strides = [1, 1]} : vector<32x96xf32> to vector<32x8xf32>
    %517 = vector.shape_cast %516 : vector<32x8xf32> to vector<2x16x8xf32>
    "tpu.trace_start"() <{level = 10 : i32, message = "bqd,bkd->bqk"}> : () -> ()
    %cst_151 = arith.constant dense<0.000000e+00> : vector<2x16x16xf32>
    %518 = tpu.matmul %513, %515, %cst_151 {dimension_numbers = #tpu.dot_dimension_numbers<[2], [2], [1], [1], [0, 0, 0, 1, 1, 1], [0], [0]>} : vector<2x16x8xf32>, vector<2x16x8xf32>, vector<2x16x16xf32> -> vector<2x16x16xf32>
    "tpu.trace_stop"() : () -> ()
    %cst_152 = arith.constant 0.353553385 : f32
    %519 = vector.broadcast %cst_152 : f32 to vector<2x16x16xf32>
    %520 = arith.mulf %518, %519 : vector<2x16x16xf32>
    %cst_153 = arith.constant dense<0xFF800000> : vector<2x16xf32>
    %521 = vector.multi_reduction <maximumf>, %520, %cst_153 [2] : vector<2x16x16xf32> to vector<2x16xf32>
    %522 = vector.shape_cast %521 : vector<2x16xf32> to vector<2x16x1xf32>
    %523 = vector.broadcast %522 : vector<2x16x1xf32> to vector<2x16x16xf32>
    %524 = arith.subf %520, %523 : vector<2x16x16xf32>
    %525 = math.exp %524 : vector<2x16x16xf32>
    %cst_154 = arith.constant dense<0.000000e+00> : vector<2x16xf32>
    %526 = vector.multi_reduction <add>, %525, %cst_154 [2] : vector<2x16x16xf32> to vector<2x16xf32>
    %527 = vector.shape_cast %526 : vector<2x16xf32> to vector<2x16x1xf32>
    %528 = vector.broadcast %527 : vector<2x16x1xf32> to vector<2x16x16xf32>
    %529 = arith.divf %525, %528 : vector<2x16x16xf32>
    "tpu.trace_start"() <{level = 10 : i32, message = "bqk,bkd->bqd"}> : () -> ()
    %cst_155 = arith.constant dense<0.000000e+00> : vector<2x16x8xf32>
    %530 = tpu.matmul %529, %517, %cst_155 {dimension_numbers = #tpu.dot_dimension_numbers<[2], [1], [1], [2], [0, 0, 0, 1, 1, 2], [0], [0]>} : vector<2x16x16xf32>, vector<2x16x8xf32>, vector<2x16x8xf32> -> vector<2x16x8xf32>
    "tpu.trace_stop"() : () -> ()
    %531 = vector.shape_cast %530 : vector<2x16x8xf32> to vector<32x8xf32>
    %532 = tpu.concatenate %471, %491, %511, %531 in 1 : vector<32x8xf32>, vector<32x8xf32>, vector<32x8xf32>, vector<32x8xf32> -> vector<32x32xf32>
    %cst_156 = arith.constant dense<0.000000e+00> : vector<32x32xf32>
    %533 = tpu.matmul %532, %422, %cst_156 {dimension_numbers = #tpu.dot_dimension_numbers<[1], [0], [0], [1], [0, 0, 1, 1], [], []>} : vector<32x32xf32>, vector<32x32xf32>, vector<32x32xf32> -> vector<32x32xf32>
    %534 = arith.addf %408, %533 : vector<32x32xf32>
    %535 = vector.shape_cast %414 : vector<32xf32> to vector<1x32xf32>
    %536 = vector.broadcast %535 : vector<1x32xf32> to vector<32x32xf32>
    %537 = arith.addf %534, %536 : vector<32x32xf32>
    %cst_157 = arith.constant dense<0.000000e+00> : vector<32xf32>
    %538 = vector.multi_reduction <add>, %537, %cst_157 [1] : vector<32x32xf32> to vector<32xf32>
    %539 = vector.shape_cast %538 : vector<32xf32> to vector<32x1xf32>
    %cst_158 = arith.constant 3.200000e+01 : f32
    %540 = vector.broadcast %cst_158 : f32 to vector<32x1xf32>
    %541 = arith.divf %539, %540 : vector<32x1xf32>
    %542 = vector.broadcast %541 : vector<32x1xf32> to vector<32x32xf32>
    %543 = arith.subf %537, %542 : vector<32x32xf32>
    %544 = arith.mulf %543, %543 : vector<32x32xf32>
    %cst_159 = arith.constant dense<0.000000e+00> : vector<32xf32>
    %545 = vector.multi_reduction <add>, %544, %cst_159 [1] : vector<32x32xf32> to vector<32xf32>
    %546 = vector.shape_cast %545 : vector<32xf32> to vector<32x1xf32>
    %cst_160 = arith.constant 3.200000e+01 : f32
    %547 = vector.broadcast %cst_160 : f32 to vector<32x1xf32>
    %548 = arith.divf %546, %547 : vector<32x1xf32>
    %cst_161 = arith.constant 9.99999974E-6 : f32
    %549 = vector.broadcast %cst_161 : f32 to vector<32x1xf32>
    %550 = arith.addf %548, %549 : vector<32x1xf32>
    %551 = math.rsqrt %550 : vector<32x1xf32>
    %552 = vector.broadcast %551 : vector<32x1xf32> to vector<32x32xf32>
    %553 = arith.mulf %543, %552 : vector<32x32xf32>
    %554 = vector.shape_cast %415 : vector<32xf32> to vector<1x32xf32>
    %555 = vector.broadcast %554 : vector<1x32xf32> to vector<32x32xf32>
    %556 = arith.mulf %553, %555 : vector<32x32xf32>
    %557 = vector.shape_cast %416 : vector<32xf32> to vector<1x32xf32>
    %558 = vector.broadcast %557 : vector<1x32xf32> to vector<32x32xf32>
    %559 = arith.addf %556, %558 : vector<32x32xf32>
    %cst_162 = arith.constant dense<0.000000e+00> : vector<32x128xf32>
    %560 = tpu.matmul %559, %423, %cst_162 {dimension_numbers = #tpu.dot_dimension_numbers<[1], [0], [0], [1], [0, 0, 1, 1], [], []>} : vector<32x32xf32>, vector<32x128xf32>, vector<32x128xf32> -> vector<32x128xf32>
    %561 = vector.shape_cast %417 : vector<128xf32> to vector<1x128xf32>
    %562 = vector.broadcast %561 : vector<1x128xf32> to vector<32x128xf32>
    %563 = arith.addf %560, %562 : vector<32x128xf32>
    %cst_163 = arith.constant 5.000000e-01 : f32
    %564 = vector.broadcast %cst_163 : f32 to vector<32x128xf32>
    %565 = arith.mulf %564, %563 : vector<32x128xf32>
    %cst_164 = arith.constant 4.471500e-02 : f32
    %566 = vector.broadcast %cst_164 : f32 to vector<32x128xf32>
    %567 = arith.mulf %566, %563 : vector<32x128xf32>
    %568 = arith.mulf %567, %563 : vector<32x128xf32>
    %569 = arith.mulf %568, %563 : vector<32x128xf32>
    %570 = arith.addf %563, %569 : vector<32x128xf32>
    %cst_165 = arith.constant 0.797884583 : f32
    %571 = vector.broadcast %cst_165 : f32 to vector<32x128xf32>
    %572 = arith.mulf %571, %570 : vector<32x128xf32>
    %573 = math.tanh %572 : vector<32x128xf32>
    %cst_166 = arith.constant 1.000000e+00 : f32
    %574 = vector.broadcast %cst_166 : f32 to vector<32x128xf32>
    %575 = arith.addf %574, %573 : vector<32x128xf32>
    %576 = arith.mulf %565, %575 : vector<32x128xf32>
    %cst_167 = arith.constant dense<0.000000e+00> : vector<32x32xf32>
    %577 = tpu.matmul %576, %425, %cst_167 {dimension_numbers = #tpu.dot_dimension_numbers<[1], [0], [0], [1], [0, 0, 1, 1], [], []>} : vector<32x128xf32>, vector<128x32xf32>, vector<32x32xf32> -> vector<32x32xf32>
    %578 = vector.shape_cast %418 : vector<32xf32> to vector<1x32xf32>
    %579 = vector.broadcast %578 : vector<1x32xf32> to vector<32x32xf32>
    %580 = arith.addf %577, %579 : vector<32x32xf32>
    %581 = arith.addf %537, %580 : vector<32x32xf32>
    %c0_168 = arith.constant 0 : index
    %c0_169 = arith.constant 0 : index
    %582 = vector.load %arg17[%c0_168, %c0_169] : memref<1x64xf32, #tpu.memory_space<vmem>>, vector<1x64xf32>
    %583 = vector.shape_cast %582 : vector<1x64xf32> to vector<64xf32>
    %584 = vector.extract_strided_slice %583 {offsets = [0], sizes = [32], strides = [1]} : vector<64xf32> to vector<32xf32>
    %585 = vector.extract_strided_slice %583 {offsets = [32], sizes = [32], strides = [1]} : vector<64xf32> to vector<32xf32>
    %cst_170 = arith.constant dense<0.000000e+00> : vector<32xf32>
    %586 = vector.multi_reduction <add>, %581, %cst_170 [1] : vector<32x32xf32> to vector<32xf32>
    %587 = vector.shape_cast %586 : vector<32xf32> to vector<32x1xf32>
    %cst_171 = arith.constant 3.200000e+01 : f32
    %588 = vector.broadcast %cst_171 : f32 to vector<32x1xf32>
    %589 = arith.divf %587, %588 : vector<32x1xf32>
    %590 = vector.broadcast %589 : vector<32x1xf32> to vector<32x32xf32>
    %591 = arith.subf %581, %590 : vector<32x32xf32>
    %592 = arith.mulf %591, %591 : vector<32x32xf32>
    %cst_172 = arith.constant dense<0.000000e+00> : vector<32xf32>
    %593 = vector.multi_reduction <add>, %592, %cst_172 [1] : vector<32x32xf32> to vector<32xf32>
    %594 = vector.shape_cast %593 : vector<32xf32> to vector<32x1xf32>
    %cst_173 = arith.constant 3.200000e+01 : f32
    %595 = vector.broadcast %cst_173 : f32 to vector<32x1xf32>
    %596 = arith.divf %594, %595 : vector<32x1xf32>
    %cst_174 = arith.constant 9.99999974E-6 : f32
    %597 = vector.broadcast %cst_174 : f32 to vector<32x1xf32>
    %598 = arith.addf %596, %597 : vector<32x1xf32>
    %599 = math.rsqrt %598 : vector<32x1xf32>
    %600 = vector.broadcast %599 : vector<32x1xf32> to vector<32x32xf32>
    %601 = arith.mulf %591, %600 : vector<32x32xf32>
    %602 = vector.shape_cast %584 : vector<32xf32> to vector<1x32xf32>
    %603 = vector.broadcast %602 : vector<1x32xf32> to vector<32x32xf32>
    %604 = arith.mulf %601, %603 : vector<32x32xf32>
    %605 = vector.shape_cast %585 : vector<32xf32> to vector<1x32xf32>
    %606 = vector.broadcast %605 : vector<1x32xf32> to vector<32x32xf32>
    %607 = arith.addf %604, %606 : vector<32x32xf32>
    %c0_175 = arith.constant 0 : index
    %c0_176 = arith.constant 0 : index
    %608 = vector.load %arg18[%c0_175, %c0_176] : memref<33x64xf32, #tpu.memory_space<vmem>>, vector<33x64xf32>
    %609 = vector.extract_strided_slice %608 {offsets = [0, 0], sizes = [32, 64], strides = [1, 1]} : vector<33x64xf32> to vector<32x64xf32>
    %cst_177 = arith.constant dense<0.000000e+00> : vector<32x64xf32>
    %610 = tpu.matmul %607, %609, %cst_177 {dimension_numbers = #tpu.dot_dimension_numbers<[1], [0], [0], [1], [0, 0, 1, 1], [], []>} : vector<32x32xf32>, vector<32x64xf32>, vector<32x64xf32> -> vector<32x64xf32>
    %611 = vector.extract_strided_slice %608 {offsets = [32, 0], sizes = [1, 64], strides = [1, 1]} : vector<33x64xf32> to vector<1x64xf32>
    %612 = vector.broadcast %611 : vector<1x64xf32> to vector<32x64xf32>
    %613 = arith.addf %610, %612 : vector<32x64xf32>
    %614 = vector.shape_cast %613 : vector<32x64xf32> to vector<2x16x64xf32>
    %c0_178 = arith.constant 0 : index
    %c0_179 = arith.constant 0 : index
    %c0_180 = arith.constant 0 : index
    %615 = vector.load %arg19[%c0_178, %c0_179, %c0_180] : memref<2x16x64xf32, #tpu.memory_space<vmem>>, vector<2x16x64xf32>
    %616 = arith.subf %614, %615 : vector<2x16x64xf32>
    %617 = arith.mulf %616, %616 : vector<2x16x64xf32>
    %cst_181 = arith.constant dense<0.000000e+00> : vector<2x16xf32>
    %618 = vector.multi_reduction <add>, %617, %cst_181 [2] : vector<2x16x64xf32> to vector<2x16xf32>
    %cst_182 = arith.constant 6.400000e+01 : f32
    %619 = vector.broadcast %cst_182 : f32 to vector<2x16xf32>
    %620 = arith.divf %618, %619 : vector<2x16xf32>
    %621 = arith.mulf %620, %393 : vector<2x16xf32>
    %622 = vector.shape_cast %621 : vector<2x16xf32> to vector<1x2x16xf32>
    %cst_183 = arith.constant dense<0.000000e+00> : vector<1xf32>
    %623 = vector.multi_reduction <add>, %622, %cst_183 [1, 2] : vector<1x2x16xf32> to vector<1xf32>
    %624 = vector.shape_cast %623 : vector<1xf32> to vector<1x1x1xf32>
    %625 = vector.extract %624[0, 0, 0] : f32 from vector<1x1x1xf32>
    %626 = vector.broadcast %625 : f32 to vector<1x1xf32>
    %627 = vector.shape_cast %393 : vector<2x16xf32> to vector<1x2x16xf32>
    %cst_184 = arith.constant dense<0.000000e+00> : vector<1xf32>
    %628 = vector.multi_reduction <add>, %627, %cst_184 [1, 2] : vector<1x2x16xf32> to vector<1xf32>
    %629 = vector.shape_cast %628 : vector<1xf32> to vector<1x1x1xf32>
    %630 = vector.extract %629[0, 0, 0] : f32 from vector<1x1x1xf32>
    %631 = vector.broadcast %630 : f32 to vector<1x1xf32>
    %632 = arith.divf %626, %631 : vector<1x1xf32>
    %c0_185 = arith.constant 0 : index
    %c0_186 = arith.constant 0 : index
    %633 = vector.load %arg21[%c0_185, %c0_186] : memref<1x1xf32, #tpu.memory_space<vmem>>, vector<1x1xf32>
    tpu.vector_store %arg21[%c0_185, %c0_186], %632 {strides = array<i32>} : memref<1x1xf32, #tpu.memory_space<vmem>>, vector<1x1xf32>,
    %634 = vector.extract_strided_slice %614 {offsets = [0, 0, 0], sizes = [2, 1, 64], strides = [1, 1, 1]} : vector<2x16x64xf32> to vector<2x1x64xf32>
    %635 = vector.shape_cast %634 : vector<2x1x64xf32> to vector<2x64xf32>
    %636 = vector.extract_strided_slice %614 {offsets = [0, 1, 0], sizes = [2, 1, 64], strides = [1, 1, 1]} : vector<2x16x64xf32> to vector<2x1x64xf32>
    %637 = vector.shape_cast %636 : vector<2x1x64xf32> to vector<2x64xf32>
    %638 = vector.extract_strided_slice %614 {offsets = [0, 2, 0], sizes = [2, 1, 64], strides = [1, 1, 1]} : vector<2x16x64xf32> to vector<2x1x64xf32>
    %639 = vector.shape_cast %638 : vector<2x1x64xf32> to vector<2x64xf32>
    %640 = vector.extract_strided_slice %614 {offsets = [0, 3, 0], sizes = [2, 1, 64], strides = [1, 1, 1]} : vector<2x16x64xf32> to vector<2x1x64xf32>
    %641 = vector.shape_cast %640 : vector<2x1x64xf32> to vector<2x64xf32>
    %642 = vector.extract_strided_slice %614 {offsets = [0, 4, 0], sizes = [2, 1, 64], strides = [1, 1, 1]} : vector<2x16x64xf32> to vector<2x1x64xf32>
    %643 = vector.shape_cast %642 : vector<2x1x64xf32> to vector<2x64xf32>
    %644 = vector.extract_strided_slice %614 {offsets = [0, 5, 0], sizes = [2, 1, 64], strides = [1, 1, 1]} : vector<2x16x64xf32> to vector<2x1x64xf32>
    %645 = vector.shape_cast %644 : vector<2x1x64xf32> to vector<2x64xf32>
    %646 = vector.extract_strided_slice %614 {offsets = [0, 6, 0], sizes = [2, 1, 64], strides = [1, 1, 1]} : vector<2x16x64xf32> to vector<2x1x64xf32>
    %647 = vector.shape_cast %646 : vector<2x1x64xf32> to vector<2x64xf32>
    %648 = vector.extract_strided_slice %614 {offsets = [0, 7, 0], sizes = [2, 1, 64], strides = [1, 1, 1]} : vector<2x16x64xf32> to vector<2x1x64xf32>
    %649 = vector.shape_cast %648 : vector<2x1x64xf32> to vector<2x64xf32>
    %650 = vector.extract_strided_slice %614 {offsets = [0, 8, 0], sizes = [2, 1, 64], strides = [1, 1, 1]} : vector<2x16x64xf32> to vector<2x1x64xf32>
    %651 = vector.shape_cast %650 : vector<2x1x64xf32> to vector<2x64xf32>
    %652 = vector.extract_strided_slice %614 {offsets = [0, 9, 0], sizes = [2, 1, 64], strides = [1, 1, 1]} : vector<2x16x64xf32> to vector<2x1x64xf32>
    %653 = vector.shape_cast %652 : vector<2x1x64xf32> to vector<2x64xf32>
    %654 = vector.extract_strided_slice %614 {offsets = [0, 10, 0], sizes = [2, 1, 64], strides = [1, 1, 1]} : vector<2x16x64xf32> to vector<2x1x64xf32>
    %655 = vector.shape_cast %654 : vector<2x1x64xf32> to vector<2x64xf32>
    %656 = vector.extract_strided_slice %614 {offsets = [0, 11, 0], sizes = [2, 1, 64], strides = [1, 1, 1]} : vector<2x16x64xf32> to vector<2x1x64xf32>
    %657 = vector.shape_cast %656 : vector<2x1x64xf32> to vector<2x64xf32>
    %658 = vector.extract_strided_slice %614 {offsets = [0, 12, 0], sizes = [2, 1, 64], strides = [1, 1, 1]} : vector<2x16x64xf32> to vector<2x1x64xf32>
    %659 = vector.shape_cast %658 : vector<2x1x64xf32> to vector<2x64xf32>
    %660 = vector.extract_strided_slice %614 {offsets = [0, 13, 0], sizes = [2, 1, 64], strides = [1, 1, 1]} : vector<2x16x64xf32> to vector<2x1x64xf32>
    %661 = vector.shape_cast %660 : vector<2x1x64xf32> to vector<2x64xf32>
    %662 = vector.extract_strided_slice %614 {offsets = [0, 14, 0], sizes = [2, 1, 64], strides = [1, 1, 1]} : vector<2x16x64xf32> to vector<2x1x64xf32>
    %663 = vector.shape_cast %662 : vector<2x1x64xf32> to vector<2x64xf32>
    %664 = vector.extract_strided_slice %614 {offsets = [0, 15, 0], sizes = [2, 1, 64], strides = [1, 1, 1]} : vector<2x16x64xf32> to vector<2x1x64xf32>
    %665 = vector.shape_cast %664 : vector<2x1x64xf32> to vector<2x64xf32>
    %666 = tpu.concatenate %635, %637, %639, %641, %643, %645, %647, %649, %651, %653, %655, %657, %659, %661, %663, %665 in 1 : vector<2x64xf32>, vector<2x64xf32>, vector<2x64xf32>, vector<2x64xf32>, vector<2x64xf32>, vector<2x64xf32>, vector<2x64xf32>, vector<2x64xf32>, vector<2x64xf32>, vector<2x64xf32>, vector<2x64xf32>, vector<2x64xf32>, vector<2x64xf32>, vector<2x64xf32>, vector<2x64xf32>, vector<2x64xf32> -> vector<2x1024xf32>
    %c0_187 = arith.constant 0 : index
    %c0_188 = arith.constant 0 : index
    %667 = vector.load %arg20[%c0_187, %c0_188] : memref<2x1024xf32, #tpu.memory_space<vmem>>, vector<2x1024xf32>
    tpu.vector_store %arg20[%c0_187, %c0_188], %666 {strides = array<i32>} : memref<2x1024xf32, #tpu.memory_space<vmem>>, vector<2x1024xf32>,
    return
  }
}

</mosaic_0001>

<llo_original>
// kernel: mae_forward.1
$region0: #{mae_forward.1}
  #allocation0 [shape = 'u32[]', space=smem, size = 0x4, offset = 0x4, fixed_abs, tag = 'smem constant byte address 0x4 - core index']
  #allocation1 [shape = 'u32[72,128]{1,0:T(1,128)}', space=vmem, size = 0x9000, scoped, tag = 'internal scratch']
  %s0 = inlined_call_operand.vmem [shape: f32[32,128], index: 0, kind: input, shape index: {}]
  %s1 = inlined_call_operand.vmem [shape: f32[2,4,16], index: 1, kind: input, shape index: {}]
  %s2 = inlined_call_operand.vmem [shape: f32[2,16,4], index: 2, kind: input, shape index: {}]
  %s3 = inlined_call_operand.vmem [shape: f32[2,16], index: 3, kind: input, shape index: {}]
  %s4 = inlined_call_operand.vmem [shape: f32[16,32], index: 4, kind: input, shape index: {}]
  %s5 = inlined_call_operand.vmem [shape: f32[128,32], index: 5, kind: input, shape index: {}]
  %s6 = inlined_call_operand.vmem [shape: f32[1,32], index: 6, kind: input, shape index: {}]
  %s7 = inlined_call_operand.vmem [shape: f32[2,32,256], index: 7, kind: input, shape index: {}]
  %s8 = inlined_call_operand.vmem [shape: f32[2,128,32], index: 8, kind: input, shape index: {}]
  %s9 = inlined_call_operand.vmem [shape: f32[2,416], index: 9, kind: input, shape index: {}]
  %s10 = inlined_call_operand.vmem [shape: f32[1,64], index: 10, kind: input, shape index: {}]
  %s11 = inlined_call_operand.vmem [shape: f32[33,32], index: 11, kind: input, shape index: {}]
  %s12 = inlined_call_operand.vmem [shape: f32[1,32], index: 12, kind: input, shape index: {}]
  %s13 = inlined_call_operand.vmem [shape: f32[16,32], index: 13, kind: input, shape index: {}]
  %s14 = inlined_call_operand.vmem [shape: f32[1,32,256], index: 14, kind: input, shape index: {}]
  %s15 = inlined_call_operand.vmem [shape: f32[1,128,32], index: 15, kind: input, shape index: {}]
  %s16 = inlined_call_operand.vmem [shape: f32[1,416], index: 16, kind: input, shape index: {}]
  %s17 = inlined_call_operand.vmem [shape: f32[1,64], index: 17, kind: input, shape index: {}]
  %s18 = inlined_call_operand.vmem [shape: f32[33,64], index: 18, kind: input, shape index: {}]
  %s19 = inlined_call_operand.vmem [shape: f32[2,16,64], index: 19, kind: input, shape index: {}]
  %s20 = inlined_call_operand.vmem [shape: f32[2,1024], index: 20, kind: output, shape index: {0}]
  %s21 = inlined_call_operand.hbm [shape: f32[1,1], index: 21, kind: output, shape index: {1}]
  %22 = xla_tuple %s20, %s21
  %s23 = sld [smem:[#allocation0]]
  $region98: #{mae_forward.1} parent=0
    _
  %s25 = ssub.s32 1, %s23
  %s26 = scalar_select 0, %s25, %s23
  $region1: #{mae_forward.1} parent=0
    #allocation2 [shape = 'u8[512]{0}', space=vmem, size = 0x400, scoped, tag = 'output window, operand 1, single buffered']
    #allocation3 [shape = 's32[1]{0}', space=sflag, size = 0x4, scoped, tag = 'scoped memory for mae_forward.1']
    %27 = vsyncpa [#allocation3], 0
    // Predicated region
    $region2: #{mae_forward.1} parent=1 // pred_check
      _
    $region3: #{mae_forward.1} parent=1 // pred_check_branch
      %29 = sbr.rel (0) target = $region5
    $region4: #{mae_forward.1} parent=1 // pred_region
      _
    $region5: #{mae_forward.1} parent=1 // pred_fallthru
      _
    // Predicated region
    $region6: #{mae_forward.1} parent=1 // pred_check
      _
    $region7: #{mae_forward.1} parent=1 // pred_check_branch
      %31 = sbr.rel (0) target = $region9
    $region8: #{mae_forward.1} parent=1 // pred_region
      _
    $region9: #{mae_forward.1} parent=1 // pred_fallthru
      _
    // Predicated region
    $region10: #{mae_forward.1} parent=1 // pred_check
      _
    $region11: #{mae_forward.1} parent=1 // pred_check_branch
      %33 = sbr.rel (0) target = $region13
    $region12: #{mae_forward.1} parent=1 // pred_region
      _
    $region13: #{mae_forward.1} parent=1 // pred_fallthru
      _
    // Predicated region
    $region14: #{mae_forward.1} parent=1 // pred_check
      _
    $region15: #{mae_forward.1} parent=1 // pred_check_branch
      %35 = sbr.rel (0) target = $region17
    $region16: #{mae_forward.1} parent=1 // pred_region
      _
    $region17: #{mae_forward.1} parent=1 // pred_fallthru
      _
    // Predicated region
    $region18: #{mae_forward.1} parent=1 // pred_check
      _
    $region19: #{mae_forward.1} parent=1 // pred_check_branch
      %37 = sbr.rel (0) target = $region21
    $region20: #{mae_forward.1} parent=1 // pred_region
      _
    $region21: #{mae_forward.1} parent=1 // pred_fallthru
      _
    // Predicated region
    $region22: #{mae_forward.1} parent=1 // pred_check
      _
    $region23: #{mae_forward.1} parent=1 // pred_check_branch
      %39 = sbr.rel (0) target = $region25
    $region24: #{mae_forward.1} parent=1 // pred_region
      _
    $region25: #{mae_forward.1} parent=1 // pred_fallthru
      _
    // Predicated region
    $region26: #{mae_forward.1} parent=1 // pred_check
      _
    $region27: #{mae_forward.1} parent=1 // pred_check_branch
      %41 = sbr.rel (0) target = $region29
    $region28: #{mae_forward.1} parent=1 // pred_region
      _
    $region29: #{mae_forward.1} parent=1 // pred_fallthru
      _
    // Predicated region
    $region30: #{mae_forward.1} parent=1 // pred_check
      _
    $region31: #{mae_forward.1} parent=1 // pred_check_branch
      %43 = sbr.rel (0) target = $region33
    $region32: #{mae_forward.1} parent=1 // pred_region
      _
    $region33: #{mae_forward.1} parent=1 // pred_fallthru
      _
    // Predicated region
    $region34: #{mae_forward.1} parent=1 // pred_check
      _
    $region35: #{mae_forward.1} parent=1 // pred_check_branch
      %45 = sbr.rel (0) target = $region37
    $region36: #{mae_forward.1} parent=1 // pred_region
      _
    $region37: #{mae_forward.1} parent=1 // pred_fallthru
      _
    // Predicated region
    $region38: #{mae_forward.1} parent=1 // pred_check
      _
    $region39: #{mae_forward.1} parent=1 // pred_check_branch
      %47 = sbr.rel (0) target = $region41
    $region40: #{mae_forward.1} parent=1 // pred_region
      _
    $region41: #{mae_forward.1} parent=1 // pred_fallthru
      _
    // Predicated region
    $region42: #{mae_forward.1} parent=1 // pred_check
      _
    $region43: #{mae_forward.1} parent=1 // pred_check_branch
      %49 = sbr.rel (0) target = $region45
    $region44: #{mae_forward.1} parent=1 // pred_region
      _
    $region45: #{mae_forward.1} parent=1 // pred_fallthru
      _
    // Predicated region
    $region46: #{mae_forward.1} parent=1 // pred_check
      _
    $region47: #{mae_forward.1} parent=1 // pred_check_branch
      %51 = sbr.rel (0) target = $region49
    $region48: #{mae_forward.1} parent=1 // pred_region
      _
    $region49: #{mae_forward.1} parent=1 // pred_fallthru
      _
    // Predicated region
    $region50: #{mae_forward.1} parent=1 // pred_check
      _
    $region51: #{mae_forward.1} parent=1 // pred_check_branch
      %53 = sbr.rel (0) target = $region53
    $region52: #{mae_forward.1} parent=1 // pred_region
      _
    $region53: #{mae_forward.1} parent=1 // pred_fallthru
      _
    // Predicated region
    $region54: #{mae_forward.1} parent=1 // pred_check
      _
    $region55: #{mae_forward.1} parent=1 // pred_check_branch
      %55 = sbr.rel (0) target = $region57
    $region56: #{mae_forward.1} parent=1 // pred_region
      _
    $region57: #{mae_forward.1} parent=1 // pred_fallthru
      _
    // Predicated region
    $region58: #{mae_forward.1} parent=1 // pred_check
      _
    $region59: #{mae_forward.1} parent=1 // pred_check_branch
      %57 = sbr.rel (0) target = $region61
    $region60: #{mae_forward.1} parent=1 // pred_region
      _
    $region61: #{mae_forward.1} parent=1 // pred_fallthru
      _
    // Predicated region
    $region62: #{mae_forward.1} parent=1 // pred_check
      _
    $region63: #{mae_forward.1} parent=1 // pred_check_branch
      %59 = sbr.rel (0) target = $region65
    $region64: #{mae_forward.1} parent=1 // pred_region
      _
    $region65: #{mae_forward.1} parent=1 // pred_fallthru
      _
    // Predicated region
    $region66: #{mae_forward.1} parent=1 // pred_check
      _
    $region67: #{mae_forward.1} parent=1 // pred_check_branch
      %61 = sbr.rel (0) target = $region69
    $region68: #{mae_forward.1} parent=1 // pred_region
      _
    $region69: #{mae_forward.1} parent=1 // pred_fallthru
      _
    // Predicated region
    $region70: #{mae_forward.1} parent=1 // pred_check
      _
    $region71: #{mae_forward.1} parent=1 // pred_check_branch
      %63 = sbr.rel (0) target = $region73
    $region72: #{mae_forward.1} parent=1 // pred_region
      _
    $region73: #{mae_forward.1} parent=1 // pred_fallthru
      _
    // Predicated region
    $region74: #{mae_forward.1} parent=1 // pred_check
      _
    $region75: #{mae_forward.1} parent=1 // pred_check_branch
      %65 = sbr.rel (0) target = $region77
    $region76: #{mae_forward.1} parent=1 // pred_region
      _
    $region77: #{mae_forward.1} parent=1 // pred_fallthru
      _
    // Predicated region
    $region78: #{mae_forward.1} parent=1 // pred_check
      _
    $region79: #{mae_forward.1} parent=1 // pred_check_branch
      %67 = sbr.rel (0) target = $region81
    $region80: #{mae_forward.1} parent=1 // pred_region
      _
    $region81: #{mae_forward.1} parent=1 // pred_fallthru
      _
    %v68 = vld [vmem:[%s0] sm:$0xff]
    %v69 = vld [vmem:[%s0 + $0x8] sm:$0xff]
    %v70 = vld [vmem:[%s0 + $0x10] sm:$0xff]
    %v71 = vld [vmem:[%s0 + $0x18] sm:$0xff]
    %v72 = vld [vmem:[%s5] sm:$0xff]
    %v73 = vld [vmem:[%s5 + $0x8] sm:$0xff]
    %v74 = vld [vmem:[%s5 + $0x10] sm:$0xff]
    %v75 = vld [vmem:[%s5 + $0x18] sm:$0xff]
    %v76 = vld [vmem:[%s5 + $0x20] sm:$0xff]
    %v77 = vld [vmem:[%s5 + $0x28] sm:$0xff]
    %v78 = vld [vmem:[%s5 + $0x30] sm:$0xff]
    %v79 = vld [vmem:[%s5 + $0x38] sm:$0xff]
    %v80 = vld [vmem:[%s5 + $0x40] sm:$0xff]
    %v81 = vld [vmem:[%s5 + $0x48] sm:$0xff]
    %v82 = vld [vmem:[%s5 + $0x50] sm:$0xff]
    %v83 = vld [vmem:[%s5 + $0x58] sm:$0xff]
    %v84 = vld [vmem:[%s5 + $0x60] sm:$0xff]
    %v85 = vld [vmem:[%s5 + $0x68] sm:$0xff]
    %v86 = vld [vmem:[%s5 + $0x70] sm:$0xff]
    %v87 = vld [vmem:[%s5 + $0x78] sm:$0xff]
    %v88 = vld [vmem:[%s6] sm:$0x1]
    %v90 = vperm.slane %v88, 0
    %92 = vmatpush.msra.mxu0 %v87
    %93 = vmatpush.msra.mxu0 %v86
    %94 = vmatpush.msra.mxu0 %v85
    %95 = vmatpush.msra.mxu0 %v84
    %96 = vmatpush.msra.mxu0 %v83
    %97 = vmatpush.msra.mxu0 %v82
    %98 = vmatpush.msra.mxu0 %v81
    %99 = vmatpush.msra.mxu0 %v80
    %100 = vmatpush.msra.mxu0 %v79
    %101 = vmatpush.msra.mxu0 %v78
    %102 = vmatpush.msra.mxu0 %v77
    %103 = vmatpush.msra.mxu0 %v76
    %104 = vmatpush.msra.mxu0 %v75
    %105 = vmatpush.msra.mxu0 %v74
    %106 = vmatpush.msra.mxu0 %v73
    %107 = vmatpush.msra.mxu0 %v72
    %108 = vmatmul.f32.gmra.mxu0 %v68
    %v109 = vpop.f32.mrf.mxu0
    %v110 = vadd.f32 %v90, %v109
    %111 = vmatmul.f32.gmra.mxu0 %v69
    %v112 = vpop.f32.mrf.mxu0
    %v113 = vadd.f32 %v90, %v112
    %114 = vmatmul.f32.gmra.mxu0 %v70
    %v115 = vpop.f32.mrf.mxu0
    %v116 = vadd.f32 %v90, %v115
    %117 = vmatmul.f32.gmra.mxu0 %v71
    %v118 = vpop.f32.mrf.mxu0
    %v119 = vadd.f32 %v90, %v118
    %120 = vdwg.mxu0
    %v121 = vld [vmem:[%s4] sm:$0xff]
    %v122 = vld [vmem:[%s4 + $0x8] sm:$0xff]
    %v123 = vadd.f32 %v110, %v121
    %v124 = vadd.f32 %v113, %v122
    %v125 = vadd.f32 %v116, %v121
    %v126 = vadd.f32 %v119, %v122
    %v127 = vld [vmem:[%s1] sm:$0xf]
    %v128 = vld [vmem:[%s1 + $0x4] sm:$0xf]
    %vm129 = vcmask 130048
    %v131 = vsel %vm129, %v127, 0
    %133 = vmatpush.msra.mxu0 0.0
    %134 = vmatpush.msra.mxu0 0.0
    %135 = vmatpush.msra.mxu0 0.0
    %136 = vmatpush.msra.mxu0 0.0
    %137 = vmatpush.msra.mxu0 0.0
    %138 = vmatpush.msra.mxu0 0.0
    %139 = vmatpush.msra.mxu0 0.0
    %140 = vmatpush.msra.mxu0 0.0
    %141 = vmatpush.msra.mxu0 0.0
    %142 = vmatpush.msra.mxu0 0.0
    %143 = vmatpush.msra.mxu0 0.0
    %144 = vmatpush.msra.mxu0 0.0
    %145 = vmatpush.msra.mxu0 0.0
    %146 = vmatpush.msra.mxu0 0.0
    %147 = vmatpush.msra.mxu0 %v124
    %148 = vmatpush.msra.mxu0 %v123
    %149 = vmatmul.f32.gmra.mxu0 %v131
    %v150 = vpop.f32.mrf.mxu0
    %v151 = vadd.f32 0.0, %v150
    %152 = vdwg.mxu0
    %v154 = vsel %vm129, %v128, 0
    %156 = vmatpush.msra.mxu0 0.0
    %157 = vmatpush.msra.mxu0 0.0
    %158 = vmatpush.msra.mxu0 0.0
    %159 = vmatpush.msra.mxu0 0.0
    %160 = vmatpush.msra.mxu0 0.0
    %161 = vmatpush.msra.mxu0 0.0
    %162 = vmatpush.msra.mxu0 0.0
    %163 = vmatpush.msra.mxu0 0.0
    %164 = vmatpush.msra.mxu0 0.0
    %165 = vmatpush.msra.mxu0 0.0
    %166 = vmatpush.msra.mxu0 0.0
    %167 = vmatpush.msra.mxu0 0.0
    %168 = vmatpush.msra.mxu0 0.0
    %169 = vmatpush.msra.mxu0 0.0
    %170 = vmatpush.msra.mxu0 %v126
    %171 = vmatpush.msra.mxu0 %v125
    %172 = vmatmul.f32.gmra.mxu0 %v154
    %v173 = vpop.f32.mrf.mxu0
    %v174 = vadd.f32 0.0, %v173
    %175 = vdwg.mxu0
    %v176 = vld [vmem:[%s9] ss:$2 sm:$0xf]
    %v177 = vld [vmem:[%s7] sm:$0xff]
    %v178 = vld [vmem:[%s7 + $0x8] sm:$0xff]
    %v179 = vld [vmem:[%s7 + $0x10] sm:$0xff]
    %v180 = vld [vmem:[%s7 + $0x18] sm:$0xff]
    %v181 = vld [vmem:[%s7 + $0x20] sm:$0xff]
    %v182 = vld [vmem:[%s7 + $0x28] sm:$0xff]
    %v183 = vld [vmem:[%s7 + $0x30] sm:$0xff]
    %v184 = vld [vmem:[%s7 + $0x38] sm:$0xff]
    %v185 = vld [vmem:[%s8] sm:$0xff]
    %v186 = vld [vmem:[%s8 + $0x8] sm:$0xff]
    %v187 = vld [vmem:[%s8 + $0x10] sm:$0xff]
    %v188 = vld [vmem:[%s8 + $0x18] sm:$0xff]
    %v189 = vld [vmem:[%s8 + $0x20] sm:$0xff]
    %v190 = vld [vmem:[%s8 + $0x28] sm:$0xff]
    %v191 = vld [vmem:[%s8 + $0x30] sm:$0xff]
    %v192 = vld [vmem:[%s8 + $0x38] sm:$0xff]
    %v193 = vld [vmem:[%s8 + $0x40] sm:$0xff]
    %v194 = vld [vmem:[%s8 + $0x48] sm:$0xff]
    %v195 = vld [vmem:[%s8 + $0x50] sm:$0xff]
    %v196 = vld [vmem:[%s8 + $0x58] sm:$0xff]
    %v197 = vld [vmem:[%s8 + $0x60] sm:$0xff]
    %v198 = vld [vmem:[%s8 + $0x68] sm:$0xff]
    %v199 = vld [vmem:[%s8 + $0x70] sm:$0xff]
    %v200 = vld [vmem:[%s8 + $0x78] sm:$0xff]
    %203 = vst [vmem:[#allocation1] ss:$2 sm:$0xff] %v151
    %s204 = scalar_lea.vmem [#allocation1], 1
    %205 = vst [vmem:[%s204] ss:$2 sm:$0xff] %v174
    %v206 = vld.sshfl [vmem:[#allocation1] sm:$0xff pattern:$0x75316420]
    %vm208 = vcmask 261120
    %v209 = vsel %vm208, %v206, 0.0
    %210 = vadd.xlane.f32.xlu0 %v209
    %v211 = vpop.xlane.xlu0 %210
    %v212 = vrcp.pop 32.0
    %v213 = vmul.f32 32.0, %v212
    %v214 = vsub.f32 1.0, %v213
    %v215 = vmul.f32 %v212, %v214
    %v216 = vadd.f32 %v212, %v215
    %vm217 = vweird.f32 %v212
    %v218 = vsel %vm217, %v212, %v216
    %v219 = vmul.f32 %v211, %v218
    %v222 = vunpack.c.l.s4 839922192
    %v223 = vunpack.c.0.s8 %v222
    %v224 = vperm.slane %v219, %v223
    %v226 = vunpack.c.l.s4 1985246804
    %v227 = vunpack.c.0.s8 %v226
    %v228 = vperm.slane %v219, %v227
    %v231 = vsub.f32 %v151, %v224
    %v232 = vsub.f32 %v174, %v228
    %v233 = vmul.f32 %v231, %v231
    %v234 = vmul.f32 %v232, %v232
    %237 = vst [vmem:[#allocation1] ss:$2 sm:$0xff] %v233
    %s238 = scalar_lea.vmem [#allocation1], 1
    %239 = vst [vmem:[%s238] ss:$2 sm:$0xff] %v234
    %v240 = vld.sshfl [vmem:[#allocation1] sm:$0xff pattern:$0x75316420]
    %v242 = vsel %vm208, %v240, 0.0
    %243 = vadd.xlane.f32.xlu0 %v242
    %v244 = vpop.xlane.xlu0 %243
    %v245 = vmul.f32 %v244, %v218
    %v246 = vadd.f32 %v245, 1e-05
    %v247 = vrsqrt.pop %v246
    %v248 = vmul.f32 %v247, %v246
    %v249 = vmul.f32 %v248, %v247
    %v250 = vmul.f32 0.5, %v249
    %v251 = vsub.f32 1.5, %v250
    %v252 = vmul.f32 %v247, %v251
    %vm253 = vweird.f32 %v246
    %vm254 = vweird.f32 %v247
    %vm255 = vmor %vm253, %vm254
    %v256 = vsel %vm255, %v247, %v252
    %v259 = vunpack.c.l.s4 839922192
    %v260 = vunpack.c.0.s8 %v259
    %v261 = vperm.slane %v256, %v260
    %v263 = vunpack.c.l.s4 1985246804
    %v264 = vunpack.c.0.s8 %v263
    %v265 = vperm.slane %v256, %v264
    %v268 = vmul.f32 %v231, %v261
    %v269 = vmul.f32 %v232, %v265
    %v271 = vperm.slane %v176, 0
    %v273 = vrot.slane %v271, 4
    %v275 = vmul.f32 %v268, %v271
    %v276 = vmul.f32 %v269, %v273
    %277 = vrot.lane.b32.xlu0 %v271, 96
    %v278 = vpop.permute.xlu0 %277
    %279 = vrot.lane.b32.xlu0 %v273, 96
    %v280 = vpop.permute.xlu0 %279
    %v283 = vadd.f32 %v275, %v278
    %v284 = vadd.f32 %v276, %v280
    %v285 = vperm.slane %v176, 1
    %288 = vst [vmem:[#allocation1] ss:$2 sm:$0xff] %v283
    %s289 = scalar_lea.vmem [#allocation1], 1
    %290 = vst [vmem:[%s289] ss:$2 sm:$0xff] %v284
    %v291 = vld.sshfl [vmem:[#allocation1] sm:$0xff pattern:$0x75316420]
    %292 = vrot.lane.b32.xlu0 %v271, 64
    %v293 = vpop.permute.xlu0 %292
    %294 = vrot.lane.b32.xlu0 %v285, 64
    %v295 = vpop.permute.xlu0 %294
    %vm296 = vcmask 523264
    %v297 = vsel %vm296, %v293, %v295
    %v299 = vsel %vm208, %v291, 0
    %301 = vmatpush.msra.mxu0 0.0
    %302 = vmatpush.msra.mxu0 0.0
    %303 = vmatpush.msra.mxu0 0.0
    %304 = vmatpush.msra.mxu0 0.0
    %305 = vmatpush.msra.mxu0 0.0
    %306 = vmatpush.msra.mxu0 0.0
    %307 = vmatpush.msra.mxu0 0.0
    %308 = vmatpush.msra.mxu0 0.0
    %309 = vmatpush.msra.mxu0 0.0
    %310 = vmatpush.msra.mxu0 0.0
    %311 = vmatpush.msra.mxu0 0.0
    %312 = vmatpush.msra.mxu0 0.0
    %313 = vmatpush.msra.mxu0 %v183
    %314 = vmatpush.msra.mxu0 %v181
    %315 = vmatpush.msra.mxu0 %v179
    %316 = vmatpush.msra.mxu0 %v177
    %317 = vmatmul.f32.gmra.mxu0 %v299
    %v318 = vpop.f32.mrf.mxu0
    %v319 = vadd.f32 %v297, %v318
    %320 = vdwg.mxu0
    %v322 = vrot.slane %v319, 4
    %323 = vst [vmem:[#allocation1] ss:$2 sm:$0xff] %v319
    %v324 = vld.sshfl [vmem:[#allocation1] sm:$0xff pattern:$0x75316420]
    %325 = vrot.lane.b32.xlu0 %v324, 96
    %v326 = vpop.permute.xlu0 %325
    %vm327 = vcmask 64512
    %v328 = vsel %vm327, %v319, 0
    %v330 = vsel %vm327, %v326, 0
    %332 = vmatpush.xpose.msra.mxu0 0.0
    %333 = vmatpush.xpose.msra.mxu0 0.0
    %334 = vmatpush.xpose.msra.mxu0 0.0
    %335 = vmatpush.xpose.msra.mxu0 0.0
    %336 = vmatpush.xpose.msra.mxu0 0.0
    %337 = vmatpush.xpose.msra.mxu0 0.0
    %338 = vmatpush.xpose.msra.mxu0 0.0
    %339 = vmatpush.xpose.msra.mxu0 0.0
    %340 = vmatpush.xpose.msra.mxu0 0.0
    %341 = vmatpush.xpose.msra.mxu0 0.0
    %342 = vmatpush.xpose.msra.mxu0 0.0
    %343 = vmatpush.xpose.msra.mxu0 0.0
    %344 = vmatpush.xpose.msra.mxu0 0.0
    %345 = vmatpush.xpose.msra.mxu0 0.0
    %346 = vmatpush.xpose.msra.mxu0 0.0
    %347 = vmatpush.xpose.msra.mxu0 %v330
    %348 = vmatmul.f32.gmra.mxu0 %v328
    %v349 = vpop.f32.mrf.mxu0
    %v350 = vadd.f32 0.0, %v349
    %351 = vdwg.mxu0
    %352 = vst [vmem:[#allocation1] ss:$2 sm:$0xff] %v322
    %v353 = vld.sshfl [vmem:[#allocation1] sm:$0xff pattern:$0x75316420]
    %354 = vrot.lane.b32.xlu0 %v353, 96
    %v355 = vpop.permute.xlu0 %354
    %v356 = vsel %vm327, %v322, 0
    %v358 = vsel %vm327, %v355, 0
    %360 = vmatpush.xpose.msra.mxu0 0.0
    %361 = vmatpush.xpose.msra.mxu0 0.0
    %362 = vmatpush.xpose.msra.mxu0 0.0
    %363 = vmatpush.xpose.msra.mxu0 0.0
    %364 = vmatpush.xpose.msra.mxu0 0.0
    %365 = vmatpush.xpose.msra.mxu0 0.0
    %366 = vmatpush.xpose.msra.mxu0 0.0
    %367 = vmatpush.xpose.msra.mxu0 0.0
    %368 = vmatpush.xpose.msra.mxu0 0.0
    %369 = vmatpush.xpose.msra.mxu0 0.0
    %370 = vmatpush.xpose.msra.mxu0 0.0
    %371 = vmatpush.xpose.msra.mxu0 0.0
    %372 = vmatpush.xpose.msra.mxu0 0.0
    %373 = vmatpush.xpose.msra.mxu0 0.0
    %374 = vmatpush.xpose.msra.mxu0 0.0
    %375 = vmatpush.xpose.msra.mxu0 %v358
    %376 = vmatmul.f32.gmra.mxu0 %v356
    %v377 = vpop.f32.mrf.mxu0
    %v378 = vadd.f32 0.0, %v377
    %379 = vdwg.mxu0
    %v380 = vmul.f32 %v350, 0.35355338
    %v381 = vmul.f32 %v378, 0.35355338
    %vm382 = vcmask 27648
    %v383 = vsel %vm382, %v380, -inf
    %384 = vmax.xlane.f32.xlu0 %v383
    %v385 = vpop.xlane.xlu0 %384
    %v386 = vsel %vm382, %v381, -inf
    %387 = vmax.xlane.f32.xlu0 %v386
    %v388 = vpop.xlane.xlu0 %387
    %v389 = vsub.f32 %v380, %v385
    %v390 = vsub.f32 %v381, %v388
    %v391 = vmul.f32 %v389, 1.442695
    %v392 = vpow.pop %v391
    %v393 = vmul.f32 %v390, 1.442695
    %v394 = vpow.pop %v393
    %v395 = vsel %vm382, %v392, 0.0
    %396 = vadd.xlane.f32.xlu0 %v395
    %v397 = vpop.xlane.xlu0 %396
    %v398 = vsel %vm382, %v394, 0.0
    %399 = vadd.xlane.f32.xlu0 %v398
    %v400 = vpop.xlane.xlu0 %399
    %v401 = vrcp.pop %v397
    %v402 = vmul.f32 %v397, %v401
    %v403 = vsub.f32 1.0, %v402
    %v404 = vmul.f32 %v401, %v403
    %v405 = vadd.f32 %v401, %v404
    %vm406 = vweird.f32 %v397
    %vm407 = vweird.f32 %v401
    %vm408 = vmor %vm406, %vm407
    %v409 = vsel %vm408, %v401, %v405
    %v410 = vand.u32 2147483647, %v397
    %vm411 = vcmp.eq.f32.partialorder %v410, 8.507059e+37
    %v412 = vand.u32 %v397, 2147483648
    %v413 = vor.u32 1.1754944e-38, %v412
    %v414 = vsel %vm411, %v413, %v409
    %v415 = vmul.f32 %v392, %v414
    %v416 = vrcp.pop %v400
    %v417 = vmul.f32 %v400, %v416
    %v418 = vsub.f32 1.0, %v417
    %v419 = vmul.f32 %v416, %v418
    %v420 = vadd.f32 %v416, %v419
    %vm421 = vweird.f32 %v400
    %vm422 = vweird.f32 %v416
    %vm423 = vmor %vm421, %vm422
    %v424 = vsel %vm423, %v416, %v420
    %v425 = vand.u32 2147483647, %v400
    %vm426 = vcmp.eq.f32.partialorder %v425, 8.507059e+37
    %v427 = vand.u32 %v400, 2147483648
    %v428 = vor.u32 1.1754944e-38, %v427
    %v429 = vsel %vm426, %v428, %v424
    %v430 = vmul.f32 %v394, %v429
    %431 = vst [vmem:[#allocation1] ss:$2 sm:$0xff] %v319
    %v432 = vld.sshfl [vmem:[#allocation1] sm:$0xff pattern:$0x75316420]
    %433 = vrot.lane.b32.xlu0 %v432, 64
    %v434 = vpop.permute.xlu0 %433
    %vm435 = vcmask 31744
    %v437 = vsel %vm435, %v415, 0
    %vm439 = vcmask 1043456
    %v440 = vsel %vm439, %v434, 0
    %442 = vmatpush.msra.mxu0 0.0
    %443 = vmatpush.msra.mxu0 0.0
    %444 = vmatpush.msra.mxu0 0.0
    %445 = vmatpush.msra.mxu0 0.0
    %446 = vmatpush.msra.mxu0 0.0
    %447 = vmatpush.msra.mxu0 0.0
    %448 = vmatpush.msra.mxu0 0.0
    %449 = vmatpush.msra.mxu0 0.0
    %450 = vmatpush.msra.mxu0 0.0
    %451 = vmatpush.msra.mxu0 0.0
    %452 = vmatpush.msra.mxu0 0.0
    %453 = vmatpush.msra.mxu0 0.0
    %454 = vmatpush.msra.mxu0 0.0
    %455 = vmatpush.msra.mxu0 0.0
    %456 = vmatpush.msra.mxu0 0.0
    %457 = vmatpush.msra.mxu0 %v440
    %458 = vmatmul.f32.gmra.mxu0 %v437
    %v459 = vpop.f32.mrf.mxu0
    %v460 = vadd.f32 0.0, %v459
    %461 = vdwg.mxu0
    %462 = vst [vmem:[#allocation1] ss:$2 sm:$0xff] %v322
    %v463 = vld.sshfl [vmem:[#allocation1] sm:$0xff pattern:$0x75316420]
    %464 = vrot.lane.b32.xlu0 %v463, 64
    %v465 = vpop.permute.xlu0 %464
    %v467 = vsel %vm435, %v430, 0
    %v469 = vsel %vm439, %v465, 0
    %471 = vmatpush.msra.mxu0 0.0
    %472 = vmatpush.msra.mxu0 0.0
    %473 = vmatpush.msra.mxu0 0.0
    %474 = vmatpush.msra.mxu0 0.0
    %475 = vmatpush.msra.mxu0 0.0
    %476 = vmatpush.msra.mxu0 0.0
    %477 = vmatpush.msra.mxu0 0.0
    %478 = vmatpush.msra.mxu0 0.0
    %479 = vmatpush.msra.mxu0 0.0
    %480 = vmatpush.msra.mxu0 0.0
    %481 = vmatpush.msra.mxu0 0.0
    %482 = vmatpush.msra.mxu0 0.0
    %483 = vmatpush.msra.mxu0 0.0
    %484 = vmatpush.msra.mxu0 0.0
    %485 = vmatpush.msra.mxu0 0.0
    %486 = vmatpush.msra.mxu0 %v469
    %487 = vmatmul.f32.gmra.mxu0 %v467
    %v488 = vpop.f32.mrf.mxu0
    %v489 = vadd.f32 0.0, %v488
    %490 = vdwg.mxu0
    %491 = vst [vmem:[#allocation1] ss:$2 sm:$0xff] %v319
    %v492 = vld.sshfl [vmem:[#allocation1] sm:$0xff pattern:$0x75316420]
    %493 = vrot.lane.b32.xlu0 %v492, 120
    %v494 = vpop.permute.xlu0 %493
    %495 = vst [vmem:[#allocation1] ss:$2 sm:$0xff] %v319
    %v496 = vld.sshfl [vmem:[#allocation1] sm:$0xff pattern:$0x75316420]
    %497 = vrot.lane.b32.xlu0 %v496, 88
    %v498 = vpop.permute.xlu0 %497
    %v499 = vsel %vm327, %v494, 0
    %v501 = vsel %vm327, %v498, 0
    %503 = vmatpush.xpose.msra.mxu0 0.0
    %504 = vmatpush.xpose.msra.mxu0 0.0
    %505 = vmatpush.xpose.msra.mxu0 0.0
    %506 = vmatpush.xpose.msra.mxu0 0.0
    %507 = vmatpush.xpose.msra.mxu0 0.0
    %508 = vmatpush.xpose.msra.mxu0 0.0
    %509 = vmatpush.xpose.msra.mxu0 0.0
    %510 = vmatpush.xpose.msra.mxu0 0.0
    %511 = vmatpush.xpose.msra.mxu0 0.0
    %512 = vmatpush.xpose.msra.mxu0 0.0
    %513 = vmatpush.xpose.msra.mxu0 0.0
    %514 = vmatpush.xpose.msra.mxu0 0.0
    %515 = vmatpush.xpose.msra.mxu0 0.0
    %516 = vmatpush.xpose.msra.mxu0 0.0
    %517 = vmatpush.xpose.msra.mxu0 0.0
    %518 = vmatpush.xpose.msra.mxu0 %v501
    %519 = vmatmul.f32.gmra.mxu0 %v499
    %v520 = vpop.f32.mrf.mxu0
    %v521 = vadd.f32 0.0, %v520
    %522 = vdwg.mxu0
    %523 = vst [vmem:[#allocation1] ss:$2 sm:$0xff] %v322
    %v524 = vld.sshfl [vmem:[#allocation1] sm:$0xff pattern:$0x75316420]
    %525 = vrot.lane.b32.xlu0 %v524, 120
    %v526 = vpop.permute.xlu0 %525
    %527 = vst [vmem:[#allocation1] ss:$2 sm:$0xff] %v322
    %v528 = vld.sshfl [vmem:[#allocation1] sm:$0xff pattern:$0x75316420]
    %529 = vrot.lane.b32.xlu0 %v528, 88
    %v530 = vpop.permute.xlu0 %529
    %v531 = vsel %vm327, %v526, 0
    %v533 = vsel %vm327, %v530, 0
    %535 = vmatpush.xpose.msra.mxu0 0.0
    %536 = vmatpush.xpose.msra.mxu0 0.0
    %537 = vmatpush.xpose.msra.mxu0 0.0
    %538 = vmatpush.xpose.msra.mxu0 0.0
    %539 = vmatpush.xpose.msra.mxu0 0.0
    %540 = vmatpush.xpose.msra.mxu0 0.0
    %541 = vmatpush.xpose.msra.mxu0 0.0
    %542 = vmatpush.xpose.msra.mxu0 0.0
    %543 = vmatpush.xpose.msra.mxu0 0.0
    %544 = vmatpush.xpose.msra.mxu0 0.0
    %545 = vmatpush.xpose.msra.mxu0 0.0
    %546 = vmatpush.xpose.msra.mxu0 0.0
    %547 = vmatpush.xpose.msra.mxu0 0.0
    %548 = vmatpush.xpose.msra.mxu0 0.0
    %549 = vmatpush.xpose.msra.mxu0 0.0
    %550 = vmatpush.xpose.msra.mxu0 %v533
    %551 = vmatmul.f32.gmra.mxu0 %v531
    %v552 = vpop.f32.mrf.mxu0
    %v553 = vadd.f32 0.0, %v552
    %554 = vdwg.mxu0
    %v555 = vmul.f32 %v521, 0.35355338
    %v556 = vmul.f32 %v553, 0.35355338
    %v557 = vsel %vm382, %v555, -inf
    %558 = vmax.xlane.f32.xlu0 %v557
    %v559 = vpop.xlane.xlu0 %558
    %v560 = vsel %vm382, %v556, -inf
    %561 = vmax.xlane.f32.xlu0 %v560
    %v562 = vpop.xlane.xlu0 %561
    %v563 = vsub.f32 %v555, %v559
    %v564 = vsub.f32 %v556, %v562
    %v565 = vmul.f32 %v563, 1.442695
    %v566 = vpow.pop %v565
    %v567 = vmul.f32 %v564, 1.442695
    %v568 = vpow.pop %v567
    %v569 = vsel %vm382, %v566, 0.0
    %570 = vadd.xlane.f32.xlu0 %v569
    %v571 = vpop.xlane.xlu0 %570
    %v572 = vsel %vm382, %v568, 0.0
    %573 = vadd.xlane.f32.xlu0 %v572
    %v574 = vpop.xlane.xlu0 %573
    %v575 = vrcp.pop %v571
    %v576 = vmul.f32 %v571, %v575
    %v577 = vsub.f32 1.0, %v576
    %v578 = vmul.f32 %v575, %v577
    %v579 = vadd.f32 %v575, %v578
    %vm580 = vweird.f32 %v571
    %vm581 = vweird.f32 %v575
    %vm582 = vmor %vm580, %vm581
    %v583 = vsel %vm582, %v575, %v579
    %v584 = vand.u32 2147483647, %v571
    %vm585 = vcmp.eq.f32.partialorder %v584, 8.507059e+37
    %v586 = vand.u32 %v571, 2147483648
    %v587 = vor.u32 1.1754944e-38, %v586
    %v588 = vsel %vm585, %v587, %v583
    %v589 = vmul.f32 %v566, %v588
    %v590 = vrcp.pop %v574
    %v591 = vmul.f32 %v574, %v590
    %v592 = vsub.f32 1.0, %v591
    %v593 = vmul.f32 %v590, %v592
    %v594 = vadd.f32 %v590, %v593
    %vm595 = vweird.f32 %v574
    %vm596 = vweird.f32 %v590
    %vm597 = vmor %vm595, %vm596
    %v598 = vsel %vm597, %v590, %v594
    %v599 = vand.u32 2147483647, %v574
    %vm600 = vcmp.eq.f32.partialorder %v599, 8.507059e+37
    %v601 = vand.u32 %v574, 2147483648
    %v602 = vor.u32 1.1754944e-38, %v601
    %v603 = vsel %vm600, %v602, %v598
    %v604 = vmul.f32 %v568, %v603
    %605 = vst [vmem:[#allocation1] ss:$2 sm:$0xff] %v319
    %v606 = vld.sshfl [vmem:[#allocation1] sm:$0xff pattern:$0x75316420]
    %607 = vrot.lane.b32.xlu0 %v606, 56
    %v608 = vpop.permute.xlu0 %607
    %v610 = vsel %vm435, %v589, 0
    %v612 = vsel %vm439, %v608, 0
    %614 = vmatpush.msra.mxu0 0.0
    %615 = vmatpush.msra.mxu0 0.0
    %616 = vmatpush.msra.mxu0 0.0
    %617 = vmatpush.msra.mxu0 0.0
    %618 = vmatpush.msra.mxu0 0.0
    %619 = vmatpush.msra.mxu0 0.0
    %620 = vmatpush.msra.mxu0 0.0
    %621 = vmatpush.msra.mxu0 0.0
    %622 = vmatpush.msra.mxu0 0.0
    %623 = vmatpush.msra.mxu0 0.0
    %624 = vmatpush.msra.mxu0 0.0
    %625 = vmatpush.msra.mxu0 0.0
    %626 = vmatpush.msra.mxu0 0.0
    %627 = vmatpush.msra.mxu0 0.0
    %628 = vmatpush.msra.mxu0 0.0
    %629 = vmatpush.msra.mxu0 %v612
    %630 = vmatmul.f32.gmra.mxu0 %v610
    %v631 = vpop.f32.mrf.mxu0
    %v632 = vadd.f32 0.0, %v631
    %633 = vdwg.mxu0
    %634 = vst [vmem:[#allocation1] ss:$2 sm:$0xff] %v322
    %v635 = vld.sshfl [vmem:[#allocation1] sm:$0xff pattern:$0x75316420]
    %636 = vrot.lane.b32.xlu0 %v635, 56
    %v637 = vpop.permute.xlu0 %636
    %v639 = vsel %vm435, %v604, 0
    %v641 = vsel %vm439, %v637, 0
    %643 = vmatpush.msra.mxu0 0.0
    %644 = vmatpush.msra.mxu0 0.0
    %645 = vmatpush.msra.mxu0 0.0
    %646 = vmatpush.msra.mxu0 0.0
    %647 = vmatpush.msra.mxu0 0.0
    %648 = vmatpush.msra.mxu0 0.0
    %649 = vmatpush.msra.mxu0 0.0
    %650 = vmatpush.msra.mxu0 0.0
    %651 = vmatpush.msra.mxu0 0.0
    %652 = vmatpush.msra.mxu0 0.0
    %653 = vmatpush.msra.mxu0 0.0
    %654 = vmatpush.msra.mxu0 0.0
    %655 = vmatpush.msra.mxu0 0.0
    %656 = vmatpush.msra.mxu0 0.0
    %657 = vmatpush.msra.mxu0 0.0
    %658 = vmatpush.msra.mxu0 %v641
    %659 = vmatmul.f32.gmra.mxu0 %v639
    %v660 = vpop.f32.mrf.mxu0
    %v661 = vadd.f32 0.0, %v660
    %662 = vdwg.mxu0
    %663 = vst [vmem:[#allocation1] ss:$2 sm:$0xff] %v319
    %v664 = vld.sshfl [vmem:[#allocation1] sm:$0xff pattern:$0x75316420]
    %665 = vrot.lane.b32.xlu0 %v664, 112
    %v666 = vpop.permute.xlu0 %665
    %667 = vst [vmem:[#allocation1] ss:$2 sm:$0xff] %v319
    %v668 = vld.sshfl [vmem:[#allocation1] sm:$0xff pattern:$0x75316420]
    %669 = vrot.lane.b32.xlu0 %v668, 80
    %v670 = vpop.permute.xlu0 %669
    %v671 = vsel %vm327, %v666, 0
    %v673 = vsel %vm327, %v670, 0
    %675 = vmatpush.xpose.msra.mxu0 0.0
    %676 = vmatpush.xpose.msra.mxu0 0.0
    %677 = vmatpush.xpose.msra.mxu0 0.0
    %678 = vmatpush.xpose.msra.mxu0 0.0
    %679 = vmatpush.xpose.msra.mxu0 0.0
    %680 = vmatpush.xpose.msra.mxu0 0.0
    %681 = vmatpush.xpose.msra.mxu0 0.0
    %682 = vmatpush.xpose.msra.mxu0 0.0
    %683 = vmatpush.xpose.msra.mxu0 0.0
    %684 = vmatpush.xpose.msra.mxu0 0.0
    %685 = vmatpush.xpose.msra.mxu0 0.0
    %686 = vmatpush.xpose.msra.mxu0 0.0
    %687 = vmatpush.xpose.msra.mxu0 0.0
    %688 = vmatpush.xpose.msra.mxu0 0.0
    %689 = vmatpush.xpose.msra.mxu0 0.0
    %690 = vmatpush.xpose.msra.mxu0 %v673
    %691 = vmatmul.f32.gmra.mxu0 %v671
    %v692 = vpop.f32.mrf.mxu0
    %v693 = vadd.f32 0.0, %v692
    %694 = vdwg.mxu0
    %695 = vst [vmem:[#allocation1] ss:$2 sm:$0xff] %v322
    %v696 = vld.sshfl [vmem:[#allocation1] sm:$0xff pattern:$0x75316420]
    %697 = vrot.lane.b32.xlu0 %v696, 112
    %v698 = vpop.permute.xlu0 %697
    %699 = vst [vmem:[#allocation1] ss:$2 sm:$0xff] %v322
    %v700 = vld.sshfl [vmem:[#allocation1] sm:$0xff pattern:$0x75316420]
    %701 = vrot.lane.b32.xlu0 %v700, 80
    %v702 = vpop.permute.xlu0 %701
    %v703 = vsel %vm327, %v698, 0
    %v705 = vsel %vm327, %v702, 0
    %707 = vmatpush.xpose.msra.mxu0 0.0
    %708 = vmatpush.xpose.msra.mxu0 0.0
    %709 = vmatpush.xpose.msra.mxu0 0.0
    %710 = vmatpush.xpose.msra.mxu0 0.0
    %711 = vmatpush.xpose.msra.mxu0 0.0
    %712 = vmatpush.xpose.msra.mxu0 0.0
    %713 = vmatpush.xpose.msra.mxu0 0.0
    %714 = vmatpush.xpose.msra.mxu0 0.0
    %715 = vmatpush.xpose.msra.mxu0 0.0
    %716 = vmatpush.xpose.msra.mxu0 0.0
    %717 = vmatpush.xpose.msra.mxu0 0.0
    %718 = vmatpush.xpose.msra.mxu0 0.0
    %719 = vmatpush.xpose.msra.mxu0 0.0
    %720 = vmatpush.xpose.msra.mxu0 0.0
    %721 = vmatpush.xpose.msra.mxu0 0.0
    %722 = vmatpush.xpose.msra.mxu0 %v705
    %723 = vmatmul.f32.gmra.mxu0 %v703
    %v724 = vpop.f32.mrf.mxu0
    %v725 = vadd.f32 0.0, %v724
    %726 = vdwg.mxu0
    %v727 = vmul.f32 %v693, 0.35355338
    %v728 = vmul.f32 %v725, 0.35355338
    %v729 = vsel %vm382, %v727, -inf
    %730 = vmax.xlane.f32.xlu0 %v729
    %v731 = vpop.xlane.xlu0 %730
    %v732 = vsel %vm382, %v728, -inf
    %733 = vmax.xlane.f32.xlu0 %v732
    %v734 = vpop.xlane.xlu0 %733
    %v735 = vsub.f32 %v727, %v731
    %v736 = vsub.f32 %v728, %v734
    %v737 = vmul.f32 %v735, 1.442695
    %v738 = vpow.pop %v737
    %v739 = vmul.f32 %v736, 1.442695
    %v740 = vpow.pop %v739
    %v741 = vsel %vm382, %v738, 0.0
    %742 = vadd.xlane.f32.xlu0 %v741
    %v743 = vpop.xlane.xlu0 %742
    %v744 = vsel %vm382, %v740, 0.0
    %745 = vadd.xlane.f32.xlu0 %v744
    %v746 = vpop.xlane.xlu0 %745
    %v747 = vrcp.pop %v743
    %v748 = vmul.f32 %v743, %v747
    %v749 = vsub.f32 1.0, %v748
    %v750 = vmul.f32 %v747, %v749
    %v751 = vadd.f32 %v747, %v750
    %vm752 = vweird.f32 %v743
    %vm753 = vweird.f32 %v747
    %vm754 = vmor %vm752, %vm753
    %v755 = vsel %vm754, %v747, %v751
    %v756 = vand.u32 2147483647, %v743
    %vm757 = vcmp.eq.f32.partialorder %v756, 8.507059e+37
    %v758 = vand.u32 %v743, 2147483648
    %v759 = vor.u32 1.1754944e-38, %v758
    %v760 = vsel %vm757, %v759, %v755
    %v761 = vmul.f32 %v738, %v760
    %v762 = vrcp.pop %v746
    %v763 = vmul.f32 %v746, %v762
    %v764 = vsub.f32 1.0, %v763
    %v765 = vmul.f32 %v762, %v764
    %v766 = vadd.f32 %v762, %v765
    %vm767 = vweird.f32 %v746
    %vm768 = vweird.f32 %v762
    %vm769 = vmor %vm767, %vm768
    %v770 = vsel %vm769, %v762, %v766
    %v771 = vand.u32 2147483647, %v746
    %vm772 = vcmp.eq.f32.partialorder %v771, 8.507059e+37
    %v773 = vand.u32 %v746, 2147483648
    %v774 = vor.u32 1.1754944e-38, %v773
    %v775 = vsel %vm772, %v774, %v770
    %v776 = vmul.f32 %v740, %v775
    %777 = vst [vmem:[#allocation1] ss:$2 sm:$0xff] %v319
    %v778 = vld.sshfl [vmem:[#allocation1] sm:$0xff pattern:$0x75316420]
    %779 = vrot.lane.b32.xlu0 %v778, 48
    %v780 = vpop.permute.xlu0 %779
    %v782 = vsel %vm435, %v761, 0
    %v784 = vsel %vm439, %v780, 0
    %786 = vmatpush.msra.mxu0 0.0
    %787 = vmatpush.msra.mxu0 0.0
    %788 = vmatpush.msra.mxu0 0.0
    %789 = vmatpush.msra.mxu0 0.0
    %790 = vmatpush.msra.mxu0 0.0
    %791 = vmatpush.msra.mxu0 0.0
    %792 = vmatpush.msra.mxu0 0.0
    %793 = vmatpush.msra.mxu0 0.0
    %794 = vmatpush.msra.mxu0 0.0
    %795 = vmatpush.msra.mxu0 0.0
    %796 = vmatpush.msra.mxu0 0.0
    %797 = vmatpush.msra.mxu0 0.0
    %798 = vmatpush.msra.mxu0 0.0
    %799 = vmatpush.msra.mxu0 0.0
    %800 = vmatpush.msra.mxu0 0.0
    %801 = vmatpush.msra.mxu0 %v784
    %802 = vmatmul.f32.gmra.mxu0 %v782
    %v803 = vpop.f32.mrf.mxu0
    %v804 = vadd.f32 0.0, %v803
    %805 = vdwg.mxu0
    %806 = vst [vmem:[#allocation1] ss:$2 sm:$0xff] %v322
    %v807 = vld.sshfl [vmem:[#allocation1] sm:$0xff pattern:$0x75316420]
    %808 = vrot.lane.b32.xlu0 %v807, 48
    %v809 = vpop.permute.xlu0 %808
    %v811 = vsel %vm435, %v776, 0
    %v813 = vsel %vm439, %v809, 0
    %815 = vmatpush.msra.mxu0 0.0
    %816 = vmatpush.msra.mxu0 0.0
    %817 = vmatpush.msra.mxu0 0.0
    %818 = vmatpush.msra.mxu0 0.0
    %819 = vmatpush.msra.mxu0 0.0
    %820 = vmatpush.msra.mxu0 0.0
    %821 = vmatpush.msra.mxu0 0.0
    %822 = vmatpush.msra.mxu0 0.0
    %823 = vmatpush.msra.mxu0 0.0
    %824 = vmatpush.msra.mxu0 0.0
    %825 = vmatpush.msra.mxu0 0.0
    %826 = vmatpush.msra.mxu0 0.0
    %827 = vmatpush.msra.mxu0 0.0
    %828 = vmatpush.msra.mxu0 0.0
    %829 = vmatpush.msra.mxu0 0.0
    %830 = vmatpush.msra.mxu0 %v813
    %831 = vmatmul.f32.gmra.mxu0 %v811
    %v832 = vpop.f32.mrf.mxu0
    %v833 = vadd.f32 0.0, %v832
    %834 = vdwg.mxu0
    %835 = vst [vmem:[#allocation1] ss:$2 sm:$0xff] %v319
    %v836 = vld.sshfl [vmem:[#allocation1] sm:$0xff pattern:$0x75316420]
    %837 = vrot.lane.b32.xlu0 %v836, 104
    %v838 = vpop.permute.xlu0 %837
    %839 = vst [vmem:[#allocation1] ss:$2 sm:$0xff] %v319
    %v840 = vld.sshfl [vmem:[#allocation1] sm:$0xff pattern:$0x75316420]
    %841 = vrot.lane.b32.xlu0 %v840, 72
    %v842 = vpop.permute.xlu0 %841
    %v843 = vsel %vm327, %v838, 0
    %v845 = vsel %vm327, %v842, 0
    %847 = vmatpush.xpose.msra.mxu0 0.0
    %848 = vmatpush.xpose.msra.mxu0 0.0
    %849 = vmatpush.xpose.msra.mxu0 0.0
    %850 = vmatpush.xpose.msra.mxu0 0.0
    %851 = vmatpush.xpose.msra.mxu0 0.0
    %852 = vmatpush.xpose.msra.mxu0 0.0
    %853 = vmatpush.xpose.msra.mxu0 0.0
    %854 = vmatpush.xpose.msra.mxu0 0.0
    %855 = vmatpush.xpose.msra.mxu0 0.0
    %856 = vmatpush.xpose.msra.mxu0 0.0
    %857 = vmatpush.xpose.msra.mxu0 0.0
    %858 = vmatpush.xpose.msra.mxu0 0.0
    %859 = vmatpush.xpose.msra.mxu0 0.0
    %860 = vmatpush.xpose.msra.mxu0 0.0
    %861 = vmatpush.xpose.msra.mxu0 0.0
    %862 = vmatpush.xpose.msra.mxu0 %v845
    %863 = vmatmul.f32.gmra.mxu0 %v843
    %v864 = vpop.f32.mrf.mxu0
    %v865 = vadd.f32 0.0, %v864
    %866 = vdwg.mxu0
    %867 = vst [vmem:[#allocation1] ss:$2 sm:$0xff] %v322
    %v868 = vld.sshfl [vmem:[#allocation1] sm:$0xff pattern:$0x75316420]
    %869 = vrot.lane.b32.xlu0 %v868, 104
    %v870 = vpop.permute.xlu0 %869
    %871 = vst [vmem:[#allocation1] ss:$2 sm:$0xff] %v322
    %v872 = vld.sshfl [vmem:[#allocation1] sm:$0xff pattern:$0x75316420]
    %873 = vrot.lane.b32.xlu0 %v872, 72
    %v874 = vpop.permute.xlu0 %873
    %v875 = vsel %vm327, %v870, 0
    %v877 = vsel %vm327, %v874, 0
    %879 = vmatpush.xpose.msra.mxu0 0.0
    %880 = vmatpush.xpose.msra.mxu0 0.0
    %881 = vmatpush.xpose.msra.mxu0 0.0
    %882 = vmatpush.xpose.msra.mxu0 0.0
    %883 = vmatpush.xpose.msra.mxu0 0.0
    %884 = vmatpush.xpose.msra.mxu0 0.0
    %885 = vmatpush.xpose.msra.mxu0 0.0
    %886 = vmatpush.xpose.msra.mxu0 0.0
    %887 = vmatpush.xpose.msra.mxu0 0.0
    %888 = vmatpush.xpose.msra.mxu0 0.0
    %889 = vmatpush.xpose.msra.mxu0 0.0
    %890 = vmatpush.xpose.msra.mxu0 0.0
    %891 = vmatpush.xpose.msra.mxu0 0.0
    %892 = vmatpush.xpose.msra.mxu0 0.0
    %893 = vmatpush.xpose.msra.mxu0 0.0
    %894 = vmatpush.xpose.msra.mxu0 %v877
    %895 = vmatmul.f32.gmra.mxu0 %v875
    %v896 = vpop.f32.mrf.mxu0
    %v897 = vadd.f32 0.0, %v896
    %898 = vdwg.mxu0
    %v899 = vmul.f32 %v865, 0.35355338
    %v900 = vmul.f32 %v897, 0.35355338
    %v901 = vsel %vm382, %v899, -inf
    %902 = vmax.xlane.f32.xlu0 %v901
    %v903 = vpop.xlane.xlu0 %902
    %v904 = vsel %vm382, %v900, -inf
    %905 = vmax.xlane.f32.xlu0 %v904
    %v906 = vpop.xlane.xlu0 %905
    %v907 = vsub.f32 %v899, %v903
    %v908 = vsub.f32 %v900, %v906
    %v909 = vmul.f32 %v907, 1.442695
    %v910 = vpow.pop %v909
    %v911 = vmul.f32 %v908, 1.442695
    %v912 = vpow.pop %v911
    %v913 = vsel %vm382, %v910, 0.0
    %914 = vadd.xlane.f32.xlu0 %v913
    %v915 = vpop.xlane.xlu0 %914
    %v916 = vsel %vm382, %v912, 0.0
    %917 = vadd.xlane.f32.xlu0 %v916
    %v918 = vpop.xlane.xlu0 %917
    %v919 = vrcp.pop %v915
    %v920 = vmul.f32 %v915, %v919
    %v921 = vsub.f32 1.0, %v920
    %v922 = vmul.f32 %v919, %v921
    %v923 = vadd.f32 %v919, %v922
    %vm924 = vweird.f32 %v915
    %vm925 = vweird.f32 %v919
    %vm926 = vmor %vm924, %vm925
    %v927 = vsel %vm926, %v919, %v923
    %v928 = vand.u32 2147483647, %v915
    %vm929 = vcmp.eq.f32.partialorder %v928, 8.507059e+37
    %v930 = vand.u32 %v915, 2147483648
    %v931 = vor.u32 1.1754944e-38, %v930
    %v932 = vsel %vm929, %v931, %v927
    %v933 = vmul.f32 %v910, %v932
    %v934 = vrcp.pop %v918
    %v935 = vmul.f32 %v918, %v934
    %v936 = vsub.f32 1.0, %v935
    %v937 = vmul.f32 %v934, %v936
    %v938 = vadd.f32 %v934, %v937
    %vm939 = vweird.f32 %v918
    %vm940 = vweird.f32 %v934
    %vm941 = vmor %vm939, %vm940
    %v942 = vsel %vm941, %v934, %v938
    %v943 = vand.u32 2147483647, %v918
    %vm944 = vcmp.eq.f32.partialorder %v943, 8.507059e+37
    %v945 = vand.u32 %v918, 2147483648
    %v946 = vor.u32 1.1754944e-38, %v945
    %v947 = vsel %vm944, %v946, %v942
    %v948 = vmul.f32 %v912, %v947
    %949 = vst [vmem:[#allocation1] ss:$2 sm:$0xff] %v319
    %v950 = vld.sshfl [vmem:[#allocation1] sm:$0xff pattern:$0x75316420]
    %951 = vrot.lane.b32.xlu0 %v950, 40
    %v952 = vpop.permute.xlu0 %951
    %v954 = vsel %vm435, %v933, 0
    %v956 = vsel %vm439, %v952, 0
    %958 = vmatpush.msra.mxu0 0.0
    %959 = vmatpush.msra.mxu0 0.0
    %960 = vmatpush.msra.mxu0 0.0
    %961 = vmatpush.msra.mxu0 0.0
    %962 = vmatpush.msra.mxu0 0.0
    %963 = vmatpush.msra.mxu0 0.0
    %964 = vmatpush.msra.mxu0 0.0
    %965 = vmatpush.msra.mxu0 0.0
    %966 = vmatpush.msra.mxu0 0.0
    %967 = vmatpush.msra.mxu0 0.0
    %968 = vmatpush.msra.mxu0 0.0
    %969 = vmatpush.msra.mxu0 0.0
    %970 = vmatpush.msra.mxu0 0.0
    %971 = vmatpush.msra.mxu0 0.0
    %972 = vmatpush.msra.mxu0 0.0
    %973 = vmatpush.msra.mxu0 %v956
    %974 = vmatmul.f32.gmra.mxu0 %v954
    %v975 = vpop.f32.mrf.mxu0
    %v976 = vadd.f32 0.0, %v975
    %977 = vdwg.mxu0
    %978 = vst [vmem:[#allocation1] ss:$2 sm:$0xff] %v322
    %v979 = vld.sshfl [vmem:[#allocation1] sm:$0xff pattern:$0x75316420]
    %980 = vrot.lane.b32.xlu0 %v979, 40
    %v981 = vpop.permute.xlu0 %980
    %v983 = vsel %vm435, %v948, 0
    %v985 = vsel %vm439, %v981, 0
    %987 = vmatpush.msra.mxu0 0.0
    %988 = vmatpush.msra.mxu0 0.0
    %989 = vmatpush.msra.mxu0 0.0
    %990 = vmatpush.msra.mxu0 0.0
    %991 = vmatpush.msra.mxu0 0.0
    %992 = vmatpush.msra.mxu0 0.0
    %993 = vmatpush.msra.mxu0 0.0
    %994 = vmatpush.msra.mxu0 0.0
    %995 = vmatpush.msra.mxu0 0.0
    %996 = vmatpush.msra.mxu0 0.0
    %997 = vmatpush.msra.mxu0 0.0
    %998 = vmatpush.msra.mxu0 0.0
    %999 = vmatpush.msra.mxu0 0.0
    %1000 = vmatpush.msra.mxu0 0.0
    %1001 = vmatpush.msra.mxu0 0.0
    %1002 = vmatpush.msra.mxu0 %v985
    %1003 = vmatmul.f32.gmra.mxu0 %v983
    %v1004 = vpop.f32.mrf.mxu0
    %v1005 = vadd.f32 0.0, %v1004
    %1006 = vdwg.mxu0
    %1009 = vst [vmem:[#allocation1] ss:$2 sm:$0xff] %v460
    %s1010 = scalar_lea.vmem [#allocation1], 1
    %1011 = vst [vmem:[%s1010] ss:$2 sm:$0xff] %v489
    %v1012 = vld.sshfl [vmem:[#allocation1] sm:$0xff pattern:$0x75316420]
    %1016 = vst [vmem:[#allocation1] ss:$2 sm:$0xff] %v632
    %s1017 = scalar_lea.vmem [#allocation1], 1
    %1018 = vst [vmem:[%s1017] ss:$2 sm:$0xff] %v661
    %v1019 = vld.sshfl [vmem:[#allocation1] sm:$0xff pattern:$0x75316420]
    %1020 = vrot.lane.b32.xlu0 %v1019, 8
    %v1021 = vpop.permute.xlu0 %1020
    %1025 = vst [vmem:[#allocation1] ss:$2 sm:$0xff] %v804
    %s1026 = scalar_lea.vmem [#allocation1], 1
    %1027 = vst [vmem:[%s1026] ss:$2 sm:$0xff] %v833
    %v1028 = vld.sshfl [vmem:[#allocation1] sm:$0xff pattern:$0x75316420]
    %1029 = vrot.lane.b32.xlu0 %v1028, 16
    %v1030 = vpop.permute.xlu0 %1029
    %1034 = vst [vmem:[#allocation1] ss:$2 sm:$0xff] %v976
    %s1035 = scalar_lea.vmem [#allocation1], 1
    %1036 = vst [vmem:[%s1035] ss:$2 sm:$0xff] %v1005
    %v1037 = vld.sshfl [vmem:[#allocation1] sm:$0xff pattern:$0x75316420]
    %1038 = vrot.lane.b32.xlu0 %v1037, 24
    %v1039 = vpop.permute.xlu0 %1038
    %v1041 = vsel %vm327, %v1012, %v1021
    %v1042 = vsel %vm129, %v1041, %v1030
    %vm1043 = vcmask 195584
    %v1044 = vsel %vm1043, %v1042, %v1039
    %1049 = vrot.lane.b32.xlu0 %v177, 32
    %v1050 = vpop.permute.xlu0 %1049
    %1051 = vrot.lane.b32.xlu0 %v179, 32
    %v1052 = vpop.permute.xlu0 %1051
    %1053 = vrot.lane.b32.xlu0 %v181, 32
    %v1054 = vpop.permute.xlu0 %1053
    %1055 = vrot.lane.b32.xlu0 %v183, 32
    %v1056 = vpop.permute.xlu0 %1055
    %v1062 = vsel %vm208, %v1044, 0
    %1064 = vmatpush.msra.mxu0 0.0
    %1065 = vmatpush.msra.mxu0 0.0
    %1066 = vmatpush.msra.mxu0 0.0
    %1067 = vmatpush.msra.mxu0 0.0
    %1068 = vmatpush.msra.mxu0 0.0
    %1069 = vmatpush.msra.mxu0 0.0
    %1070 = vmatpush.msra.mxu0 0.0
    %1071 = vmatpush.msra.mxu0 0.0
    %1072 = vmatpush.msra.mxu0 0.0
    %1073 = vmatpush.msra.mxu0 0.0
    %1074 = vmatpush.msra.mxu0 0.0
    %1075 = vmatpush.msra.mxu0 0.0
    %1076 = vmatpush.msra.mxu0 %v1056
    %1077 = vmatpush.msra.mxu0 %v1054
    %1078 = vmatpush.msra.mxu0 %v1052
    %1079 = vmatpush.msra.mxu0 %v1050
    %1080 = vmatmul.f32.gmra.mxu0 %v1062
    %v1081 = vpop.f32.mrf.mxu0
    %v1082 = vadd.f32 0.0, %v1081
    %1083 = vdwg.mxu0
    %v1085 = vrot.slane %v1082, 4
    %v1087 = vadd.f32 %v151, %v1082
    %v1088 = vadd.f32 %v174, %v1085
    %1089 = vrot.lane.b32.xlu0 %v176, 96
    %v1090 = vpop.permute.xlu0 %1089
    %v1091 = vrot.slane %v1090, 1
    %v1092 = vperm.slane %v1091, 0
    %v1094 = vrot.slane %v1092, 4
    %v1096 = vadd.f32 %v1087, %v1092
    %v1097 = vadd.f32 %v1088, %v1094
    %1100 = vst [vmem:[#allocation1] ss:$2 sm:$0xff] %v1096
    %s1101 = scalar_lea.vmem [#allocation1], 1
    %1102 = vst [vmem:[%s1101] ss:$2 sm:$0xff] %v1097
    %v1103 = vld.sshfl [vmem:[#allocation1] sm:$0xff pattern:$0x75316420]
    %v1105 = vsel %vm208, %v1103, 0.0
    %1106 = vadd.xlane.f32.xlu0 %v1105
    %v1107 = vpop.xlane.xlu0 %1106
    %v1108 = vmul.f32 %v1107, %v218
    %v1111 = vunpack.c.l.s4 839922192
    %v1112 = vunpack.c.0.s8 %v1111
    %v1113 = vperm.slane %v1108, %v1112
    %v1115 = vunpack.c.l.s4 1985246804
    %v1116 = vunpack.c.0.s8 %v1115
    %v1117 = vperm.slane %v1108, %v1116
    %v1120 = vsub.f32 %v1096, %v1113
    %v1121 = vsub.f32 %v1097, %v1117
    %v1122 = vmul.f32 %v1120, %v1120
    %v1123 = vmul.f32 %v1121, %v1121
    %1126 = vst [vmem:[#allocation1] ss:$2 sm:$0xff] %v1122
    %s1127 = scalar_lea.vmem [#allocation1], 1
    %1128 = vst [vmem:[%s1127] ss:$2 sm:$0xff] %v1123
    %v1129 = vld.sshfl [vmem:[#allocation1] sm:$0xff pattern:$0x75316420]
    %v1131 = vsel %vm208, %v1129, 0.0
    %1132 = vadd.xlane.f32.xlu0 %v1131
    %v1133 = vpop.xlane.xlu0 %1132
    %v1134 = vmul.f32 %v1133, %v218
    %v1135 = vadd.f32 %v1134, 1e-05
    %v1136 = vrsqrt.pop %v1135
    %v1137 = vmul.f32 %v1136, %v1135
    %v1138 = vmul.f32 %v1137, %v1136
    %v1139 = vmul.f32 0.5, %v1138
    %v1140 = vsub.f32 1.5, %v1139
    %v1141 = vmul.f32 %v1136, %v1140
    %vm1142 = vweird.f32 %v1135
    %vm1143 = vweird.f32 %v1136
    %vm1144 = vmor %vm1142, %vm1143
    %v1145 = vsel %vm1144, %v1136, %v1141
    %v1148 = vunpack.c.l.s4 839922192
    %v1149 = vunpack.c.0.s8 %v1148
    %v1150 = vperm.slane %v1145, %v1149
    %v1152 = vunpack.c.l.s4 1985246804
    %v1153 = vunpack.c.0.s8 %v1152
    %v1154 = vperm.slane %v1145, %v1153
    %v1157 = vmul.f32 %v1120, %v1150
    %v1158 = vmul.f32 %v1121, %v1154
    %1159 = vrot.lane.b32.xlu0 %v176, 64
    %v1160 = vpop.permute.xlu0 %1159
    %v1161 = vrot.slane %v1160, 1
    %v1162 = vperm.slane %v1161, 0
    %v1164 = vrot.slane %v1162, 4
    %v1166 = vmul.f32 %v1157, %v1162
    %v1167 = vmul.f32 %v1158, %v1164
    %1168 = vrot.lane.b32.xlu0 %v176, 32
    %v1169 = vpop.permute.xlu0 %1168
    %v1170 = vrot.slane %v1169, 1
    %v1171 = vperm.slane %v1170, 0
    %v1173 = vrot.slane %v1171, 4
    %v1175 = vadd.f32 %v1166, %v1171
    %v1176 = vadd.f32 %v1167, %v1173
    %v1177 = vrot.slane %v176, 2
    %v1178 = vperm.slane %v1177, 0
    %1182 = vst [vmem:[#allocation1] ss:$2 sm:$0xff] %v1175
    %s1183 = scalar_lea.vmem [#allocation1], 1
    %1184 = vst [vmem:[%s1183] ss:$2 sm:$0xff] %v1176
    %v1185 = vld.sshfl [vmem:[#allocation1] sm:$0xff pattern:$0x75316420]
    %v1186 = vsel %vm208, %v1185, 0
    %1188 = vmatpush.msra.mxu0 0.0
    %1189 = vmatpush.msra.mxu0 0.0
    %1190 = vmatpush.msra.mxu0 0.0
    %1191 = vmatpush.msra.mxu0 0.0
    %1192 = vmatpush.msra.mxu0 0.0
    %1193 = vmatpush.msra.mxu0 0.0
    %1194 = vmatpush.msra.mxu0 0.0
    %1195 = vmatpush.msra.mxu0 0.0
    %1196 = vmatpush.msra.mxu0 0.0
    %1197 = vmatpush.msra.mxu0 0.0
    %1198 = vmatpush.msra.mxu0 0.0
    %1199 = vmatpush.msra.mxu0 0.0
    %1200 = vmatpush.msra.mxu0 %v184
    %1201 = vmatpush.msra.mxu0 %v182
    %1202 = vmatpush.msra.mxu0 %v180
    %1203 = vmatpush.msra.mxu0 %v178
    %1204 = vmatmul.f32.gmra.mxu0 %v1186
    %v1205 = vpop.f32.mrf.mxu0
    %v1206 = vadd.f32 %v1178, %v1205
    %1207 = vdwg.mxu0
    %v1208 = vmul.f32 %v1206, 0.5
    %v1209 = vmul.f32 %v1206, 0.044715
    %v1210 = vmul.f32 %v1209, %v1206
    %v1211 = vmul.f32 %v1210, %v1206
    %v1212 = vadd.f32 %v1206, %v1211
    %v1213 = vmul.f32 %v1212, 0.7978846
    %v1214 = vtanh.pop %v1213
    %v1215 = vadd.f32 %v1214, 1.0
    %v1216 = vmul.f32 %v1208, %v1215
    %v1217 = vrot.slane %v176, 3
    %v1218 = vperm.slane %v1217, 0
    %1220 = vmatpush.msra.mxu0 %v200
    %1221 = vmatpush.msra.mxu0 %v199
    %1222 = vmatpush.msra.mxu0 %v198
    %1223 = vmatpush.msra.mxu0 %v197
    %1224 = vmatpush.msra.mxu0 %v196
    %1225 = vmatpush.msra.mxu0 %v195
    %1226 = vmatpush.msra.mxu0 %v194
    %1227 = vmatpush.msra.mxu0 %v193
    %1228 = vmatpush.msra.mxu0 %v192
    %1229 = vmatpush.msra.mxu0 %v191
    %1230 = vmatpush.msra.mxu0 %v190
    %1231 = vmatpush.msra.mxu0 %v189
    %1232 = vmatpush.msra.mxu0 %v188
    %1233 = vmatpush.msra.mxu0 %v187
    %1234 = vmatpush.msra.mxu0 %v186
    %1235 = vmatpush.msra.mxu0 %v185
    %1236 = vmatmul.f32.gmra.mxu0 %v1216
    %v1237 = vpop.f32.mrf.mxu0
    %v1238 = vadd.f32 %v1218, %v1237
    %1239 = vdwg.mxu0
    %v1241 = vrot.slane %v1238, 4
    %v1243 = vadd.f32 %v1096, %v1238
    %v1244 = vadd.f32 %v1097, %v1241
    %s1245 = scalar_lea.vmem %s9, 1
    %v1246 = vld [vmem:[%s1245] ss:$2 sm:$0xf]
    %s1247 = scalar_lea.vmem %s7, 64
    %v1248 = vld [vmem:[%s1247] sm:$0xff]
    %v1249 = vld [vmem:[%s1247 + $0x8] sm:$0xff]
    %v1250 = vld [vmem:[%s1247 + $0x10] sm:$0xff]
    %v1251 = vld [vmem:[%s1247 + $0x18] sm:$0xff]
    %v1252 = vld [vmem:[%s1247 + $0x20] sm:$0xff]
    %v1253 = vld [vmem:[%s1247 + $0x28] sm:$0xff]
    %v1254 = vld [vmem:[%s1247 + $0x30] sm:$0xff]
    %v1255 = vld [vmem:[%s1247 + $0x38] sm:$0xff]
    %s1256 = scalar_lea.vmem %s8, 128
    %v1257 = vld [vmem:[%s1256] sm:$0xff]
    %v1258 = vld [vmem:[%s1256 + $0x8] sm:$0xff]
    %v1259 = vld [vmem:[%s1256 + $0x10] sm:$0xff]
    %v1260 = vld [vmem:[%s1256 + $0x18] sm:$0xff]
    %v1261 = vld [vmem:[%s1256 + $0x20] sm:$0xff]
    %v1262 = vld [vmem:[%s1256 + $0x28] sm:$0xff]
    %v1263 = vld [vmem:[%s1256 + $0x30] sm:$0xff]
    %v1264 = vld [vmem:[%s1256 + $0x38] sm:$0xff]
    %v1265 = vld [vmem:[%s1256 + $0x40] sm:$0xff]
    %v1266 = vld [vmem:[%s1256 + $0x48] sm:$0xff]
    %v1267 = vld [vmem:[%s1256 + $0x50] sm:$0xff]
    %v1268 = vld [vmem:[%s1256 + $0x58] sm:$0xff]
    %v1269 = vld [vmem:[%s1256 + $0x60] sm:$0xff]
    %v1270 = vld [vmem:[%s1256 + $0x68] sm:$0xff]
    %v1271 = vld [vmem:[%s1256 + $0x70] sm:$0xff]
    %v1272 = vld [vmem:[%s1256 + $0x78] sm:$0xff]
    %1275 = vst [vmem:[#allocation1] ss:$2 sm:$0xff] %v1243
    %s1276 = scalar_lea.vmem [#allocation1], 1
    %1277 = vst [vmem:[%s1276] ss:$2 sm:$0xff] %v1244
    %v1278 = vld.sshfl [vmem:[#allocation1] sm:$0xff pattern:$0x75316420]
    %v1280 = vsel %vm208, %v1278, 0.0
    %1281 = vadd.xlane.f32.xlu0 %v1280
    %v1282 = vpop.xlane.xlu0 %1281
    %v1283 = vmul.f32 %v1282, %v218
    %v1286 = vunpack.c.l.s4 839922192
    %v1287 = vunpack.c.0.s8 %v1286
    %v1288 = vperm.slane %v1283, %v1287
    %v1290 = vunpack.c.l.s4 1985246804
    %v1291 = vunpack.c.0.s8 %v1290
    %v1292 = vperm.slane %v1283, %v1291
    %v1295 = vsub.f32 %v1243, %v1288
    %v1296 = vsub.f32 %v1244, %v1292
    %v1297 = vmul.f32 %v1295, %v1295
    %v1298 = vmul.f32 %v1296, %v1296
    %1301 = vst [vmem:[#allocation1] ss:$2 sm:$0xff] %v1297
    %s1302 = scalar_lea.vmem [#allocation1], 1
    %1303 = vst [vmem:[%s1302] ss:$2 sm:$0xff] %v1298
    %v1304 = vld.sshfl [vmem:[#allocation1] sm:$0xff pattern:$0x75316420]
    %v1306 = vsel %vm208, %v1304, 0.0
    %1307 = vadd.xlane.f32.xlu0 %v1306
    %v1308 = vpop.xlane.xlu0 %1307
    %v1309 = vmul.f32 %v1308, %v218
    %v1310 = vadd.f32 %v1309, 1e-05
    %v1311 = vrsqrt.pop %v1310
    %v1312 = vmul.f32 %v1311, %v1310
    %v1313 = vmul.f32 %v1312, %v1311
    %v1314 = vmul.f32 0.5, %v1313
    %v1315 = vsub.f32 1.5, %v1314
    %v1316 = vmul.f32 %v1311, %v1315
    %vm1317 = vweird.f32 %v1310
    %vm1318 = vweird.f32 %v1311
    %vm1319 = vmor %vm1317, %vm1318
    %v1320 = vsel %vm1319, %v1311, %v1316
    %v1323 = vunpack.c.l.s4 839922192
    %v1324 = vunpack.c.0.s8 %v1323
    %v1325 = vperm.slane %v1320, %v1324
    %v1327 = vunpack.c.l.s4 1985246804
    %v1328 = vunpack.c.0.s8 %v1327
    %v1329 = vperm.slane %v1320, %v1328
    %v1332 = vmul.f32 %v1295, %v1325
    %v1333 = vmul.f32 %v1296, %v1329
    %v1335 = vperm.slane %v1246, 0
    %v1337 = vrot.slane %v1335, 4
    %v1339 = vmul.f32 %v1332, %v1335
    %v1340 = vmul.f32 %v1333, %v1337
    %1341 = vrot.lane.b32.xlu0 %v1335, 96
    %v1342 = vpop.permute.xlu0 %1341
    %1343 = vrot.lane.b32.xlu0 %v1337, 96
    %v1344 = vpop.permute.xlu0 %1343
    %v1347 = vadd.f32 %v1339, %v1342
    %v1348 = vadd.f32 %v1340, %v1344
    %v1349 = vperm.slane %v1246, 1
    %1352 = vst [vmem:[#allocation1] ss:$2 sm:$0xff] %v1347
    %s1353 = scalar_lea.vmem [#allocation1], 1
    %1354 = vst [vmem:[%s1353] ss:$2 sm:$0xff] %v1348
    %v1355 = vld.sshfl [vmem:[#allocation1] sm:$0xff pattern:$0x75316420]
    %1356 = vrot.lane.b32.xlu0 %v1335, 64
    %v1357 = vpop.permute.xlu0 %1356
    %1358 = vrot.lane.b32.xlu0 %v1349, 64
    %v1359 = vpop.permute.xlu0 %1358
    %v1360 = vsel %vm296, %v1357, %v1359
    %v1362 = vsel %vm208, %v1355, 0
    %1364 = vmatpush.msra.mxu0 0.0
    %1365 = vmatpush.msra.mxu0 0.0
    %1366 = vmatpush.msra.mxu0 0.0
    %1367 = vmatpush.msra.mxu0 0.0
    %1368 = vmatpush.msra.mxu0 0.0
    %1369 = vmatpush.msra.mxu0 0.0
    %1370 = vmatpush.msra.mxu0 0.0
    %1371 = vmatpush.msra.mxu0 0.0
    %1372 = vmatpush.msra.mxu0 0.0
    %1373 = vmatpush.msra.mxu0 0.0
    %1374 = vmatpush.msra.mxu0 0.0
    %1375 = vmatpush.msra.mxu0 0.0
    %1376 = vmatpush.msra.mxu0 %v1254
    %1377 = vmatpush.msra.mxu0 %v1252
    %1378 = vmatpush.msra.mxu0 %v1250
    %1379 = vmatpush.msra.mxu0 %v1248
    %1380 = vmatmul.f32.gmra.mxu0 %v1362
    %v1381 = vpop.f32.mrf.mxu0
    %v1382 = vadd.f32 %v1360, %v1381
    %1383 = vdwg.mxu0
    %v1385 = vrot.slane %v1382, 4
    %1386 = vst [vmem:[#allocation1] ss:$2 sm:$0xff] %v1382
    %v1387 = vld.sshfl [vmem:[#allocation1] sm:$0xff pattern:$0x75316420]
    %1388 = vrot.lane.b32.xlu0 %v1387, 96
    %v1389 = vpop.permute.xlu0 %1388
    %v1390 = vsel %vm327, %v1382, 0
    %v1392 = vsel %vm327, %v1389, 0
    %1394 = vmatpush.xpose.msra.mxu0 0.0
    %1395 = vmatpush.xpose.msra.mxu0 0.0
    %1396 = vmatpush.xpose.msra.mxu0 0.0
    %1397 = vmatpush.xpose.msra.mxu0 0.0
    %1398 = vmatpush.xpose.msra.mxu0 0.0
    %1399 = vmatpush.xpose.msra.mxu0 0.0
    %1400 = vmatpush.xpose.msra.mxu0 0.0
    %1401 = vmatpush.xpose.msra.mxu0 0.0
    %1402 = vmatpush.xpose.msra.mxu0 0.0
    %1403 = vmatpush.xpose.msra.mxu0 0.0
    %1404 = vmatpush.xpose.msra.mxu0 0.0
    %1405 = vmatpush.xpose.msra.mxu0 0.0
    %1406 = vmatpush.xpose.msra.mxu0 0.0
    %1407 = vmatpush.xpose.msra.mxu0 0.0
    %1408 = vmatpush.xpose.msra.mxu0 0.0
    %1409 = vmatpush.xpose.msra.mxu0 %v1392
    %1410 = vmatmul.f32.gmra.mxu0 %v1390
    %v1411 = vpop.f32.mrf.mxu0
    %v1412 = vadd.f32 0.0, %v1411
    %1413 = vdwg.mxu0
    %1414 = vst [vmem:[#allocation1] ss:$2 sm:$0xff] %v1385
    %v1415 = vld.sshfl [vmem:[#allocation1] sm:$0xff pattern:$0x75316420]
    %1416 = vrot.lane.b32.xlu0 %v1415, 96
    %v1417 = vpop.permute.xlu0 %1416
    %v1418 = vsel %vm327, %v1385, 0
    %v1420 = vsel %vm327, %v1417, 0
    %1422 = vmatpush.xpose.msra.mxu0 0.0
    %1423 = vmatpush.xpose.msra.mxu0 0.0
    %1424 = vmatpush.xpose.msra.mxu0 0.0
    %1425 = vmatpush.xpose.msra.mxu0 0.0
    %1426 = vmatpush.xpose.msra.mxu0 0.0
    %1427 = vmatpush.xpose.msra.mxu0 0.0
    %1428 = vmatpush.xpose.msra.mxu0 0.0
    %1429 = vmatpush.xpose.msra.mxu0 0.0
    %1430 = vmatpush.xpose.msra.mxu0 0.0
    %1431 = vmatpush.xpose.msra.mxu0 0.0
    %1432 = vmatpush.xpose.msra.mxu0 0.0
    %1433 = vmatpush.xpose.msra.mxu0 0.0
    %1434 = vmatpush.xpose.msra.mxu0 0.0
    %1435 = vmatpush.xpose.msra.mxu0 0.0
    %1436 = vmatpush.xpose.msra.mxu0 0.0
    %1437 = vmatpush.xpose.msra.mxu0 %v1420
    %1438 = vmatmul.f32.gmra.mxu0 %v1418
    %v1439 = vpop.f32.mrf.mxu0
    %v1440 = vadd.f32 0.0, %v1439
    %1441 = vdwg.mxu0
    %v1442 = vmul.f32 %v1412, 0.35355338
    %v1443 = vmul.f32 %v1440, 0.35355338
    %v1444 = vsel %vm382, %v1442, -inf
    %1445 = vmax.xlane.f32.xlu0 %v1444
    %v1446 = vpop.xlane.xlu0 %1445
    %v1447 = vsel %vm382, %v1443, -inf
    %1448 = vmax.xlane.f32.xlu0 %v1447
    %v1449 = vpop.xlane.xlu0 %1448
    %v1450 = vsub.f32 %v1442, %v1446
    %v1451 = vsub.f32 %v1443, %v1449
    %v1452 = vmul.f32 %v1450, 1.442695
    %v1453 = vpow.pop %v1452
    %v1454 = vmul.f32 %v1451, 1.442695
    %v1455 = vpow.pop %v1454
    %v1456 = vsel %vm382, %v1453, 0.0
    %1457 = vadd.xlane.f32.xlu0 %v1456
    %v1458 = vpop.xlane.xlu0 %1457
    %v1459 = vsel %vm382, %v1455, 0.0
    %1460 = vadd.xlane.f32.xlu0 %v1459
    %v1461 = vpop.xlane.xlu0 %1460
    %v1462 = vrcp.pop %v1458
    %v1463 = vmul.f32 %v1458, %v1462
    %v1464 = vsub.f32 1.0, %v1463
    %v1465 = vmul.f32 %v1462, %v1464
    %v1466 = vadd.f32 %v1462, %v1465
    %vm1467 = vweird.f32 %v1458
    %vm1468 = vweird.f32 %v1462
    %vm1469 = vmor %vm1467, %vm1468
    %v1470 = vsel %vm1469, %v1462, %v1466
    %v1471 = vand.u32 2147483647, %v1458
    %vm1472 = vcmp.eq.f32.partialorder %v1471, 8.507059e+37
    %v1473 = vand.u32 %v1458, 2147483648
    %v1474 = vor.u32 1.1754944e-38, %v1473
    %v1475 = vsel %vm1472, %v1474, %v1470
    %v1476 = vmul.f32 %v1453, %v1475
    %v1477 = vrcp.pop %v1461
    %v1478 = vmul.f32 %v1461, %v1477
    %v1479 = vsub.f32 1.0, %v1478
    %v1480 = vmul.f32 %v1477, %v1479
    %v1481 = vadd.f32 %v1477, %v1480
    %vm1482 = vweird.f32 %v1461
    %vm1483 = vweird.f32 %v1477
    %vm1484 = vmor %vm1482, %vm1483
    %v1485 = vsel %vm1484, %v1477, %v1481
    %v1486 = vand.u32 2147483647, %v1461
    %vm1487 = vcmp.eq.f32.partialorder %v1486, 8.507059e+37
    %v1488 = vand.u32 %v1461, 2147483648
    %v1489 = vor.u32 1.1754944e-38, %v1488
    %v1490 = vsel %vm1487, %v1489, %v1485
    %v1491 = vmul.f32 %v1455, %v1490
    %1492 = vst [vmem:[#allocation1] ss:$2 sm:$0xff] %v1382
    %v1493 = vld.sshfl [vmem:[#allocation1] sm:$0xff pattern:$0x75316420]
    %1494 = vrot.lane.b32.xlu0 %v1493, 64
    %v1495 = vpop.permute.xlu0 %1494
    %v1497 = vsel %vm435, %v1476, 0
    %v1499 = vsel %vm439, %v1495, 0
    %1501 = vmatpush.msra.mxu0 0.0
    %1502 = vmatpush.msra.mxu0 0.0
    %1503 = vmatpush.msra.mxu0 0.0
    %1504 = vmatpush.msra.mxu0 0.0
    %1505 = vmatpush.msra.mxu0 0.0
    %1506 = vmatpush.msra.mxu0 0.0
    %1507 = vmatpush.msra.mxu0 0.0
    %1508 = vmatpush.msra.mxu0 0.0
    %1509 = vmatpush.msra.mxu0 0.0
    %1510 = vmatpush.msra.mxu0 0.0
    %1511 = vmatpush.msra.mxu0 0.0
    %1512 = vmatpush.msra.mxu0 0.0
    %1513 = vmatpush.msra.mxu0 0.0
    %1514 = vmatpush.msra.mxu0 0.0
    %1515 = vmatpush.msra.mxu0 0.0
    %1516 = vmatpush.msra.mxu0 %v1499
    %1517 = vmatmul.f32.gmra.mxu0 %v1497
    %v1518 = vpop.f32.mrf.mxu0
    %v1519 = vadd.f32 0.0, %v1518
    %1520 = vdwg.mxu0
    %1521 = vst [vmem:[#allocation1] ss:$2 sm:$0xff] %v1385
    %v1522 = vld.sshfl [vmem:[#allocation1] sm:$0xff pattern:$0x75316420]
    %1523 = vrot.lane.b32.xlu0 %v1522, 64
    %v1524 = vpop.permute.xlu0 %1523
    %v1526 = vsel %vm435, %v1491, 0
    %v1528 = vsel %vm439, %v1524, 0
    %1530 = vmatpush.msra.mxu0 0.0
    %1531 = vmatpush.msra.mxu0 0.0
    %1532 = vmatpush.msra.mxu0 0.0
    %1533 = vmatpush.msra.mxu0 0.0
    %1534 = vmatpush.msra.mxu0 0.0
    %1535 = vmatpush.msra.mxu0 0.0
    %1536 = vmatpush.msra.mxu0 0.0
    %1537 = vmatpush.msra.mxu0 0.0
    %1538 = vmatpush.msra.mxu0 0.0
    %1539 = vmatpush.msra.mxu0 0.0
    %1540 = vmatpush.msra.mxu0 0.0
    %1541 = vmatpush.msra.mxu0 0.0
    %1542 = vmatpush.msra.mxu0 0.0
    %1543 = vmatpush.msra.mxu0 0.0
    %1544 = vmatpush.msra.mxu0 0.0
    %1545 = vmatpush.msra.mxu0 %v1528
    %1546 = vmatmul.f32.gmra.mxu0 %v1526
    %v1547 = vpop.f32.mrf.mxu0
    %v1548 = vadd.f32 0.0, %v1547
    %1549 = vdwg.mxu0
    %1550 = vst [vmem:[#allocation1] ss:$2 sm:$0xff] %v1382
    %v1551 = vld.sshfl [vmem:[#allocation1] sm:$0xff pattern:$0x75316420]
    %1552 = vrot.lane.b32.xlu0 %v1551, 120
    %v1553 = vpop.permute.xlu0 %1552
    %1554 = vst [vmem:[#allocation1] ss:$2 sm:$0xff] %v1382
    %v1555 = vld.sshfl [vmem:[#allocation1] sm:$0xff pattern:$0x75316420]
    %1556 = vrot.lane.b32.xlu0 %v1555, 88
    %v1557 = vpop.permute.xlu0 %1556
    %v1558 = vsel %vm327, %v1553, 0
    %v1560 = vsel %vm327, %v1557, 0
    %1562 = vmatpush.xpose.msra.mxu0 0.0
    %1563 = vmatpush.xpose.msra.mxu0 0.0
    %1564 = vmatpush.xpose.msra.mxu0 0.0
    %1565 = vmatpush.xpose.msra.mxu0 0.0
    %1566 = vmatpush.xpose.msra.mxu0 0.0
    %1567 = vmatpush.xpose.msra.mxu0 0.0
    %1568 = vmatpush.xpose.msra.mxu0 0.0
    %1569 = vmatpush.xpose.msra.mxu0 0.0
    %1570 = vmatpush.xpose.msra.mxu0 0.0
    %1571 = vmatpush.xpose.msra.mxu0 0.0
    %1572 = vmatpush.xpose.msra.mxu0 0.0
    %1573 = vmatpush.xpose.msra.mxu0 0.0
    %1574 = vmatpush.xpose.msra.mxu0 0.0
    %1575 = vmatpush.xpose.msra.mxu0 0.0
    %1576 = vmatpush.xpose.msra.mxu0 0.0
    %1577 = vmatpush.xpose.msra.mxu0 %v1560
    %1578 = vmatmul.f32.gmra.mxu0 %v1558
    %v1579 = vpop.f32.mrf.mxu0
    %v1580 = vadd.f32 0.0, %v1579
    %1581 = vdwg.mxu0
    %1582 = vst [vmem:[#allocation1] ss:$2 sm:$0xff] %v1385
    %v1583 = vld.sshfl [vmem:[#allocation1] sm:$0xff pattern:$0x75316420]
    %1584 = vrot.lane.b32.xlu0 %v1583, 120
    %v1585 = vpop.permute.xlu0 %1584
    %1586 = vst [vmem:[#allocation1] ss:$2 sm:$0xff] %v1385
    %v1587 = vld.sshfl [vmem:[#allocation1] sm:$0xff pattern:$0x75316420]
    %1588 = vrot.lane.b32.xlu0 %v1587, 88
    %v1589 = vpop.permute.xlu0 %1588
    %v1590 = vsel %vm327, %v1585, 0
    %v1592 = vsel %vm327, %v1589, 0
    %1594 = vmatpush.xpose.msra.mxu0 0.0
    %1595 = vmatpush.xpose.msra.mxu0 0.0
    %1596 = vmatpush.xpose.msra.mxu0 0.0
    %1597 = vmatpush.xpose.msra.mxu0 0.0
    %1598 = vmatpush.xpose.msra.mxu0 0.0
    %1599 = vmatpush.xpose.msra.mxu0 0.0
    %1600 = vmatpush.xpose.msra.mxu0 0.0
    %1601 = vmatpush.xpose.msra.mxu0 0.0
    %1602 = vmatpush.xpose.msra.mxu0 0.0
    %1603 = vmatpush.xpose.msra.mxu0 0.0
    %1604 = vmatpush.xpose.msra.mxu0 0.0
    %1605 = vmatpush.xpose.msra.mxu0 0.0
    %1606 = vmatpush.xpose.msra.mxu0 0.0
    %1607 = vmatpush.xpose.msra.mxu0 0.0
    %1608 = vmatpush.xpose.msra.mxu0 0.0
    %1609 = vmatpush.xpose.msra.mxu0 %v1592
    %1610 = vmatmul.f32.gmra.mxu0 %v1590
    %v1611 = vpop.f32.mrf.mxu0
    %v1612 = vadd.f32 0.0, %v1611
    %1613 = vdwg.mxu0
    %v1614 = vmul.f32 %v1580, 0.35355338
    %v1615 = vmul.f32 %v1612, 0.35355338
    %v1616 = vsel %vm382, %v1614, -inf
    %1617 = vmax.xlane.f32.xlu0 %v1616
    %v1618 = vpop.xlane.xlu0 %1617
    %v1619 = vsel %vm382, %v1615, -inf
    %1620 = vmax.xlane.f32.xlu0 %v1619
    %v1621 = vpop.xlane.xlu0 %1620
    %v1622 = vsub.f32 %v1614, %v1618
    %v1623 = vsub.f32 %v1615, %v1621
    %v1624 = vmul.f32 %v1622, 1.442695
    %v1625 = vpow.pop %v1624
    %v1626 = vmul.f32 %v1623, 1.442695
    %v1627 = vpow.pop %v1626
    %v1628 = vsel %vm382, %v1625, 0.0
    %1629 = vadd.xlane.f32.xlu0 %v1628
    %v1630 = vpop.xlane.xlu0 %1629
    %v1631 = vsel %vm382, %v1627, 0.0
    %1632 = vadd.xlane.f32.xlu0 %v1631
    %v1633 = vpop.xlane.xlu0 %1632
    %v1634 = vrcp.pop %v1630
    %v1635 = vmul.f32 %v1630, %v1634
    %v1636 = vsub.f32 1.0, %v1635
    %v1637 = vmul.f32 %v1634, %v1636
    %v1638 = vadd.f32 %v1634, %v1637
    %vm1639 = vweird.f32 %v1630
    %vm1640 = vweird.f32 %v1634
    %vm1641 = vmor %vm1639, %vm1640
    %v1642 = vsel %vm1641, %v1634, %v1638
    %v1643 = vand.u32 2147483647, %v1630
    %vm1644 = vcmp.eq.f32.partialorder %v1643, 8.507059e+37
    %v1645 = vand.u32 %v1630, 2147483648
    %v1646 = vor.u32 1.1754944e-38, %v1645
    %v1647 = vsel %vm1644, %v1646, %v1642
    %v1648 = vmul.f32 %v1625, %v1647
    %v1649 = vrcp.pop %v1633
    %v1650 = vmul.f32 %v1633, %v1649
    %v1651 = vsub.f32 1.0, %v1650
    %v1652 = vmul.f32 %v1649, %v1651
    %v1653 = vadd.f32 %v1649, %v1652
    %vm1654 = vweird.f32 %v1633
    %vm1655 = vweird.f32 %v1649
    %vm1656 = vmor %vm1654, %vm1655
    %v1657 = vsel %vm1656, %v1649, %v1653
    %v1658 = vand.u32 2147483647, %v1633
    %vm1659 = vcmp.eq.f32.partialorder %v1658, 8.507059e+37
    %v1660 = vand.u32 %v1633, 2147483648
    %v1661 = vor.u32 1.1754944e-38, %v1660
    %v1662 = vsel %vm1659, %v1661, %v1657
    %v1663 = vmul.f32 %v1627, %v1662
    %1664 = vst [vmem:[#allocation1] ss:$2 sm:$0xff] %v1382
    %v1665 = vld.sshfl [vmem:[#allocation1] sm:$0xff pattern:$0x75316420]
    %1666 = vrot.lane.b32.xlu0 %v1665, 56
    %v1667 = vpop.permute.xlu0 %1666
    %v1669 = vsel %vm435, %v1648, 0
    %v1671 = vsel %vm439, %v1667, 0
    %1673 = vmatpush.msra.mxu0 0.0
    %1674 = vmatpush.msra.mxu0 0.0
    %1675 = vmatpush.msra.mxu0 0.0
    %1676 = vmatpush.msra.mxu0 0.0
    %1677 = vmatpush.msra.mxu0 0.0
    %1678 = vmatpush.msra.mxu0 0.0
    %1679 = vmatpush.msra.mxu0 0.0
    %1680 = vmatpush.msra.mxu0 0.0
    %1681 = vmatpush.msra.mxu0 0.0
    %1682 = vmatpush.msra.mxu0 0.0
    %1683 = vmatpush.msra.mxu0 0.0
    %1684 = vmatpush.msra.mxu0 0.0
    %1685 = vmatpush.msra.mxu0 0.0
    %1686 = vmatpush.msra.mxu0 0.0
    %1687 = vmatpush.msra.mxu0 0.0
    %1688 = vmatpush.msra.mxu0 %v1671
    %1689 = vmatmul.f32.gmra.mxu0 %v1669
    %v1690 = vpop.f32.mrf.mxu0
    %v1691 = vadd.f32 0.0, %v1690
    %1692 = vdwg.mxu0
    %1693 = vst [vmem:[#allocation1] ss:$2 sm:$0xff] %v1385
    %v1694 = vld.sshfl [vmem:[#allocation1] sm:$0xff pattern:$0x75316420]
    %1695 = vrot.lane.b32.xlu0 %v1694, 56
    %v1696 = vpop.permute.xlu0 %1695
    %v1698 = vsel %vm435, %v1663, 0
    %v1700 = vsel %vm439, %v1696, 0
    %1702 = vmatpush.msra.mxu0 0.0
    %1703 = vmatpush.msra.mxu0 0.0
    %1704 = vmatpush.msra.mxu0 0.0
    %1705 = vmatpush.msra.mxu0 0.0
    %1706 = vmatpush.msra.mxu0 0.0
    %1707 = vmatpush.msra.mxu0 0.0
    %1708 = vmatpush.msra.mxu0 0.0
    %1709 = vmatpush.msra.mxu0 0.0
    %1710 = vmatpush.msra.mxu0 0.0
    %1711 = vmatpush.msra.mxu0 0.0
    %1712 = vmatpush.msra.mxu0 0.0
    %1713 = vmatpush.msra.mxu0 0.0
    %1714 = vmatpush.msra.mxu0 0.0
    %1715 = vmatpush.msra.mxu0 0.0
    %1716 = vmatpush.msra.mxu0 0.0
    %1717 = vmatpush.msra.mxu0 %v1700
    %1718 = vmatmul.f32.gmra.mxu0 %v1698
    %v1719 = vpop.f32.mrf.mxu0
    %v1720 = vadd.f32 0.0, %v1719
    %1721 = vdwg.mxu0
    %1722 = vst [vmem:[#allocation1] ss:$2 sm:$0xff] %v1382
    %v1723 = vld.sshfl [vmem:[#allocation1] sm:$0xff pattern:$0x75316420]
    %1724 = vrot.lane.b32.xlu0 %v1723, 112
    %v1725 = vpop.permute.xlu0 %1724
    %1726 = vst [vmem:[#allocation1] ss:$2 sm:$0xff] %v1382
    %v1727 = vld.sshfl [vmem:[#allocation1] sm:$0xff pattern:$0x75316420]
    %1728 = vrot.lane.b32.xlu0 %v1727, 80
    %v1729 = vpop.permute.xlu0 %1728
    %v1730 = vsel %vm327, %v1725, 0
    %v1732 = vsel %vm327, %v1729, 0
    %1734 = vmatpush.xpose.msra.mxu0 0.0
    %1735 = vmatpush.xpose.msra.mxu0 0.0
    %1736 = vmatpush.xpose.msra.mxu0 0.0
    %1737 = vmatpush.xpose.msra.mxu0 0.0
    %1738 = vmatpush.xpose.msra.mxu0 0.0
    %1739 = vmatpush.xpose.msra.mxu0 0.0
    %1740 = vmatpush.xpose.msra.mxu0 0.0
    %1741 = vmatpush.xpose.msra.mxu0 0.0
    %1742 = vmatpush.xpose.msra.mxu0 0.0
    %1743 = vmatpush.xpose.msra.mxu0 0.0
    %1744 = vmatpush.xpose.msra.mxu0 0.0
    %1745 = vmatpush.xpose.msra.mxu0 0.0
    %1746 = vmatpush.xpose.msra.mxu0 0.0
    %1747 = vmatpush.xpose.msra.mxu0 0.0
    %1748 = vmatpush.xpose.msra.mxu0 0.0
    %1749 = vmatpush.xpose.msra.mxu0 %v1732
    %1750 = vmatmul.f32.gmra.mxu0 %v1730
    %v1751 = vpop.f32.mrf.mxu0
    %v1752 = vadd.f32 0.0, %v1751
    %1753 = vdwg.mxu0
    %1754 = vst [vmem:[#allocation1] ss:$2 sm:$0xff] %v1385
    %v1755 = vld.sshfl [vmem:[#allocation1] sm:$0xff pattern:$0x75316420]
    %1756 = vrot.lane.b32.xlu0 %v1755, 112
    %v1757 = vpop.permute.xlu0 %1756
    %1758 = vst [vmem:[#allocation1] ss:$2 sm:$0xff] %v1385
    %v1759 = vld.sshfl [vmem:[#allocation1] sm:$0xff pattern:$0x75316420]
    %1760 = vrot.lane.b32.xlu0 %v1759, 80
    %v1761 = vpop.permute.xlu0 %1760
    %v1762 = vsel %vm327, %v1757, 0
    %v1764 = vsel %vm327, %v1761, 0
    %1766 = vmatpush.xpose.msra.mxu0 0.0
    %1767 = vmatpush.xpose.msra.mxu0 0.0
    %1768 = vmatpush.xpose.msra.mxu0 0.0
    %1769 = vmatpush.xpose.msra.mxu0 0.0
    %1770 = vmatpush.xpose.msra.mxu0 0.0
    %1771 = vmatpush.xpose.msra.mxu0 0.0
    %1772 = vmatpush.xpose.msra.mxu0 0.0
    %1773 = vmatpush.xpose.msra.mxu0 0.0
    %1774 = vmatpush.xpose.msra.mxu0 0.0
    %1775 = vmatpush.xpose.msra.mxu0 0.0
    %1776 = vmatpush.xpose.msra.mxu0 0.0
    %1777 = vmatpush.xpose.msra.mxu0 0.0
    %1778 = vmatpush.xpose.msra.mxu0 0.0
    %1779 = vmatpush.xpose.msra.mxu0 0.0
    %1780 = vmatpush.xpose.msra.mxu0 0.0
    %1781 = vmatpush.xpose.msra.mxu0 %v1764
    %1782 = vmatmul.f32.gmra.mxu0 %v1762
    %v1783 = vpop.f32.mrf.mxu0
    %v1784 = vadd.f32 0.0, %v1783
    %1785 = vdwg.mxu0
    %v1786 = vmul.f32 %v1752, 0.35355338
    %v1787 = vmul.f32 %v1784, 0.35355338
    %v1788 = vsel %vm382, %v1786, -inf
    %1789 = vmax.xlane.f32.xlu0 %v1788
    %v1790 = vpop.xlane.xlu0 %1789
    %v1791 = vsel %vm382, %v1787, -inf
    %1792 = vmax.xlane.f32.xlu0 %v1791
    %v1793 = vpop.xlane.xlu0 %1792
    %v1794 = vsub.f32 %v1786, %v1790
    %v1795 = vsub.f32 %v1787, %v1793
    %v1796 = vmul.f32 %v1794, 1.442695
    %v1797 = vpow.pop %v1796
    %v1798 = vmul.f32 %v1795, 1.442695
    %v1799 = vpow.pop %v1798
    %v1800 = vsel %vm382, %v1797, 0.0
    %1801 = vadd.xlane.f32.xlu0 %v1800
    %v1802 = vpop.xlane.xlu0 %1801
    %v1803 = vsel %vm382, %v1799, 0.0
    %1804 = vadd.xlane.f32.xlu0 %v1803
    %v1805 = vpop.xlane.xlu0 %1804
    %v1806 = vrcp.pop %v1802
    %v1807 = vmul.f32 %v1802, %v1806
    %v1808 = vsub.f32 1.0, %v1807
    %v1809 = vmul.f32 %v1806, %v1808
    %v1810 = vadd.f32 %v1806, %v1809
    %vm1811 = vweird.f32 %v1802
    %vm1812 = vweird.f32 %v1806
    %vm1813 = vmor %vm1811, %vm1812
    %v1814 = vsel %vm1813, %v1806, %v1810
    %v1815 = vand.u32 2147483647, %v1802
    %vm1816 = vcmp.eq.f32.partialorder %v1815, 8.507059e+37
    %v1817 = vand.u32 %v1802, 2147483648
    %v1818 = vor.u32 1.1754944e-38, %v1817
    %v1819 = vsel %vm1816, %v1818, %v1814
    %v1820 = vmul.f32 %v1797, %v1819
    %v1821 = vrcp.pop %v1805
    %v1822 = vmul.f32 %v1805, %v1821
    %v1823 = vsub.f32 1.0, %v1822
    %v1824 = vmul.f32 %v1821, %v1823
    %v1825 = vadd.f32 %v1821, %v1824
    %vm1826 = vweird.f32 %v1805
    %vm1827 = vweird.f32 %v1821
    %vm1828 = vmor %vm1826, %vm1827
    %v1829 = vsel %vm1828, %v1821, %v1825
    %v1830 = vand.u32 2147483647, %v1805
    %vm1831 = vcmp.eq.f32.partialorder %v1830, 8.507059e+37
    %v1832 = vand.u32 %v1805, 2147483648
    %v1833 = vor.u32 1.1754944e-38, %v1832
    %v1834 = vsel %vm1831, %v1833, %v1829
    %v1835 = vmul.f32 %v1799, %v1834
    %1836 = vst [vmem:[#allocation1] ss:$2 sm:$0xff] %v1382
    %v1837 = vld.sshfl [vmem:[#allocation1] sm:$0xff pattern:$0x75316420]
    %1838 = vrot.lane.b32.xlu0 %v1837, 48
    %v1839 = vpop.permute.xlu0 %1838
    %v1841 = vsel %vm435, %v1820, 0
    %v1843 = vsel %vm439, %v1839, 0
    %1845 = vmatpush.msra.mxu0 0.0
    %1846 = vmatpush.msra.mxu0 0.0
    %1847 = vmatpush.msra.mxu0 0.0
    %1848 = vmatpush.msra.mxu0 0.0
    %1849 = vmatpush.msra.mxu0 0.0
    %1850 = vmatpush.msra.mxu0 0.0
    %1851 = vmatpush.msra.mxu0 0.0
    %1852 = vmatpush.msra.mxu0 0.0
    %1853 = vmatpush.msra.mxu0 0.0
    %1854 = vmatpush.msra.mxu0 0.0
    %1855 = vmatpush.msra.mxu0 0.0
    %1856 = vmatpush.msra.mxu0 0.0
    %1857 = vmatpush.msra.mxu0 0.0
    %1858 = vmatpush.msra.mxu0 0.0
    %1859 = vmatpush.msra.mxu0 0.0
    %1860 = vmatpush.msra.mxu0 %v1843
    %1861 = vmatmul.f32.gmra.mxu0 %v1841
    %v1862 = vpop.f32.mrf.mxu0
    %v1863 = vadd.f32 0.0, %v1862
    %1864 = vdwg.mxu0
    %1865 = vst [vmem:[#allocation1] ss:$2 sm:$0xff] %v1385
    %v1866 = vld.sshfl [vmem:[#allocation1] sm:$0xff pattern:$0x75316420]
    %1867 = vrot.lane.b32.xlu0 %v1866, 48
    %v1868 = vpop.permute.xlu0 %1867
    %v1870 = vsel %vm435, %v1835, 0
    %v1872 = vsel %vm439, %v1868, 0
    %1874 = vmatpush.msra.mxu0 0.0
    %1875 = vmatpush.msra.mxu0 0.0
    %1876 = vmatpush.msra.mxu0 0.0
    %1877 = vmatpush.msra.mxu0 0.0
    %1878 = vmatpush.msra.mxu0 0.0
    %1879 = vmatpush.msra.mxu0 0.0
    %1880 = vmatpush.msra.mxu0 0.0
    %1881 = vmatpush.msra.mxu0 0.0
    %1882 = vmatpush.msra.mxu0 0.0
    %1883 = vmatpush.msra.mxu0 0.0
    %1884 = vmatpush.msra.mxu0 0.0
    %1885 = vmatpush.msra.mxu0 0.0
    %1886 = vmatpush.msra.mxu0 0.0
    %1887 = vmatpush.msra.mxu0 0.0
    %1888 = vmatpush.msra.mxu0 0.0
    %1889 = vmatpush.msra.mxu0 %v1872
    %1890 = vmatmul.f32.gmra.mxu0 %v1870
    %v1891 = vpop.f32.mrf.mxu0
    %v1892 = vadd.f32 0.0, %v1891
    %1893 = vdwg.mxu0
    %1894 = vst [vmem:[#allocation1] ss:$2 sm:$0xff] %v1382
    %v1895 = vld.sshfl [vmem:[#allocation1] sm:$0xff pattern:$0x75316420]
    %1896 = vrot.lane.b32.xlu0 %v1895, 104
    %v1897 = vpop.permute.xlu0 %1896
    %1898 = vst [vmem:[#allocation1] ss:$2 sm:$0xff] %v1382
    %v1899 = vld.sshfl [vmem:[#allocation1] sm:$0xff pattern:$0x75316420]
    %1900 = vrot.lane.b32.xlu0 %v1899, 72
    %v1901 = vpop.permute.xlu0 %1900
    %v1902 = vsel %vm327, %v1897, 0
    %v1904 = vsel %vm327, %v1901, 0
    %1906 = vmatpush.xpose.msra.mxu0 0.0
    %1907 = vmatpush.xpose.msra.mxu0 0.0
    %1908 = vmatpush.xpose.msra.mxu0 0.0
    %1909 = vmatpush.xpose.msra.mxu0 0.0
    %1910 = vmatpush.xpose.msra.mxu0 0.0
    %1911 = vmatpush.xpose.msra.mxu0 0.0
    %1912 = vmatpush.xpose.msra.mxu0 0.0
    %1913 = vmatpush.xpose.msra.mxu0 0.0
    %1914 = vmatpush.xpose.msra.mxu0 0.0
    %1915 = vmatpush.xpose.msra.mxu0 0.0
    %1916 = vmatpush.xpose.msra.mxu0 0.0
    %1917 = vmatpush.xpose.msra.mxu0 0.0
    %1918 = vmatpush.xpose.msra.mxu0 0.0
    %1919 = vmatpush.xpose.msra.mxu0 0.0
    %1920 = vmatpush.xpose.msra.mxu0 0.0
    %1921 = vmatpush.xpose.msra.mxu0 %v1904
    %1922 = vmatmul.f32.gmra.mxu0 %v1902
    %v1923 = vpop.f32.mrf.mxu0
    %v1924 = vadd.f32 0.0, %v1923
    %1925 = vdwg.mxu0
    %1926 = vst [vmem:[#allocation1] ss:$2 sm:$0xff] %v1385
    %v1927 = vld.sshfl [vmem:[#allocation1] sm:$0xff pattern:$0x75316420]
    %1928 = vrot.lane.b32.xlu0 %v1927, 104
    %v1929 = vpop.permute.xlu0 %1928
    %1930 = vst [vmem:[#allocation1] ss:$2 sm:$0xff] %v1385
    %v1931 = vld.sshfl [vmem:[#allocation1] sm:$0xff pattern:$0x75316420]
    %1932 = vrot.lane.b32.xlu0 %v1931, 72
    %v1933 = vpop.permute.xlu0 %1932
    %v1934 = vsel %vm327, %v1929, 0
    %v1936 = vsel %vm327, %v1933, 0
    %1938 = vmatpush.xpose.msra.mxu0 0.0
    %1939 = vmatpush.xpose.msra.mxu0 0.0
    %1940 = vmatpush.xpose.msra.mxu0 0.0
    %1941 = vmatpush.xpose.msra.mxu0 0.0
    %1942 = vmatpush.xpose.msra.mxu0 0.0
    %1943 = vmatpush.xpose.msra.mxu0 0.0
    %1944 = vmatpush.xpose.msra.mxu0 0.0
    %1945 = vmatpush.xpose.msra.mxu0 0.0
    %1946 = vmatpush.xpose.msra.mxu0 0.0
    %1947 = vmatpush.xpose.msra.mxu0 0.0
    %1948 = vmatpush.xpose.msra.mxu0 0.0
    %1949 = vmatpush.xpose.msra.mxu0 0.0
    %1950 = vmatpush.xpose.msra.mxu0 0.0
    %1951 = vmatpush.xpose.msra.mxu0 0.0
    %1952 = vmatpush.xpose.msra.mxu0 0.0
    %1953 = vmatpush.xpose.msra.mxu0 %v1936
    %1954 = vmatmul.f32.gmra.mxu0 %v1934
    %v1955 = vpop.f32.mrf.mxu0
    %v1956 = vadd.f32 0.0, %v1955
    %1957 = vdwg.mxu0
    %v1958 = vmul.f32 %v1924, 0.35355338
    %v1959 = vmul.f32 %v1956, 0.35355338
    %v1960 = vsel %vm382, %v1958, -inf
    %1961 = vmax.xlane.f32.xlu0 %v1960
    %v1962 = vpop.xlane.xlu0 %1961
    %v1963 = vsel %vm382, %v1959, -inf
    %1964 = vmax.xlane.f32.xlu0 %v1963
    %v1965 = vpop.xlane.xlu0 %1964
    %v1966 = vsub.f32 %v1958, %v1962
    %v1967 = vsub.f32 %v1959, %v1965
    %v1968 = vmul.f32 %v1966, 1.442695
    %v1969 = vpow.pop %v1968
    %v1970 = vmul.f32 %v1967, 1.442695
    %v1971 = vpow.pop %v1970
    %v1972 = vsel %vm382, %v1969, 0.0
    %1973 = vadd.xlane.f32.xlu0 %v1972
    %v1974 = vpop.xlane.xlu0 %1973
    %v1975 = vsel %vm382, %v1971, 0.0
    %1976 = vadd.xlane.f32.xlu0 %v1975
    %v1977 = vpop.xlane.xlu0 %1976
    %v1978 = vrcp.pop %v1974
    %v1979 = vmul.f32 %v1974, %v1978
    %v1980 = vsub.f32 1.0, %v1979
    %v1981 = vmul.f32 %v1978, %v1980
    %v1982 = vadd.f32 %v1978, %v1981
    %vm1983 = vweird.f32 %v1974
    %vm1984 = vweird.f32 %v1978
    %vm1985 = vmor %vm1983, %vm1984
    %v1986 = vsel %vm1985, %v1978, %v1982
    %v1987 = vand.u32 2147483647, %v1974
    %vm1988 = vcmp.eq.f32.partialorder %v1987, 8.507059e+37
    %v1989 = vand.u32 %v1974, 2147483648
    %v1990 = vor.u32 1.1754944e-38, %v1989
    %v1991 = vsel %vm1988, %v1990, %v1986
    %v1992 = vmul.f32 %v1969, %v1991
    %v1993 = vrcp.pop %v1977
    %v1994 = vmul.f32 %v1977, %v1993
    %v1995 = vsub.f32 1.0, %v1994
    %v1996 = vmul.f32 %v1993, %v1995
    %v1997 = vadd.f32 %v1993, %v1996
    %vm1998 = vweird.f32 %v1977
    %vm1999 = vweird.f32 %v1993
    %vm2000 = vmor %vm1998, %vm1999
    %v2001 = vsel %vm2000, %v1993, %v1997
    %v2002 = vand.u32 2147483647, %v1977
    %vm2003 = vcmp.eq.f32.partialorder %v2002, 8.507059e+37
    %v2004 = vand.u32 %v1977, 2147483648
    %v2005 = vor.u32 1.1754944e-38, %v2004
    %v2006 = vsel %vm2003, %v2005, %v2001
    %v2007 = vmul.f32 %v1971, %v2006
    %2008 = vst [vmem:[#allocation1] ss:$2 sm:$0xff] %v1382
    %v2009 = vld.sshfl [vmem:[#allocation1] sm:$0xff pattern:$0x75316420]
    %2010 = vrot.lane.b32.xlu0 %v2009, 40
    %v2011 = vpop.permute.xlu0 %2010
    %v2013 = vsel %vm435, %v1992, 0
    %v2015 = vsel %vm439, %v2011, 0
    %2017 = vmatpush.msra.mxu0 0.0
    %2018 = vmatpush.msra.mxu0 0.0
    %2019 = vmatpush.msra.mxu0 0.0
    %2020 = vmatpush.msra.mxu0 0.0
    %2021 = vmatpush.msra.mxu0 0.0
    %2022 = vmatpush.msra.mxu0 0.0
    %2023 = vmatpush.msra.mxu0 0.0
    %2024 = vmatpush.msra.mxu0 0.0
    %2025 = vmatpush.msra.mxu0 0.0
    %2026 = vmatpush.msra.mxu0 0.0
    %2027 = vmatpush.msra.mxu0 0.0
    %2028 = vmatpush.msra.mxu0 0.0
    %2029 = vmatpush.msra.mxu0 0.0
    %2030 = vmatpush.msra.mxu0 0.0
    %2031 = vmatpush.msra.mxu0 0.0
    %2032 = vmatpush.msra.mxu0 %v2015
    %2033 = vmatmul.f32.gmra.mxu0 %v2013
    %v2034 = vpop.f32.mrf.mxu0
    %v2035 = vadd.f32 0.0, %v2034
    %2036 = vdwg.mxu0
    %2037 = vst [vmem:[#allocation1] ss:$2 sm:$0xff] %v1385
    %v2038 = vld.sshfl [vmem:[#allocation1] sm:$0xff pattern:$0x75316420]
    %2039 = vrot.lane.b32.xlu0 %v2038, 40
    %v2040 = vpop.permute.xlu0 %2039
    %v2042 = vsel %vm435, %v2007, 0
    %v2044 = vsel %vm439, %v2040, 0
    %2046 = vmatpush.msra.mxu0 0.0
    %2047 = vmatpush.msra.mxu0 0.0
    %2048 = vmatpush.msra.mxu0 0.0
    %2049 = vmatpush.msra.mxu0 0.0
    %2050 = vmatpush.msra.mxu0 0.0
    %2051 = vmatpush.msra.mxu0 0.0
    %2052 = vmatpush.msra.mxu0 0.0
    %2053 = vmatpush.msra.mxu0 0.0
    %2054 = vmatpush.msra.mxu0 0.0
    %2055 = vmatpush.msra.mxu0 0.0
    %2056 = vmatpush.msra.mxu0 0.0
    %2057 = vmatpush.msra.mxu0 0.0
    %2058 = vmatpush.msra.mxu0 0.0
    %2059 = vmatpush.msra.mxu0 0.0
    %2060 = vmatpush.msra.mxu0 0.0
    %2061 = vmatpush.msra.mxu0 %v2044
    %2062 = vmatmul.f32.gmra.mxu0 %v2042
    %v2063 = vpop.f32.mrf.mxu0
    %v2064 = vadd.f32 0.0, %v2063
    %2065 = vdwg.mxu0
    %2068 = vst [vmem:[#allocation1] ss:$2 sm:$0xff] %v1519
    %s2069 = scalar_lea.vmem [#allocation1], 1
    %2070 = vst [vmem:[%s2069] ss:$2 sm:$0xff] %v1548
    %v2071 = vld.sshfl [vmem:[#allocation1] sm:$0xff pattern:$0x75316420]
    %2075 = vst [vmem:[#allocation1] ss:$2 sm:$0xff] %v1691
    %s2076 = scalar_lea.vmem [#allocation1], 1
    %2077 = vst [vmem:[%s2076] ss:$2 sm:$0xff] %v1720
    %v2078 = vld.sshfl [vmem:[#allocation1] sm:$0xff pattern:$0x75316420]
    %2079 = vrot.lane.b32.xlu0 %v2078, 8
    %v2080 = vpop.permute.xlu0 %2079
    %2084 = vst [vmem:[#allocation1] ss:$2 sm:$0xff] %v1863
    %s2085 = scalar_lea.vmem [#allocation1], 1
    %2086 = vst [vmem:[%s2085] ss:$2 sm:$0xff] %v1892
    %v2087 = vld.sshfl [vmem:[#allocation1] sm:$0xff pattern:$0x75316420]
    %2088 = vrot.lane.b32.xlu0 %v2087, 16
    %v2089 = vpop.permute.xlu0 %2088
    %2093 = vst [vmem:[#allocation1] ss:$2 sm:$0xff] %v2035
    %s2094 = scalar_lea.vmem [#allocation1], 1
    %2095 = vst [vmem:[%s2094] ss:$2 sm:$0xff] %v2064
    %v2096 = vld.sshfl [vmem:[#allocation1] sm:$0xff pattern:$0x75316420]
    %2097 = vrot.lane.b32.xlu0 %v2096, 24
    %v2098 = vpop.permute.xlu0 %2097
    %v2100 = vsel %vm327, %v2071, %v2080
    %v2101 = vsel %vm129, %v2100, %v2089
    %v2102 = vsel %vm1043, %v2101, %v2098
    %2107 = vrot.lane.b32.xlu0 %v1248, 32
    %v2108 = vpop.permute.xlu0 %2107
    %2109 = vrot.lane.b32.xlu0 %v1250, 32
    %v2110 = vpop.permute.xlu0 %2109
    %2111 = vrot.lane.b32.xlu0 %v1252, 32
    %v2112 = vpop.permute.xlu0 %2111
    %2113 = vrot.lane.b32.xlu0 %v1254, 32
    %v2114 = vpop.permute.xlu0 %2113
    %v2120 = vsel %vm208, %v2102, 0
    %2122 = vmatpush.msra.mxu0 0.0
    %2123 = vmatpush.msra.mxu0 0.0
    %2124 = vmatpush.msra.mxu0 0.0
    %2125 = vmatpush.msra.mxu0 0.0
    %2126 = vmatpush.msra.mxu0 0.0
    %2127 = vmatpush.msra.mxu0 0.0
    %2128 = vmatpush.msra.mxu0 0.0
    %2129 = vmatpush.msra.mxu0 0.0
    %2130 = vmatpush.msra.mxu0 0.0
    %2131 = vmatpush.msra.mxu0 0.0
    %2132 = vmatpush.msra.mxu0 0.0
    %2133 = vmatpush.msra.mxu0 0.0
    %2134 = vmatpush.msra.mxu0 %v2114
    %2135 = vmatpush.msra.mxu0 %v2112
    %2136 = vmatpush.msra.mxu0 %v2110
    %2137 = vmatpush.msra.mxu0 %v2108
    %2138 = vmatmul.f32.gmra.mxu0 %v2120
    %v2139 = vpop.f32.mrf.mxu0
    %v2140 = vadd.f32 0.0, %v2139
    %2141 = vdwg.mxu0
    %v2143 = vrot.slane %v2140, 4
    %v2145 = vadd.f32 %v1243, %v2140
    %v2146 = vadd.f32 %v1244, %v2143
    %2147 = vrot.lane.b32.xlu0 %v1246, 96
    %v2148 = vpop.permute.xlu0 %2147
    %v2149 = vrot.slane %v2148, 1
    %v2150 = vperm.slane %v2149, 0
    %v2152 = vrot.slane %v2150, 4
    %v2154 = vadd.f32 %v2145, %v2150
    %v2155 = vadd.f32 %v2146, %v2152
    %2158 = vst [vmem:[#allocation1] ss:$2 sm:$0xff] %v2154
    %s2159 = scalar_lea.vmem [#allocation1], 1
    %2160 = vst [vmem:[%s2159] ss:$2 sm:$0xff] %v2155
    %v2161 = vld.sshfl [vmem:[#allocation1] sm:$0xff pattern:$0x75316420]
    %v2163 = vsel %vm208, %v2161, 0.0
    %2164 = vadd.xlane.f32.xlu0 %v2163
    %v2165 = vpop.xlane.xlu0 %2164
    %v2166 = vmul.f32 %v2165, %v218
    %v2169 = vunpack.c.l.s4 839922192
    %v2170 = vunpack.c.0.s8 %v2169
    %v2171 = vperm.slane %v2166, %v2170
    %v2173 = vunpack.c.l.s4 1985246804
    %v2174 = vunpack.c.0.s8 %v2173
    %v2175 = vperm.slane %v2166, %v2174
    %v2178 = vsub.f32 %v2154, %v2171
    %v2179 = vsub.f32 %v2155, %v2175
    %v2180 = vmul.f32 %v2178, %v2178
    %v2181 = vmul.f32 %v2179, %v2179
    %2184 = vst [vmem:[#allocation1] ss:$2 sm:$0xff] %v2180
    %s2185 = scalar_lea.vmem [#allocation1], 1
    %2186 = vst [vmem:[%s2185] ss:$2 sm:$0xff] %v2181
    %v2187 = vld.sshfl [vmem:[#allocation1] sm:$0xff pattern:$0x75316420]
    %v2189 = vsel %vm208, %v2187, 0.0
    %2190 = vadd.xlane.f32.xlu0 %v2189
    %v2191 = vpop.xlane.xlu0 %2190
    %v2192 = vmul.f32 %v2191, %v218
    %v2193 = vadd.f32 %v2192, 1e-05
    %v2194 = vrsqrt.pop %v2193
    %v2195 = vmul.f32 %v2194, %v2193
    %v2196 = vmul.f32 %v2195, %v2194
    %v2197 = vmul.f32 0.5, %v2196
    %v2198 = vsub.f32 1.5, %v2197
    %v2199 = vmul.f32 %v2194, %v2198
    %vm2200 = vweird.f32 %v2193
    %vm2201 = vweird.f32 %v2194
    %vm2202 = vmor %vm2200, %vm2201
    %v2203 = vsel %vm2202, %v2194, %v2199
    %v2206 = vunpack.c.l.s4 839922192
    %v2207 = vunpack.c.0.s8 %v2206
    %v2208 = vperm.slane %v2203, %v2207
    %v2210 = vunpack.c.l.s4 1985246804
    %v2211 = vunpack.c.0.s8 %v2210
    %v2212 = vperm.slane %v2203, %v2211
    %v2215 = vmul.f32 %v2178, %v2208
    %v2216 = vmul.f32 %v2179, %v2212
    %2217 = vrot.lane.b32.xlu0 %v1246, 64
    %v2218 = vpop.permute.xlu0 %2217
    %v2219 = vrot.slane %v2218, 1
    %v2220 = vperm.slane %v2219, 0
    %v2222 = vrot.slane %v2220, 4
    %v2224 = vmul.f32 %v2215, %v2220
    %v2225 = vmul.f32 %v2216, %v2222
    %2226 = vrot.lane.b32.xlu0 %v1246, 32
    %v2227 = vpop.permute.xlu0 %2226
    %v2228 = vrot.slane %v2227, 1
    %v2229 = vperm.slane %v2228, 0
    %v2231 = vrot.slane %v2229, 4
    %v2233 = vadd.f32 %v2224, %v2229
    %v2234 = vadd.f32 %v2225, %v2231
    %v2235 = vrot.slane %v1246, 2
    %v2236 = vperm.slane %v2235, 0
    %2240 = vst [vmem:[#allocation1] ss:$2 sm:$0xff] %v2233
    %s2241 = scalar_lea.vmem [#allocation1], 1
    %2242 = vst [vmem:[%s2241] ss:$2 sm:$0xff] %v2234
    %v2243 = vld.sshfl [vmem:[#allocation1] sm:$0xff pattern:$0x75316420]
    %v2244 = vsel %vm208, %v2243, 0
    %2246 = vmatpush.msra.mxu0 0.0
    %2247 = vmatpush.msra.mxu0 0.0
    %2248 = vmatpush.msra.mxu0 0.0
    %2249 = vmatpush.msra.mxu0 0.0
    %2250 = vmatpush.msra.mxu0 0.0
    %2251 = vmatpush.msra.mxu0 0.0
    %2252 = vmatpush.msra.mxu0 0.0
    %2253 = vmatpush.msra.mxu0 0.0
    %2254 = vmatpush.msra.mxu0 0.0
    %2255 = vmatpush.msra.mxu0 0.0
    %2256 = vmatpush.msra.mxu0 0.0
    %2257 = vmatpush.msra.mxu0 0.0
    %2258 = vmatpush.msra.mxu0 %v1255
    %2259 = vmatpush.msra.mxu0 %v1253
    %2260 = vmatpush.msra.mxu0 %v1251
    %2261 = vmatpush.msra.mxu0 %v1249
    %2262 = vmatmul.f32.gmra.mxu0 %v2244
    %v2263 = vpop.f32.mrf.mxu0
    %v2264 = vadd.f32 %v2236, %v2263
    %2265 = vdwg.mxu0
    %v2266 = vmul.f32 %v2264, 0.5
    %v2267 = vmul.f32 %v2264, 0.044715
    %v2268 = vmul.f32 %v2267, %v2264
    %v2269 = vmul.f32 %v2268, %v2264
    %v2270 = vadd.f32 %v2264, %v2269
    %v2271 = vmul.f32 %v2270, 0.7978846
    %v2272 = vtanh.pop %v2271
    %v2273 = vadd.f32 %v2272, 1.0
    %v2274 = vmul.f32 %v2266, %v2273
    %v2275 = vrot.slane %v1246, 3
    %v2276 = vperm.slane %v2275, 0
    %2278 = vmatpush.msra.mxu0 %v1272
    %2279 = vmatpush.msra.mxu0 %v1271
    %2280 = vmatpush.msra.mxu0 %v1270
    %2281 = vmatpush.msra.mxu0 %v1269
    %2282 = vmatpush.msra.mxu0 %v1268
    %2283 = vmatpush.msra.mxu0 %v1267
    %2284 = vmatpush.msra.mxu0 %v1266
    %2285 = vmatpush.msra.mxu0 %v1265
    %2286 = vmatpush.msra.mxu0 %v1264
    %2287 = vmatpush.msra.mxu0 %v1263
    %2288 = vmatpush.msra.mxu0 %v1262
    %2289 = vmatpush.msra.mxu0 %v1261
    %2290 = vmatpush.msra.mxu0 %v1260
    %2291 = vmatpush.msra.mxu0 %v1259
    %2292 = vmatpush.msra.mxu0 %v1258
    %2293 = vmatpush.msra.mxu0 %v1257
    %2294 = vmatmul.f32.gmra.mxu0 %v2274
    %v2295 = vpop.f32.mrf.mxu0
    %v2296 = vadd.f32 %v2276, %v2295
    %2297 = vdwg.mxu0
    %v2299 = vrot.slane %v2296, 4
    %v2301 = vadd.f32 %v2154, %v2296
    %v2302 = vadd.f32 %v2155, %v2299
    %v2303 = vld [vmem:[%s10] sm:$0x1]
    %2306 = vst [vmem:[#allocation1] ss:$2 sm:$0xff] %v2301
    %s2307 = scalar_lea.vmem [#allocation1], 1
    %2308 = vst [vmem:[%s2307] ss:$2 sm:$0xff] %v2302
    %v2309 = vld.sshfl [vmem:[#allocation1] sm:$0xff pattern:$0x75316420]
    %v2311 = vsel %vm208, %v2309, 0.0
    %2312 = vadd.xlane.f32.xlu0 %v2311
    %v2313 = vpop.xlane.xlu0 %2312
    %v2314 = vmul.f32 %v2313, %v218
    %v2317 = vunpack.c.l.s4 839922192
    %v2318 = vunpack.c.0.s8 %v2317
    %v2319 = vperm.slane %v2314, %v2318
    %v2321 = vunpack.c.l.s4 1985246804
    %v2322 = vunpack.c.0.s8 %v2321
    %v2323 = vperm.slane %v2314, %v2322
    %v2326 = vsub.f32 %v2301, %v2319
    %v2327 = vsub.f32 %v2302, %v2323
    %v2328 = vmul.f32 %v2326, %v2326
    %v2329 = vmul.f32 %v2327, %v2327
    %2332 = vst [vmem:[#allocation1] ss:$2 sm:$0xff] %v2328
    %s2333 = scalar_lea.vmem [#allocation1], 1
    %2334 = vst [vmem:[%s2333] ss:$2 sm:$0xff] %v2329
    %v2335 = vld.sshfl [vmem:[#allocation1] sm:$0xff pattern:$0x75316420]
    %v2337 = vsel %vm208, %v2335, 0.0
    %2338 = vadd.xlane.f32.xlu0 %v2337
    %v2339 = vpop.xlane.xlu0 %2338
    %v2340 = vmul.f32 %v2339, %v218
    %v2341 = vadd.f32 %v2340, 1e-05
    %v2342 = vrsqrt.pop %v2341
    %v2343 = vmul.f32 %v2342, %v2341
    %v2344 = vmul.f32 %v2343, %v2342
    %v2345 = vmul.f32 0.5, %v2344
    %v2346 = vsub.f32 1.5, %v2345
    %v2347 = vmul.f32 %v2342, %v2346
    %vm2348 = vweird.f32 %v2341
    %vm2349 = vweird.f32 %v2342
    %vm2350 = vmor %vm2348, %vm2349
    %v2351 = vsel %vm2350, %v2342, %v2347
    %v2354 = vunpack.c.l.s4 839922192
    %v2355 = vunpack.c.0.s8 %v2354
    %v2356 = vperm.slane %v2351, %v2355
    %v2358 = vunpack.c.l.s4 1985246804
    %v2359 = vunpack.c.0.s8 %v2358
    %v2360 = vperm.slane %v2351, %v2359
    %v2363 = vmul.f32 %v2326, %v2356
    %v2364 = vmul.f32 %v2327, %v2360
    %v2366 = vperm.slane %v2303, 0
    %v2368 = vrot.slane %v2366, 4
    %v2370 = vmul.f32 %v2363, %v2366
    %v2371 = vmul.f32 %v2364, %v2368
    %2372 = vrot.lane.b32.xlu0 %v2366, 96
    %v2373 = vpop.permute.xlu0 %2372
    %2374 = vrot.lane.b32.xlu0 %v2368, 96
    %v2375 = vpop.permute.xlu0 %2374
    %v2378 = vadd.f32 %v2370, %v2373
    %v2379 = vadd.f32 %v2371, %v2375
    %v2380 = vld [vmem:[%s11] sm:$0xff]
    %v2381 = vld [vmem:[%s11 + $0x8] sm:$0xff]
    %v2382 = vld [vmem:[%s11 + $0x10] sm:$0xff]
    %v2383 = vld [vmem:[%s11 + $0x18] sm:$0xff]
    %v2384 = vld [vmem:[%s11 + $0x20] sm:$0x1]
    %v2385 = vperm.slane %v2384, 0
    %2388 = vst [vmem:[#allocation1] ss:$2 sm:$0xff] %v2378
    %s2389 = scalar_lea.vmem [#allocation1], 1
    %2390 = vst [vmem:[%s2389] ss:$2 sm:$0xff] %v2379
    %v2391 = vld.sshfl [vmem:[#allocation1] sm:$0xff pattern:$0x75316420]
    %v2392 = vsel %vm208, %v2391, 0
    %2394 = vmatpush.msra.mxu0 0.0
    %2395 = vmatpush.msra.mxu0 0.0
    %2396 = vmatpush.msra.mxu0 0.0
    %2397 = vmatpush.msra.mxu0 0.0
    %2398 = vmatpush.msra.mxu0 0.0
    %2399 = vmatpush.msra.mxu0 0.0
    %2400 = vmatpush.msra.mxu0 0.0
    %2401 = vmatpush.msra.mxu0 0.0
    %2402 = vmatpush.msra.mxu0 0.0
    %2403 = vmatpush.msra.mxu0 0.0
    %2404 = vmatpush.msra.mxu0 0.0
    %2405 = vmatpush.msra.mxu0 0.0
    %2406 = vmatpush.msra.mxu0 %v2383
    %2407 = vmatpush.msra.mxu0 %v2382
    %2408 = vmatpush.msra.mxu0 %v2381
    %2409 = vmatpush.msra.mxu0 %v2380
    %2410 = vmatmul.f32.gmra.mxu0 %v2392
    %v2411 = vpop.f32.mrf.mxu0
    %v2412 = vadd.f32 %v2385, %v2411
    %2413 = vdwg.mxu0
    %v2415 = vrot.slane %v2412, 4
    %v2416 = vld [vmem:[%s3] sm:$0x3]
    %v2417 = vld [vmem:[%s2] sm:$0xff]
    %v2418 = vld [vmem:[%s2 + $0x8] sm:$0xff]
    %v2419 = vld [vmem:[%s2 + $0x10] sm:$0xff]
    %v2420 = vld [vmem:[%s2 + $0x18] sm:$0xff]
    %v2421 = vperm.slane %v2416, 0
    %v2422 = vlaneseq
    %v2423 = vshrl.u32 %v2422, 7
    %2425 = vset.pattern.permute.xlu0 %v2423
    %2426 = vperm.xlu0 %2425, %v2421
    %v2427 = vpop.permute.xlu0 %2426
    %v2428 = vlaneseq
    %v2429 = vshrl.u32 %v2428, 7
    %v2430 = vadd.s32 %v2429, 8
    %2431 = vset.pattern.permute.xlu0 %v2430
    %2432 = vperm.xlu0 %2431, %v2421
    %v2433 = vpop.permute.xlu0 %2432
    %v2434 = vperm.slane %v2416, 1
    %v2435 = vlaneseq
    %v2436 = vshrl.u32 %v2435, 7
    %2438 = vset.pattern.permute.xlu0 %v2436
    %2439 = vperm.xlu0 %2438, %v2434
    %v2440 = vpop.permute.xlu0 %2439
    %v2441 = vlaneseq
    %v2442 = vshrl.u32 %v2441, 7
    %v2443 = vadd.s32 %v2442, 8
    %2444 = vset.pattern.permute.xlu0 %v2443
    %2445 = vperm.xlu0 %2444, %v2434
    %v2446 = vpop.permute.xlu0 %2445
    %v2447 = vld [vmem:[%s12] sm:$0x1]
    %v2449 = vperm.slane %v2447, 0
    %v2451 = vmul.f32 %v2427, %v2449
    %v2452 = vmul.f32 %v2433, %v2449
    %v2453 = vmul.f32 %v2440, %v2449
    %v2454 = vmul.f32 %v2446, %v2449
    %v2456 = vsel %vm435, %v2417, 0
    %v2459 = vsel %vm435, %v2418, 0
    %v2461 = vsel %vm439, %v2412, 0
    %2463 = vmatpush.msra.mxu0 0.0
    %2464 = vmatpush.msra.mxu0 0.0
    %2465 = vmatpush.msra.mxu0 0.0
    %2466 = vmatpush.msra.mxu0 0.0
    %2467 = vmatpush.msra.mxu0 0.0
    %2468 = vmatpush.msra.mxu0 0.0
    %2469 = vmatpush.msra.mxu0 0.0
    %2470 = vmatpush.msra.mxu0 0.0
    %2471 = vmatpush.msra.mxu0 0.0
    %2472 = vmatpush.msra.mxu0 0.0
    %2473 = vmatpush.msra.mxu0 0.0
    %2474 = vmatpush.msra.mxu0 0.0
    %2475 = vmatpush.msra.mxu0 0.0
    %2476 = vmatpush.msra.mxu0 0.0
    %2477 = vmatpush.msra.mxu0 0.0
    %2478 = vmatpush.msra.mxu0 %v2461
    %2479 = vmatmul.f32.gmra.mxu0 %v2456
    %v2480 = vpop.f32.mrf.mxu0
    %v2481 = vadd.f32 %v2451, %v2480
    %2482 = vmatmul.f32.gmra.mxu0 %v2459
    %v2483 = vpop.f32.mrf.mxu0
    %v2484 = vadd.f32 %v2452, %v2483
    %2485 = vdwg.mxu0
    %v2487 = vsel %vm435, %v2419, 0
    %v2490 = vsel %vm435, %v2420, 0
    %v2492 = vsel %vm439, %v2415, 0
    %2494 = vmatpush.msra.mxu0 0.0
    %2495 = vmatpush.msra.mxu0 0.0
    %2496 = vmatpush.msra.mxu0 0.0
    %2497 = vmatpush.msra.mxu0 0.0
    %2498 = vmatpush.msra.mxu0 0.0
    %2499 = vmatpush.msra.mxu0 0.0
    %2500 = vmatpush.msra.mxu0 0.0
    %2501 = vmatpush.msra.mxu0 0.0
    %2502 = vmatpush.msra.mxu0 0.0
    %2503 = vmatpush.msra.mxu0 0.0
    %2504 = vmatpush.msra.mxu0 0.0
    %2505 = vmatpush.msra.mxu0 0.0
    %2506 = vmatpush.msra.mxu0 0.0
    %2507 = vmatpush.msra.mxu0 0.0
    %2508 = vmatpush.msra.mxu0 0.0
    %2509 = vmatpush.msra.mxu0 %v2492
    %2510 = vmatmul.f32.gmra.mxu0 %v2487
    %v2511 = vpop.f32.mrf.mxu0
    %v2512 = vadd.f32 %v2453, %v2511
    %2513 = vmatmul.f32.gmra.mxu0 %v2490
    %v2514 = vpop.f32.mrf.mxu0
    %v2515 = vadd.f32 %v2454, %v2514
    %2516 = vdwg.mxu0
    %v2517 = vld [vmem:[%s13] sm:$0xff]
    %v2518 = vld [vmem:[%s13 + $0x8] sm:$0xff]
    %v2519 = vadd.f32 %v2481, %v2517
    %v2520 = vadd.f32 %v2484, %v2518
    %v2521 = vadd.f32 %v2512, %v2517
    %v2522 = vadd.f32 %v2515, %v2518
    %v2523 = vld [vmem:[%s16] sm:$0xf]
    %v2524 = vld [vmem:[%s14] sm:$0xff]
    %v2525 = vld [vmem:[%s14 + $0x8] sm:$0xff]
    %v2526 = vld [vmem:[%s14 + $0x10] sm:$0xff]
    %v2527 = vld [vmem:[%s14 + $0x18] sm:$0xff]
    %v2528 = vld [vmem:[%s14 + $0x20] sm:$0xff]
    %v2529 = vld [vmem:[%s14 + $0x28] sm:$0xff]
    %v2530 = vld [vmem:[%s14 + $0x30] sm:$0xff]
    %v2531 = vld [vmem:[%s14 + $0x38] sm:$0xff]
    %v2532 = vld [vmem:[%s15] sm:$0xff]
    %v2533 = vld [vmem:[%s15 + $0x8] sm:$0xff]
    %v2534 = vld [vmem:[%s15 + $0x10] sm:$0xff]
    %v2535 = vld [vmem:[%s15 + $0x18] sm:$0xff]
    %v2536 = vld [vmem:[%s15 + $0x20] sm:$0xff]
    %v2537 = vld [vmem:[%s15 + $0x28] sm:$0xff]
    %v2538 = vld [vmem:[%s15 + $0x30] sm:$0xff]
    %v2539 = vld [vmem:[%s15 + $0x38] sm:$0xff]
    %v2540 = vld [vmem:[%s15 + $0x40] sm:$0xff]
    %v2541 = vld [vmem:[%s15 + $0x48] sm:$0xff]
    %v2542 = vld [vmem:[%s15 + $0x50] sm:$0xff]
    %v2543 = vld [vmem:[%s15 + $0x58] sm:$0xff]
    %v2544 = vld [vmem:[%s15 + $0x60] sm:$0xff]
    %v2545 = vld [vmem:[%s15 + $0x68] sm:$0xff]
    %v2546 = vld [vmem:[%s15 + $0x70] sm:$0xff]
    %v2547 = vld [vmem:[%s15 + $0x78] sm:$0xff]
    %v2548 = vsel %vm208, %v2519, 0.0
    %2549 = vadd.xlane.f32.xlu0 %v2548
    %v2550 = vpop.xlane.xlu0 %2549
    %v2551 = vsel %vm208, %v2520, 0.0
    %2552 = vadd.xlane.f32.xlu0 %v2551
    %v2553 = vpop.xlane.xlu0 %2552
    %v2554 = vsel %vm208, %v2521, 0.0
    %2555 = vadd.xlane.f32.xlu0 %v2554
    %v2556 = vpop.xlane.xlu0 %2555
    %v2557 = vsel %vm208, %v2522, 0.0
    %2558 = vadd.xlane.f32.xlu0 %v2557
    %v2559 = vpop.xlane.xlu0 %2558
    %v2560 = vmul.f32 %v2550, %v218
    %v2561 = vmul.f32 %v2553, %v218
    %v2562 = vmul.f32 %v2556, %v218
    %v2563 = vmul.f32 %v2559, %v218
    %v2564 = vsub.f32 %v2519, %v2560
    %v2565 = vsub.f32 %v2520, %v2561
    %v2566 = vsub.f32 %v2521, %v2562
    %v2567 = vsub.f32 %v2522, %v2563
    %v2568 = vmul.f32 %v2564, %v2564
    %v2569 = vmul.f32 %v2565, %v2565
    %v2570 = vmul.f32 %v2566, %v2566
    %v2571 = vmul.f32 %v2567, %v2567
    %v2572 = vsel %vm208, %v2568, 0.0
    %2573 = vadd.xlane.f32.xlu0 %v2572
    %v2574 = vpop.xlane.xlu0 %2573
    %v2575 = vsel %vm208, %v2569, 0.0
    %2576 = vadd.xlane.f32.xlu0 %v2575
    %v2577 = vpop.xlane.xlu0 %2576
    %v2578 = vsel %vm208, %v2570, 0.0
    %2579 = vadd.xlane.f32.xlu0 %v2578
    %v2580 = vpop.xlane.xlu0 %2579
    %v2581 = vsel %vm208, %v2571, 0.0
    %2582 = vadd.xlane.f32.xlu0 %v2581
    %v2583 = vpop.xlane.xlu0 %2582
    %v2584 = vmul.f32 %v2574, %v218
    %v2585 = vmul.f32 %v2577, %v218
    %v2586 = vmul.f32 %v2580, %v218
    %v2587 = vmul.f32 %v2583, %v218
    %v2588 = vadd.f32 %v2584, 1e-05
    %v2589 = vadd.f32 %v2585, 1e-05
    %v2590 = vadd.f32 %v2586, 1e-05
    %v2591 = vadd.f32 %v2587, 1e-05
    %v2592 = vrsqrt.pop %v2588
    %v2593 = vmul.f32 %v2592, %v2588
    %v2594 = vmul.f32 %v2593, %v2592
    %v2595 = vmul.f32 0.5, %v2594
    %v2596 = vsub.f32 1.5, %v2595
    %v2597 = vmul.f32 %v2592, %v2596
    %vm2598 = vweird.f32 %v2588
    %vm2599 = vweird.f32 %v2592
    %vm2600 = vmor %vm2598, %vm2599
    %v2601 = vsel %vm2600, %v2592, %v2597
    %v2602 = vrsqrt.pop %v2589
    %v2603 = vmul.f32 %v2602, %v2589
    %v2604 = vmul.f32 %v2603, %v2602
    %v2605 = vmul.f32 0.5, %v2604
    %v2606 = vsub.f32 1.5, %v2605
    %v2607 = vmul.f32 %v2602, %v2606
    %vm2608 = vweird.f32 %v2589
    %vm2609 = vweird.f32 %v2602
    %vm2610 = vmor %vm2608, %vm2609
    %v2611 = vsel %vm2610, %v2602, %v2607
    %v2612 = vrsqrt.pop %v2590
    %v2613 = vmul.f32 %v2612, %v2590
    %v2614 = vmul.f32 %v2613, %v2612
    %v2615 = vmul.f32 0.5, %v2614
    %v2616 = vsub.f32 1.5, %v2615
    %v2617 = vmul.f32 %v2612, %v2616
    %vm2618 = vweird.f32 %v2590
    %vm2619 = vweird.f32 %v2612
    %vm2620 = vmor %vm2618, %vm2619
    %v2621 = vsel %vm2620, %v2612, %v2617
    %v2622 = vrsqrt.pop %v2591
    %v2623 = vmul.f32 %v2622, %v2591
    %v2624 = vmul.f32 %v2623, %v2622
    %v2625 = vmul.f32 0.5, %v2624
    %v2626 = vsub.f32 1.5, %v2625
    %v2627 = vmul.f32 %v2622, %v2626
    %vm2628 = vweird.f32 %v2591
    %vm2629 = vweird.f32 %v2622
    %vm2630 = vmor %vm2628, %vm2629
    %v2631 = vsel %vm2630, %v2622, %v2627
    %v2632 = vmul.f32 %v2564, %v2601
    %v2633 = vmul.f32 %v2565, %v2611
    %v2634 = vmul.f32 %v2566, %v2621
    %v2635 = vmul.f32 %v2567, %v2631
    %v2637 = vperm.slane %v2523, 0
    %v2639 = vmul.f32 %v2632, %v2637
    %v2640 = vmul.f32 %v2633, %v2637
    %v2641 = vmul.f32 %v2634, %v2637
    %v2642 = vmul.f32 %v2635, %v2637
    %2643 = vrot.lane.b32.xlu0 %v2637, 96
    %v2644 = vpop.permute.xlu0 %2643
    %v2646 = vadd.f32 %v2639, %v2644
    %v2647 = vadd.f32 %v2640, %v2644
    %v2648 = vadd.f32 %v2641, %v2644
    %v2649 = vadd.f32 %v2642, %v2644
    %v2650 = vperm.slane %v2523, 1
    %2651 = vrot.lane.b32.xlu0 %v2637, 64
    %v2652 = vpop.permute.xlu0 %2651
    %2653 = vrot.lane.b32.xlu0 %v2650, 64
    %v2654 = vpop.permute.xlu0 %2653
    %v2655 = vsel %vm296, %v2652, %v2654
    %v2658 = vsel %vm208, %v2646, 0
    %v2661 = vsel %vm208, %v2647, 0
    %v2664 = vsel %vm208, %v2648, 0
    %v2667 = vsel %vm208, %v2649, 0
    %2669 = vmatpush.msra.mxu0 0.0
    %2670 = vmatpush.msra.mxu0 0.0
    %2671 = vmatpush.msra.mxu0 0.0
    %2672 = vmatpush.msra.mxu0 0.0
    %2673 = vmatpush.msra.mxu0 0.0
    %2674 = vmatpush.msra.mxu0 0.0
    %2675 = vmatpush.msra.mxu0 0.0
    %2676 = vmatpush.msra.mxu0 0.0
    %2677 = vmatpush.msra.mxu0 0.0
    %2678 = vmatpush.msra.mxu0 0.0
    %2679 = vmatpush.msra.mxu0 0.0
    %2680 = vmatpush.msra.mxu0 0.0
    %2681 = vmatpush.msra.mxu0 %v2530
    %2682 = vmatpush.msra.mxu0 %v2528
    %2683 = vmatpush.msra.mxu0 %v2526
    %2684 = vmatpush.msra.mxu0 %v2524
    %2685 = vmatmul.f32.gmra.mxu0 %v2658
    %v2686 = vpop.f32.mrf.mxu0
    %v2687 = vadd.f32 %v2655, %v2686
    %2688 = vmatmul.f32.gmra.mxu0 %v2661
    %v2689 = vpop.f32.mrf.mxu0
    %v2690 = vadd.f32 %v2655, %v2689
    %2691 = vmatmul.f32.gmra.mxu0 %v2664
    %v2692 = vpop.f32.mrf.mxu0
    %v2693 = vadd.f32 %v2655, %v2692
    %2694 = vmatmul.f32.gmra.mxu0 %v2667
    %v2695 = vpop.f32.mrf.mxu0
    %v2696 = vadd.f32 %v2655, %v2695
    %2697 = vdwg.mxu0
    %2700 = vrot.lane.b32.xlu0 %v2687, 96
    %v2701 = vpop.permute.xlu0 %2700
    %2702 = vrot.lane.b32.xlu0 %v2690, 96
    %v2703 = vpop.permute.xlu0 %2702
    %v2704 = vsel %vm327, %v2687, 0
    %v2706 = vsel %vm327, %v2690, 0
    %v2708 = vsel %vm327, %v2701, 0
    %v2710 = vsel %vm327, %v2703, 0
    %2712 = vmatpush.xpose.msra.mxu0 0.0
    %2713 = vmatpush.xpose.msra.mxu0 0.0
    %2714 = vmatpush.xpose.msra.mxu0 0.0
    %2715 = vmatpush.xpose.msra.mxu0 0.0
    %2716 = vmatpush.xpose.msra.mxu0 0.0
    %2717 = vmatpush.xpose.msra.mxu0 0.0
    %2718 = vmatpush.xpose.msra.mxu0 0.0
    %2719 = vmatpush.xpose.msra.mxu0 0.0
    %2720 = vmatpush.xpose.msra.mxu0 0.0
    %2721 = vmatpush.xpose.msra.mxu0 0.0
    %2722 = vmatpush.xpose.msra.mxu0 0.0
    %2723 = vmatpush.xpose.msra.mxu0 0.0
    %2724 = vmatpush.xpose.msra.mxu0 0.0
    %2725 = vmatpush.xpose.msra.mxu0 0.0
    %2726 = vmatpush.xpose.msra.mxu0 %v2710
    %2727 = vmatpush.xpose.msra.mxu0 %v2708
    %2728 = vmatmul.f32.gmra.mxu0 %v2704
    %v2729 = vpop.f32.mrf.mxu0
    %v2730 = vadd.f32 0.0, %v2729
    %2731 = vmatmul.f32.gmra.mxu0 %v2706
    %v2732 = vpop.f32.mrf.mxu0
    %v2733 = vadd.f32 0.0, %v2732
    %2734 = vdwg.mxu0
    %2737 = vrot.lane.b32.xlu0 %v2693, 96
    %v2738 = vpop.permute.xlu0 %2737
    %2739 = vrot.lane.b32.xlu0 %v2696, 96
    %v2740 = vpop.permute.xlu0 %2739
    %v2741 = vsel %vm327, %v2693, 0
    %v2743 = vsel %vm327, %v2696, 0
    %v2745 = vsel %vm327, %v2738, 0
    %v2747 = vsel %vm327, %v2740, 0
    %2749 = vmatpush.xpose.msra.mxu0 0.0
    %2750 = vmatpush.xpose.msra.mxu0 0.0
    %2751 = vmatpush.xpose.msra.mxu0 0.0
    %2752 = vmatpush.xpose.msra.mxu0 0.0
    %2753 = vmatpush.xpose.msra.mxu0 0.0
    %2754 = vmatpush.xpose.msra.mxu0 0.0
    %2755 = vmatpush.xpose.msra.mxu0 0.0
    %2756 = vmatpush.xpose.msra.mxu0 0.0
    %2757 = vmatpush.xpose.msra.mxu0 0.0
    %2758 = vmatpush.xpose.msra.mxu0 0.0
    %2759 = vmatpush.xpose.msra.mxu0 0.0
    %2760 = vmatpush.xpose.msra.mxu0 0.0
    %2761 = vmatpush.xpose.msra.mxu0 0.0
    %2762 = vmatpush.xpose.msra.mxu0 0.0
    %2763 = vmatpush.xpose.msra.mxu0 %v2747
    %2764 = vmatpush.xpose.msra.mxu0 %v2745
    %2765 = vmatmul.f32.gmra.mxu0 %v2741
    %v2766 = vpop.f32.mrf.mxu0
    %v2767 = vadd.f32 0.0, %v2766
    %2768 = vmatmul.f32.gmra.mxu0 %v2743
    %v2769 = vpop.f32.mrf.mxu0
    %v2770 = vadd.f32 0.0, %v2769
    %2771 = vdwg.mxu0
    %v2772 = vmul.f32 %v2730, 0.35355338
    %v2773 = vmul.f32 %v2733, 0.35355338
    %v2774 = vmul.f32 %v2767, 0.35355338
    %v2775 = vmul.f32 %v2770, 0.35355338
    %v2776 = vsel %vm129, %v2772, -inf
    %2777 = vmax.xlane.f32.xlu0 %v2776
    %v2778 = vpop.xlane.xlu0 %2777
    %v2779 = vsel %vm129, %v2773, -inf
    %2780 = vmax.xlane.f32.xlu0 %v2779
    %v2781 = vpop.xlane.xlu0 %2780
    %v2782 = vsel %vm129, %v2774, -inf
    %2783 = vmax.xlane.f32.xlu0 %v2782
    %v2784 = vpop.xlane.xlu0 %2783
    %v2785 = vsel %vm129, %v2775, -inf
    %2786 = vmax.xlane.f32.xlu0 %v2785
    %v2787 = vpop.xlane.xlu0 %2786
    %v2788 = vsub.f32 %v2772, %v2778
    %v2789 = vsub.f32 %v2773, %v2781
    %v2790 = vsub.f32 %v2774, %v2784
    %v2791 = vsub.f32 %v2775, %v2787
    %v2792 = vmul.f32 %v2788, 1.442695
    %v2793 = vpow.pop %v2792
    %v2794 = vmul.f32 %v2789, 1.442695
    %v2795 = vpow.pop %v2794
    %v2796 = vmul.f32 %v2790, 1.442695
    %v2797 = vpow.pop %v2796
    %v2798 = vmul.f32 %v2791, 1.442695
    %v2799 = vpow.pop %v2798
    %v2800 = vsel %vm129, %v2793, 0.0
    %2801 = vadd.xlane.f32.xlu0 %v2800
    %v2802 = vpop.xlane.xlu0 %2801
    %v2803 = vsel %vm129, %v2795, 0.0
    %2804 = vadd.xlane.f32.xlu0 %v2803
    %v2805 = vpop.xlane.xlu0 %2804
    %v2806 = vsel %vm129, %v2797, 0.0
    %2807 = vadd.xlane.f32.xlu0 %v2806
    %v2808 = vpop.xlane.xlu0 %2807
    %v2809 = vsel %vm129, %v2799, 0.0
    %2810 = vadd.xlane.f32.xlu0 %v2809
    %v2811 = vpop.xlane.xlu0 %2810
    %v2812 = vrcp.pop %v2802
    %v2813 = vmul.f32 %v2802, %v2812
    %v2814 = vsub.f32 1.0, %v2813
    %v2815 = vmul.f32 %v2812, %v2814
    %v2816 = vadd.f32 %v2812, %v2815
    %vm2817 = vweird.f32 %v2802
    %vm2818 = vweird.f32 %v2812
    %vm2819 = vmor %vm2817, %vm2818
    %v2820 = vsel %vm2819, %v2812, %v2816
    %v2821 = vand.u32 2147483647, %v2802
    %vm2822 = vcmp.eq.f32.partialorder %v2821, 8.507059e+37
    %v2823 = vand.u32 %v2802, 2147483648
    %v2824 = vor.u32 1.1754944e-38, %v2823
    %v2825 = vsel %vm2822, %v2824, %v2820
    %v2826 = vmul.f32 %v2793, %v2825
    %v2827 = vrcp.pop %v2805
    %v2828 = vmul.f32 %v2805, %v2827
    %v2829 = vsub.f32 1.0, %v2828
    %v2830 = vmul.f32 %v2827, %v2829
    %v2831 = vadd.f32 %v2827, %v2830
    %vm2832 = vweird.f32 %v2805
    %vm2833 = vweird.f32 %v2827
    %vm2834 = vmor %vm2832, %vm2833
    %v2835 = vsel %vm2834, %v2827, %v2831
    %v2836 = vand.u32 2147483647, %v2805
    %vm2837 = vcmp.eq.f32.partialorder %v2836, 8.507059e+37
    %v2838 = vand.u32 %v2805, 2147483648
    %v2839 = vor.u32 1.1754944e-38, %v2838
    %v2840 = vsel %vm2837, %v2839, %v2835
    %v2841 = vmul.f32 %v2795, %v2840
    %v2842 = vrcp.pop %v2808
    %v2843 = vmul.f32 %v2808, %v2842
    %v2844 = vsub.f32 1.0, %v2843
    %v2845 = vmul.f32 %v2842, %v2844
    %v2846 = vadd.f32 %v2842, %v2845
    %vm2847 = vweird.f32 %v2808
    %vm2848 = vweird.f32 %v2842
    %vm2849 = vmor %vm2847, %vm2848
    %v2850 = vsel %vm2849, %v2842, %v2846
    %v2851 = vand.u32 2147483647, %v2808
    %vm2852 = vcmp.eq.f32.partialorder %v2851, 8.507059e+37
    %v2853 = vand.u32 %v2808, 2147483648
    %v2854 = vor.u32 1.1754944e-38, %v2853
    %v2855 = vsel %vm2852, %v2854, %v2850
    %v2856 = vmul.f32 %v2797, %v2855
    %v2857 = vrcp.pop %v2811
    %v2858 = vmul.f32 %v2811, %v2857
    %v2859 = vsub.f32 1.0, %v2858
    %v2860 = vmul.f32 %v2857, %v2859
    %v2861 = vadd.f32 %v2857, %v2860
    %vm2862 = vweird.f32 %v2811
    %vm2863 = vweird.f32 %v2857
    %vm2864 = vmor %vm2862, %vm2863
    %v2865 = vsel %vm2864, %v2857, %v2861
    %v2866 = vand.u32 2147483647, %v2811
    %vm2867 = vcmp.eq.f32.partialorder %v2866, 8.507059e+37
    %v2868 = vand.u32 %v2811, 2147483648
    %v2869 = vor.u32 1.1754944e-38, %v2868
    %v2870 = vsel %vm2867, %v2869, %v2865
    %v2871 = vmul.f32 %v2799, %v2870
    %2872 = vrot.lane.b32.xlu0 %v2687, 64
    %v2873 = vpop.permute.xlu0 %2872
    %2874 = vrot.lane.b32.xlu0 %v2690, 64
    %v2875 = vpop.permute.xlu0 %2874
    %v2879 = vsel %vm129, %v2826, 0
    %v2882 = vsel %vm129, %v2841, 0
    %2884 = vmatpush.msra.mxu0 0.0
    %2885 = vmatpush.msra.mxu0 0.0
    %2886 = vmatpush.msra.mxu0 0.0
    %2887 = vmatpush.msra.mxu0 0.0
    %2888 = vmatpush.msra.mxu0 0.0
    %2889 = vmatpush.msra.mxu0 0.0
    %2890 = vmatpush.msra.mxu0 0.0
    %2891 = vmatpush.msra.mxu0 0.0
    %2892 = vmatpush.msra.mxu0 0.0
    %2893 = vmatpush.msra.mxu0 0.0
    %2894 = vmatpush.msra.mxu0 0.0
    %2895 = vmatpush.msra.mxu0 0.0
    %2896 = vmatpush.msra.mxu0 0.0
    %2897 = vmatpush.msra.mxu0 0.0
    %2898 = vmatpush.msra.mxu0 %v2875
    %2899 = vmatpush.msra.mxu0 %v2873
    %2900 = vmatmul.f32.gmra.mxu0 %v2879
    %v2901 = vpop.f32.mrf.mxu0
    %v2902 = vadd.f32 0.0, %v2901
    %2903 = vmatmul.f32.gmra.mxu0 %v2882
    %v2904 = vpop.f32.mrf.mxu0
    %v2905 = vadd.f32 0.0, %v2904
    %2906 = vdwg.mxu0
    %2907 = vrot.lane.b32.xlu0 %v2693, 64
    %v2908 = vpop.permute.xlu0 %2907
    %2909 = vrot.lane.b32.xlu0 %v2696, 64
    %v2910 = vpop.permute.xlu0 %2909
    %v2914 = vsel %vm129, %v2856, 0
    %v2917 = vsel %vm129, %v2871, 0
    %2919 = vmatpush.msra.mxu0 0.0
    %2920 = vmatpush.msra.mxu0 0.0
    %2921 = vmatpush.msra.mxu0 0.0
    %2922 = vmatpush.msra.mxu0 0.0
    %2923 = vmatpush.msra.mxu0 0.0
    %2924 = vmatpush.msra.mxu0 0.0
    %2925 = vmatpush.msra.mxu0 0.0
    %2926 = vmatpush.msra.mxu0 0.0
    %2927 = vmatpush.msra.mxu0 0.0
    %2928 = vmatpush.msra.mxu0 0.0
    %2929 = vmatpush.msra.mxu0 0.0
    %2930 = vmatpush.msra.mxu0 0.0
    %2931 = vmatpush.msra.mxu0 0.0
    %2932 = vmatpush.msra.mxu0 0.0
    %2933 = vmatpush.msra.mxu0 %v2910
    %2934 = vmatpush.msra.mxu0 %v2908
    %2935 = vmatmul.f32.gmra.mxu0 %v2914
    %v2936 = vpop.f32.mrf.mxu0
    %v2937 = vadd.f32 0.0, %v2936
    %2938 = vmatmul.f32.gmra.mxu0 %v2917
    %v2939 = vpop.f32.mrf.mxu0
    %v2940 = vadd.f32 0.0, %v2939
    %2941 = vdwg.mxu0
    %2942 = vrot.lane.b32.xlu0 %v2687, 120
    %v2943 = vpop.permute.xlu0 %2942
    %2944 = vrot.lane.b32.xlu0 %v2690, 120
    %v2945 = vpop.permute.xlu0 %2944
    %2946 = vrot.lane.b32.xlu0 %v2687, 88
    %v2947 = vpop.permute.xlu0 %2946
    %2948 = vrot.lane.b32.xlu0 %v2690, 88
    %v2949 = vpop.permute.xlu0 %2948
    %v2950 = vsel %vm327, %v2943, 0
    %v2952 = vsel %vm327, %v2945, 0
    %v2954 = vsel %vm327, %v2947, 0
    %v2956 = vsel %vm327, %v2949, 0
    %2958 = vmatpush.xpose.msra.mxu0 0.0
    %2959 = vmatpush.xpose.msra.mxu0 0.0
    %2960 = vmatpush.xpose.msra.mxu0 0.0
    %2961 = vmatpush.xpose.msra.mxu0 0.0
    %2962 = vmatpush.xpose.msra.mxu0 0.0
    %2963 = vmatpush.xpose.msra.mxu0 0.0
    %2964 = vmatpush.xpose.msra.mxu0 0.0
    %2965 = vmatpush.xpose.msra.mxu0 0.0
    %2966 = vmatpush.xpose.msra.mxu0 0.0
    %2967 = vmatpush.xpose.msra.mxu0 0.0
    %2968 = vmatpush.xpose.msra.mxu0 0.0
    %2969 = vmatpush.xpose.msra.mxu0 0.0
    %2970 = vmatpush.xpose.msra.mxu0 0.0
    %2971 = vmatpush.xpose.msra.mxu0 0.0
    %2972 = vmatpush.xpose.msra.mxu0 %v2956
    %2973 = vmatpush.xpose.msra.mxu0 %v2954
    %2974 = vmatmul.f32.gmra.mxu0 %v2950
    %v2975 = vpop.f32.mrf.mxu0
    %v2976 = vadd.f32 0.0, %v2975
    %2977 = vmatmul.f32.gmra.mxu0 %v2952
    %v2978 = vpop.f32.mrf.mxu0
    %v2979 = vadd.f32 0.0, %v2978
    %2980 = vdwg.mxu0
    %2981 = vrot.lane.b32.xlu0 %v2693, 120
    %v2982 = vpop.permute.xlu0 %2981
    %2983 = vrot.lane.b32.xlu0 %v2696, 120
    %v2984 = vpop.permute.xlu0 %2983
    %2985 = vrot.lane.b32.xlu0 %v2693, 88
    %v2986 = vpop.permute.xlu0 %2985
    %2987 = vrot.lane.b32.xlu0 %v2696, 88
    %v2988 = vpop.permute.xlu0 %2987
    %v2989 = vsel %vm327, %v2982, 0
    %v2991 = vsel %vm327, %v2984, 0
    %v2993 = vsel %vm327, %v2986, 0
    %v2995 = vsel %vm327, %v2988, 0
    %2997 = vmatpush.xpose.msra.mxu0 0.0
    %2998 = vmatpush.xpose.msra.mxu0 0.0
    %2999 = vmatpush.xpose.msra.mxu0 0.0
    %3000 = vmatpush.xpose.msra.mxu0 0.0
    %3001 = vmatpush.xpose.msra.mxu0 0.0
    %3002 = vmatpush.xpose.msra.mxu0 0.0
    %3003 = vmatpush.xpose.msra.mxu0 0.0
    %3004 = vmatpush.xpose.msra.mxu0 0.0
    %3005 = vmatpush.xpose.msra.mxu0 0.0
    %3006 = vmatpush.xpose.msra.mxu0 0.0
    %3007 = vmatpush.xpose.msra.mxu0 0.0
    %3008 = vmatpush.xpose.msra.mxu0 0.0
    %3009 = vmatpush.xpose.msra.mxu0 0.0
    %3010 = vmatpush.xpose.msra.mxu0 0.0
    %3011 = vmatpush.xpose.msra.mxu0 %v2995
    %3012 = vmatpush.xpose.msra.mxu0 %v2993
    %3013 = vmatmul.f32.gmra.mxu0 %v2989
    %v3014 = vpop.f32.mrf.mxu0
    %v3015 = vadd.f32 0.0, %v3014
    %3016 = vmatmul.f32.gmra.mxu0 %v2991
    %v3017 = vpop.f32.mrf.mxu0
    %v3018 = vadd.f32 0.0, %v3017
    %3019 = vdwg.mxu0
    %v3020 = vmul.f32 %v2976, 0.35355338
    %v3021 = vmul.f32 %v2979, 0.35355338
    %v3022 = vmul.f32 %v3015, 0.35355338
    %v3023 = vmul.f32 %v3018, 0.35355338
    %v3024 = vsel %vm129, %v3020, -inf
    %3025 = vmax.xlane.f32.xlu0 %v3024
    %v3026 = vpop.xlane.xlu0 %3025
    %v3027 = vsel %vm129, %v3021, -inf
    %3028 = vmax.xlane.f32.xlu0 %v3027
    %v3029 = vpop.xlane.xlu0 %3028
    %v3030 = vsel %vm129, %v3022, -inf
    %3031 = vmax.xlane.f32.xlu0 %v3030
    %v3032 = vpop.xlane.xlu0 %3031
    %v3033 = vsel %vm129, %v3023, -inf
    %3034 = vmax.xlane.f32.xlu0 %v3033
    %v3035 = vpop.xlane.xlu0 %3034
    %v3036 = vsub.f32 %v3020, %v3026
    %v3037 = vsub.f32 %v3021, %v3029
    %v3038 = vsub.f32 %v3022, %v3032
    %v3039 = vsub.f32 %v3023, %v3035
    %v3040 = vmul.f32 %v3036, 1.442695
    %v3041 = vpow.pop %v3040
    %v3042 = vmul.f32 %v3037, 1.442695
    %v3043 = vpow.pop %v3042
    %v3044 = vmul.f32 %v3038, 1.442695
    %v3045 = vpow.pop %v3044
    %v3046 = vmul.f32 %v3039, 1.442695
    %v3047 = vpow.pop %v3046
    %v3048 = vsel %vm129, %v3041, 0.0
    %3049 = vadd.xlane.f32.xlu0 %v3048
    %v3050 = vpop.xlane.xlu0 %3049
    %v3051 = vsel %vm129, %v3043, 0.0
    %3052 = vadd.xlane.f32.xlu0 %v3051
    %v3053 = vpop.xlane.xlu0 %3052
    %v3054 = vsel %vm129, %v3045, 0.0
    %3055 = vadd.xlane.f32.xlu0 %v3054
    %v3056 = vpop.xlane.xlu0 %3055
    %v3057 = vsel %vm129, %v3047, 0.0
    %3058 = vadd.xlane.f32.xlu0 %v3057
    %v3059 = vpop.xlane.xlu0 %3058
    %v3060 = vrcp.pop %v3050
    %v3061 = vmul.f32 %v3050, %v3060
    %v3062 = vsub.f32 1.0, %v3061
    %v3063 = vmul.f32 %v3060, %v3062
    %v3064 = vadd.f32 %v3060, %v3063
    %vm3065 = vweird.f32 %v3050
    %vm3066 = vweird.f32 %v3060
    %vm3067 = vmor %vm3065, %vm3066
    %v3068 = vsel %vm3067, %v3060, %v3064
    %v3069 = vand.u32 2147483647, %v3050
    %vm3070 = vcmp.eq.f32.partialorder %v3069, 8.507059e+37
    %v3071 = vand.u32 %v3050, 2147483648
    %v3072 = vor.u32 1.1754944e-38, %v3071
    %v3073 = vsel %vm3070, %v3072, %v3068
    %v3074 = vmul.f32 %v3041, %v3073
    %v3075 = vrcp.pop %v3053
    %v3076 = vmul.f32 %v3053, %v3075
    %v3077 = vsub.f32 1.0, %v3076
    %v3078 = vmul.f32 %v3075, %v3077
    %v3079 = vadd.f32 %v3075, %v3078
    %vm3080 = vweird.f32 %v3053
    %vm3081 = vweird.f32 %v3075
    %vm3082 = vmor %vm3080, %vm3081
    %v3083 = vsel %vm3082, %v3075, %v3079
    %v3084 = vand.u32 2147483647, %v3053
    %vm3085 = vcmp.eq.f32.partialorder %v3084, 8.507059e+37
    %v3086 = vand.u32 %v3053, 2147483648
    %v3087 = vor.u32 1.1754944e-38, %v3086
    %v3088 = vsel %vm3085, %v3087, %v3083
    %v3089 = vmul.f32 %v3043, %v3088
    %v3090 = vrcp.pop %v3056
    %v3091 = vmul.f32 %v3056, %v3090
    %v3092 = vsub.f32 1.0, %v3091
    %v3093 = vmul.f32 %v3090, %v3092
    %v3094 = vadd.f32 %v3090, %v3093
    %vm3095 = vweird.f32 %v3056
    %vm3096 = vweird.f32 %v3090
    %vm3097 = vmor %vm3095, %vm3096
    %v3098 = vsel %vm3097, %v3090, %v3094
    %v3099 = vand.u32 2147483647, %v3056
    %vm3100 = vcmp.eq.f32.partialorder %v3099, 8.507059e+37
    %v3101 = vand.u32 %v3056, 2147483648
    %v3102 = vor.u32 1.1754944e-38, %v3101
    %v3103 = vsel %vm3100, %v3102, %v3098
    %v3104 = vmul.f32 %v3045, %v3103
    %v3105 = vrcp.pop %v3059
    %v3106 = vmul.f32 %v3059, %v3105
    %v3107 = vsub.f32 1.0, %v3106
    %v3108 = vmul.f32 %v3105, %v3107
    %v3109 = vadd.f32 %v3105, %v3108
    %vm3110 = vweird.f32 %v3059
    %vm3111 = vweird.f32 %v3105
    %vm3112 = vmor %vm3110, %vm3111
    %v3113 = vsel %vm3112, %v3105, %v3109
    %v3114 = vand.u32 2147483647, %v3059
    %vm3115 = vcmp.eq.f32.partialorder %v3114, 8.507059e+37
    %v3116 = vand.u32 %v3059, 2147483648
    %v3117 = vor.u32 1.1754944e-38, %v3116
    %v3118 = vsel %vm3115, %v3117, %v3113
    %v3119 = vmul.f32 %v3047, %v3118
    %3120 = vrot.lane.b32.xlu0 %v2687, 56
    %v3121 = vpop.permute.xlu0 %3120
    %3122 = vrot.lane.b32.xlu0 %v2690, 56
    %v3123 = vpop.permute.xlu0 %3122
    %v3127 = vsel %vm129, %v3074, 0
    %v3130 = vsel %vm129, %v3089, 0
    %3132 = vmatpush.msra.mxu0 0.0
    %3133 = vmatpush.msra.mxu0 0.0
    %3134 = vmatpush.msra.mxu0 0.0
    %3135 = vmatpush.msra.mxu0 0.0
    %3136 = vmatpush.msra.mxu0 0.0
    %3137 = vmatpush.msra.mxu0 0.0
    %3138 = vmatpush.msra.mxu0 0.0
    %3139 = vmatpush.msra.mxu0 0.0
    %3140 = vmatpush.msra.mxu0 0.0
    %3141 = vmatpush.msra.mxu0 0.0
    %3142 = vmatpush.msra.mxu0 0.0
    %3143 = vmatpush.msra.mxu0 0.0
    %3144 = vmatpush.msra.mxu0 0.0
    %3145 = vmatpush.msra.mxu0 0.0
    %3146 = vmatpush.msra.mxu0 %v3123
    %3147 = vmatpush.msra.mxu0 %v3121
    %3148 = vmatmul.f32.gmra.mxu0 %v3127
    %v3149 = vpop.f32.mrf.mxu0
    %v3150 = vadd.f32 0.0, %v3149
    %3151 = vmatmul.f32.gmra.mxu0 %v3130
    %v3152 = vpop.f32.mrf.mxu0
    %v3153 = vadd.f32 0.0, %v3152
    %3154 = vdwg.mxu0
    %3155 = vrot.lane.b32.xlu0 %v2693, 56
    %v3156 = vpop.permute.xlu0 %3155
    %3157 = vrot.lane.b32.xlu0 %v2696, 56
    %v3158 = vpop.permute.xlu0 %3157
    %v3162 = vsel %vm129, %v3104, 0
    %v3165 = vsel %vm129, %v3119, 0
    %3167 = vmatpush.msra.mxu0 0.0
    %3168 = vmatpush.msra.mxu0 0.0
    %3169 = vmatpush.msra.mxu0 0.0
    %3170 = vmatpush.msra.mxu0 0.0
    %3171 = vmatpush.msra.mxu0 0.0
    %3172 = vmatpush.msra.mxu0 0.0
    %3173 = vmatpush.msra.mxu0 0.0
    %3174 = vmatpush.msra.mxu0 0.0
    %3175 = vmatpush.msra.mxu0 0.0
    %3176 = vmatpush.msra.mxu0 0.0
    %3177 = vmatpush.msra.mxu0 0.0
    %3178 = vmatpush.msra.mxu0 0.0
    %3179 = vmatpush.msra.mxu0 0.0
    %3180 = vmatpush.msra.mxu0 0.0
    %3181 = vmatpush.msra.mxu0 %v3158
    %3182 = vmatpush.msra.mxu0 %v3156
    %3183 = vmatmul.f32.gmra.mxu0 %v3162
    %v3184 = vpop.f32.mrf.mxu0
    %v3185 = vadd.f32 0.0, %v3184
    %3186 = vmatmul.f32.gmra.mxu0 %v3165
    %v3187 = vpop.f32.mrf.mxu0
    %v3188 = vadd.f32 0.0, %v3187
    %3189 = vdwg.mxu0
    %3190 = vrot.lane.b32.xlu0 %v2687, 112
    %v3191 = vpop.permute.xlu0 %3190
    %3192 = vrot.lane.b32.xlu0 %v2690, 112
    %v3193 = vpop.permute.xlu0 %3192
    %3194 = vrot.lane.b32.xlu0 %v2687, 80
    %v3195 = vpop.permute.xlu0 %3194
    %3196 = vrot.lane.b32.xlu0 %v2690, 80
    %v3197 = vpop.permute.xlu0 %3196
    %v3198 = vsel %vm327, %v3191, 0
    %v3200 = vsel %vm327, %v3193, 0
    %v3202 = vsel %vm327, %v3195, 0
    %v3204 = vsel %vm327, %v3197, 0
    %3206 = vmatpush.xpose.msra.mxu0 0.0
    %3207 = vmatpush.xpose.msra.mxu0 0.0
    %3208 = vmatpush.xpose.msra.mxu0 0.0
    %3209 = vmatpush.xpose.msra.mxu0 0.0
    %3210 = vmatpush.xpose.msra.mxu0 0.0
    %3211 = vmatpush.xpose.msra.mxu0 0.0
    %3212 = vmatpush.xpose.msra.mxu0 0.0
    %3213 = vmatpush.xpose.msra.mxu0 0.0
    %3214 = vmatpush.xpose.msra.mxu0 0.0
    %3215 = vmatpush.xpose.msra.mxu0 0.0
    %3216 = vmatpush.xpose.msra.mxu0 0.0
    %3217 = vmatpush.xpose.msra.mxu0 0.0
    %3218 = vmatpush.xpose.msra.mxu0 0.0
    %3219 = vmatpush.xpose.msra.mxu0 0.0
    %3220 = vmatpush.xpose.msra.mxu0 %v3204
    %3221 = vmatpush.xpose.msra.mxu0 %v3202
    %3222 = vmatmul.f32.gmra.mxu0 %v3198
    %v3223 = vpop.f32.mrf.mxu0
    %v3224 = vadd.f32 0.0, %v3223
    %3225 = vmatmul.f32.gmra.mxu0 %v3200
    %v3226 = vpop.f32.mrf.mxu0
    %v3227 = vadd.f32 0.0, %v3226
    %3228 = vdwg.mxu0
    %3229 = vrot.lane.b32.xlu0 %v2693, 112
    %v3230 = vpop.permute.xlu0 %3229
    %3231 = vrot.lane.b32.xlu0 %v2696, 112
    %v3232 = vpop.permute.xlu0 %3231
    %3233 = vrot.lane.b32.xlu0 %v2693, 80
    %v3234 = vpop.permute.xlu0 %3233
    %3235 = vrot.lane.b32.xlu0 %v2696, 80
    %v3236 = vpop.permute.xlu0 %3235
    %v3237 = vsel %vm327, %v3230, 0
    %v3239 = vsel %vm327, %v3232, 0
    %v3241 = vsel %vm327, %v3234, 0
    %v3243 = vsel %vm327, %v3236, 0
    %3245 = vmatpush.xpose.msra.mxu0 0.0
    %3246 = vmatpush.xpose.msra.mxu0 0.0
    %3247 = vmatpush.xpose.msra.mxu0 0.0
    %3248 = vmatpush.xpose.msra.mxu0 0.0
    %3249 = vmatpush.xpose.msra.mxu0 0.0
    %3250 = vmatpush.xpose.msra.mxu0 0.0
    %3251 = vmatpush.xpose.msra.mxu0 0.0
    %3252 = vmatpush.xpose.msra.mxu0 0.0
    %3253 = vmatpush.xpose.msra.mxu0 0.0
    %3254 = vmatpush.xpose.msra.mxu0 0.0
    %3255 = vmatpush.xpose.msra.mxu0 0.0
    %3256 = vmatpush.xpose.msra.mxu0 0.0
    %3257 = vmatpush.xpose.msra.mxu0 0.0
    %3258 = vmatpush.xpose.msra.mxu0 0.0
    %3259 = vmatpush.xpose.msra.mxu0 %v3243
    %3260 = vmatpush.xpose.msra.mxu0 %v3241
    %3261 = vmatmul.f32.gmra.mxu0 %v3237
    %v3262 = vpop.f32.mrf.mxu0
    %v3263 = vadd.f32 0.0, %v3262
    %3264 = vmatmul.f32.gmra.mxu0 %v3239
    %v3265 = vpop.f32.mrf.mxu0
    %v3266 = vadd.f32 0.0, %v3265
    %3267 = vdwg.mxu0
    %v3268 = vmul.f32 %v3224, 0.35355338
    %v3269 = vmul.f32 %v3227, 0.35355338
    %v3270 = vmul.f32 %v3263, 0.35355338
    %v3271 = vmul.f32 %v3266, 0.35355338
    %v3272 = vsel %vm129, %v3268, -inf
    %3273 = vmax.xlane.f32.xlu0 %v3272
    %v3274 = vpop.xlane.xlu0 %3273
    %v3275 = vsel %vm129, %v3269, -inf
    %3276 = vmax.xlane.f32.xlu0 %v3275
    %v3277 = vpop.xlane.xlu0 %3276
    %v3278 = vsel %vm129, %v3270, -inf
    %3279 = vmax.xlane.f32.xlu0 %v3278
    %v3280 = vpop.xlane.xlu0 %3279
    %v3281 = vsel %vm129, %v3271, -inf
    %3282 = vmax.xlane.f32.xlu0 %v3281
    %v3283 = vpop.xlane.xlu0 %3282
    %v3284 = vsub.f32 %v3268, %v3274
    %v3285 = vsub.f32 %v3269, %v3277
    %v3286 = vsub.f32 %v3270, %v3280
    %v3287 = vsub.f32 %v3271, %v3283
    %v3288 = vmul.f32 %v3284, 1.442695
    %v3289 = vpow.pop %v3288
    %v3290 = vmul.f32 %v3285, 1.442695
    %v3291 = vpow.pop %v3290
    %v3292 = vmul.f32 %v3286, 1.442695
    %v3293 = vpow.pop %v3292
    %v3294 = vmul.f32 %v3287, 1.442695
    %v3295 = vpow.pop %v3294
    %v3296 = vsel %vm129, %v3289, 0.0
    %3297 = vadd.xlane.f32.xlu0 %v3296
    %v3298 = vpop.xlane.xlu0 %3297
    %v3299 = vsel %vm129, %v3291, 0.0
    %3300 = vadd.xlane.f32.xlu0 %v3299
    %v3301 = vpop.xlane.xlu0 %3300
    %v3302 = vsel %vm129, %v3293, 0.0
    %3303 = vadd.xlane.f32.xlu0 %v3302
    %v3304 = vpop.xlane.xlu0 %3303
    %v3305 = vsel %vm129, %v3295, 0.0
    %3306 = vadd.xlane.f32.xlu0 %v3305
    %v3307 = vpop.xlane.xlu0 %3306
    %v3308 = vrcp.pop %v3298
    %v3309 = vmul.f32 %v3298, %v3308
    %v3310 = vsub.f32 1.0, %v3309
    %v3311 = vmul.f32 %v3308, %v3310
    %v3312 = vadd.f32 %v3308, %v3311
    %vm3313 = vweird.f32 %v3298
    %vm3314 = vweird.f32 %v3308
    %vm3315 = vmor %vm3313, %vm3314
    %v3316 = vsel %vm3315, %v3308, %v3312
    %v3317 = vand.u32 2147483647, %v3298
    %vm3318 = vcmp.eq.f32.partialorder %v3317, 8.507059e+37
    %v3319 = vand.u32 %v3298, 2147483648
    %v3320 = vor.u32 1.1754944e-38, %v3319
    %v3321 = vsel %vm3318, %v3320, %v3316
    %v3322 = vmul.f32 %v3289, %v3321
    %v3323 = vrcp.pop %v3301
    %v3324 = vmul.f32 %v3301, %v3323
    %v3325 = vsub.f32 1.0, %v3324
    %v3326 = vmul.f32 %v3323, %v3325
    %v3327 = vadd.f32 %v3323, %v3326
    %vm3328 = vweird.f32 %v3301
    %vm3329 = vweird.f32 %v3323
    %vm3330 = vmor %vm3328, %vm3329
    %v3331 = vsel %vm3330, %v3323, %v3327
    %v3332 = vand.u32 2147483647, %v3301
    %vm3333 = vcmp.eq.f32.partialorder %v3332, 8.507059e+37
    %v3334 = vand.u32 %v3301, 2147483648
    %v3335 = vor.u32 1.1754944e-38, %v3334
    %v3336 = vsel %vm3333, %v3335, %v3331
    %v3337 = vmul.f32 %v3291, %v3336
    %v3338 = vrcp.pop %v3304
    %v3339 = vmul.f32 %v3304, %v3338
    %v3340 = vsub.f32 1.0, %v3339
    %v3341 = vmul.f32 %v3338, %v3340
    %v3342 = vadd.f32 %v3338, %v3341
    %vm3343 = vweird.f32 %v3304
    %vm3344 = vweird.f32 %v3338
    %vm3345 = vmor %vm3343, %vm3344
    %v3346 = vsel %vm3345, %v3338, %v3342
    %v3347 = vand.u32 2147483647, %v3304
    %vm3348 = vcmp.eq.f32.partialorder %v3347, 8.507059e+37
    %v3349 = vand.u32 %v3304, 2147483648
    %v3350 = vor.u32 1.1754944e-38, %v3349
    %v3351 = vsel %vm3348, %v3350, %v3346
    %v3352 = vmul.f32 %v3293, %v3351
    %v3353 = vrcp.pop %v3307
    %v3354 = vmul.f32 %v3307, %v3353
    %v3355 = vsub.f32 1.0, %v3354
    %v3356 = vmul.f32 %v3353, %v3355
    %v3357 = vadd.f32 %v3353, %v3356
    %vm3358 = vweird.f32 %v3307
    %vm3359 = vweird.f32 %v3353
    %vm3360 = vmor %vm3358, %vm3359
    %v3361 = vsel %vm3360, %v3353, %v3357
    %v3362 = vand.u32 2147483647, %v3307
    %vm3363 = vcmp.eq.f32.partialorder %v3362, 8.507059e+37
    %v3364 = vand.u32 %v3307, 2147483648
    %v3365 = vor.u32 1.1754944e-38, %v3364
    %v3366 = vsel %vm3363, %v3365, %v3361
    %v3367 = vmul.f32 %v3295, %v3366
    %3368 = vrot.lane.b32.xlu0 %v2687, 48
    %v3369 = vpop.permute.xlu0 %3368
    %3370 = vrot.lane.b32.xlu0 %v2690, 48
    %v3371 = vpop.permute.xlu0 %3370
    %v3375 = vsel %vm129, %v3322, 0
    %v3378 = vsel %vm129, %v3337, 0
    %3380 = vmatpush.msra.mxu0 0.0
    %3381 = vmatpush.msra.mxu0 0.0
    %3382 = vmatpush.msra.mxu0 0.0
    %3383 = vmatpush.msra.mxu0 0.0
    %3384 = vmatpush.msra.mxu0 0.0
    %3385 = vmatpush.msra.mxu0 0.0
    %3386 = vmatpush.msra.mxu0 0.0
    %3387 = vmatpush.msra.mxu0 0.0
    %3388 = vmatpush.msra.mxu0 0.0
    %3389 = vmatpush.msra.mxu0 0.0
    %3390 = vmatpush.msra.mxu0 0.0
    %3391 = vmatpush.msra.mxu0 0.0
    %3392 = vmatpush.msra.mxu0 0.0
    %3393 = vmatpush.msra.mxu0 0.0
    %3394 = vmatpush.msra.mxu0 %v3371
    %3395 = vmatpush.msra.mxu0 %v3369
    %3396 = vmatmul.f32.gmra.mxu0 %v3375
    %v3397 = vpop.f32.mrf.mxu0
    %v3398 = vadd.f32 0.0, %v3397
    %3399 = vmatmul.f32.gmra.mxu0 %v3378
    %v3400 = vpop.f32.mrf.mxu0
    %v3401 = vadd.f32 0.0, %v3400
    %3402 = vdwg.mxu0
    %3403 = vrot.lane.b32.xlu0 %v2693, 48
    %v3404 = vpop.permute.xlu0 %3403
    %3405 = vrot.lane.b32.xlu0 %v2696, 48
    %v3406 = vpop.permute.xlu0 %3405
    %v3410 = vsel %vm129, %v3352, 0
    %v3413 = vsel %vm129, %v3367, 0
    %3415 = vmatpush.msra.mxu0 0.0
    %3416 = vmatpush.msra.mxu0 0.0
    %3417 = vmatpush.msra.mxu0 0.0
    %3418 = vmatpush.msra.mxu0 0.0
    %3419 = vmatpush.msra.mxu0 0.0
    %3420 = vmatpush.msra.mxu0 0.0
    %3421 = vmatpush.msra.mxu0 0.0
    %3422 = vmatpush.msra.mxu0 0.0
    %3423 = vmatpush.msra.mxu0 0.0
    %3424 = vmatpush.msra.mxu0 0.0
    %3425 = vmatpush.msra.mxu0 0.0
    %3426 = vmatpush.msra.mxu0 0.0
    %3427 = vmatpush.msra.mxu0 0.0
    %3428 = vmatpush.msra.mxu0 0.0
    %3429 = vmatpush.msra.mxu0 %v3406
    %3430 = vmatpush.msra.mxu0 %v3404
    %3431 = vmatmul.f32.gmra.mxu0 %v3410
    %v3432 = vpop.f32.mrf.mxu0
    %v3433 = vadd.f32 0.0, %v3432
    %3434 = vmatmul.f32.gmra.mxu0 %v3413
    %v3435 = vpop.f32.mrf.mxu0
    %v3436 = vadd.f32 0.0, %v3435
    %3437 = vdwg.mxu0
    %3438 = vrot.lane.b32.xlu0 %v2687, 104
    %v3439 = vpop.permute.xlu0 %3438
    %3440 = vrot.lane.b32.xlu0 %v2690, 104
    %v3441 = vpop.permute.xlu0 %3440
    %3442 = vrot.lane.b32.xlu0 %v2687, 72
    %v3443 = vpop.permute.xlu0 %3442
    %3444 = vrot.lane.b32.xlu0 %v2690, 72
    %v3445 = vpop.permute.xlu0 %3444
    %v3446 = vsel %vm327, %v3439, 0
    %v3448 = vsel %vm327, %v3441, 0
    %v3450 = vsel %vm327, %v3443, 0
    %v3452 = vsel %vm327, %v3445, 0
    %3454 = vmatpush.xpose.msra.mxu0 0.0
    %3455 = vmatpush.xpose.msra.mxu0 0.0
    %3456 = vmatpush.xpose.msra.mxu0 0.0
    %3457 = vmatpush.xpose.msra.mxu0 0.0
    %3458 = vmatpush.xpose.msra.mxu0 0.0
    %3459 = vmatpush.xpose.msra.mxu0 0.0
    %3460 = vmatpush.xpose.msra.mxu0 0.0
    %3461 = vmatpush.xpose.msra.mxu0 0.0
    %3462 = vmatpush.xpose.msra.mxu0 0.0
    %3463 = vmatpush.xpose.msra.mxu0 0.0
    %3464 = vmatpush.xpose.msra.mxu0 0.0
    %3465 = vmatpush.xpose.msra.mxu0 0.0
    %3466 = vmatpush.xpose.msra.mxu0 0.0
    %3467 = vmatpush.xpose.msra.mxu0 0.0
    %3468 = vmatpush.xpose.msra.mxu0 %v3452
    %3469 = vmatpush.xpose.msra.mxu0 %v3450
    %3470 = vmatmul.f32.gmra.mxu0 %v3446
    %v3471 = vpop.f32.mrf.mxu0
    %v3472 = vadd.f32 0.0, %v3471
    %3473 = vmatmul.f32.gmra.mxu0 %v3448
    %v3474 = vpop.f32.mrf.mxu0
    %v3475 = vadd.f32 0.0, %v3474
    %3476 = vdwg.mxu0
    %3477 = vrot.lane.b32.xlu0 %v2693, 104
    %v3478 = vpop.permute.xlu0 %3477
    %3479 = vrot.lane.b32.xlu0 %v2696, 104
    %v3480 = vpop.permute.xlu0 %3479
    %3481 = vrot.lane.b32.xlu0 %v2693, 72
    %v3482 = vpop.permute.xlu0 %3481
    %3483 = vrot.lane.b32.xlu0 %v2696, 72
    %v3484 = vpop.permute.xlu0 %3483
    %v3485 = vsel %vm327, %v3478, 0
    %v3487 = vsel %vm327, %v3480, 0
    %v3489 = vsel %vm327, %v3482, 0
    %v3491 = vsel %vm327, %v3484, 0
    %3493 = vmatpush.xpose.msra.mxu0 0.0
    %3494 = vmatpush.xpose.msra.mxu0 0.0
    %3495 = vmatpush.xpose.msra.mxu0 0.0
    %3496 = vmatpush.xpose.msra.mxu0 0.0
    %3497 = vmatpush.xpose.msra.mxu0 0.0
    %3498 = vmatpush.xpose.msra.mxu0 0.0
    %3499 = vmatpush.xpose.msra.mxu0 0.0
    %3500 = vmatpush.xpose.msra.mxu0 0.0
    %3501 = vmatpush.xpose.msra.mxu0 0.0
    %3502 = vmatpush.xpose.msra.mxu0 0.0
    %3503 = vmatpush.xpose.msra.mxu0 0.0
    %3504 = vmatpush.xpose.msra.mxu0 0.0
    %3505 = vmatpush.xpose.msra.mxu0 0.0
    %3506 = vmatpush.xpose.msra.mxu0 0.0
    %3507 = vmatpush.xpose.msra.mxu0 %v3491
    %3508 = vmatpush.xpose.msra.mxu0 %v3489
    %3509 = vmatmul.f32.gmra.mxu0 %v3485
    %v3510 = vpop.f32.mrf.mxu0
    %v3511 = vadd.f32 0.0, %v3510
    %3512 = vmatmul.f32.gmra.mxu0 %v3487
    %v3513 = vpop.f32.mrf.mxu0
    %v3514 = vadd.f32 0.0, %v3513
    %3515 = vdwg.mxu0
    %v3516 = vmul.f32 %v3472, 0.35355338
    %v3517 = vmul.f32 %v3475, 0.35355338
    %v3518 = vmul.f32 %v3511, 0.35355338
    %v3519 = vmul.f32 %v3514, 0.35355338
    %v3520 = vsel %vm129, %v3516, -inf
    %3521 = vmax.xlane.f32.xlu0 %v3520
    %v3522 = vpop.xlane.xlu0 %3521
    %v3523 = vsel %vm129, %v3517, -inf
    %3524 = vmax.xlane.f32.xlu0 %v3523
    %v3525 = vpop.xlane.xlu0 %3524
    %v3526 = vsel %vm129, %v3518, -inf
    %3527 = vmax.xlane.f32.xlu0 %v3526
    %v3528 = vpop.xlane.xlu0 %3527
    %v3529 = vsel %vm129, %v3519, -inf
    %3530 = vmax.xlane.f32.xlu0 %v3529
    %v3531 = vpop.xlane.xlu0 %3530
    %v3532 = vsub.f32 %v3516, %v3522
    %v3533 = vsub.f32 %v3517, %v3525
    %v3534 = vsub.f32 %v3518, %v3528
    %v3535 = vsub.f32 %v3519, %v3531
    %v3536 = vmul.f32 %v3532, 1.442695
    %v3537 = vpow.pop %v3536
    %v3538 = vmul.f32 %v3533, 1.442695
    %v3539 = vpow.pop %v3538
    %v3540 = vmul.f32 %v3534, 1.442695
    %v3541 = vpow.pop %v3540
    %v3542 = vmul.f32 %v3535, 1.442695
    %v3543 = vpow.pop %v3542
    %v3544 = vsel %vm129, %v3537, 0.0
    %3545 = vadd.xlane.f32.xlu0 %v3544
    %v3546 = vpop.xlane.xlu0 %3545
    %v3547 = vsel %vm129, %v3539, 0.0
    %3548 = vadd.xlane.f32.xlu0 %v3547
    %v3549 = vpop.xlane.xlu0 %3548
    %v3550 = vsel %vm129, %v3541, 0.0
    %3551 = vadd.xlane.f32.xlu0 %v3550
    %v3552 = vpop.xlane.xlu0 %3551
    %v3553 = vsel %vm129, %v3543, 0.0
    %3554 = vadd.xlane.f32.xlu0 %v3553
    %v3555 = vpop.xlane.xlu0 %3554
    %v3556 = vrcp.pop %v3546
    %v3557 = vmul.f32 %v3546, %v3556
    %v3558 = vsub.f32 1.0, %v3557
    %v3559 = vmul.f32 %v3556, %v3558
    %v3560 = vadd.f32 %v3556, %v3559
    %vm3561 = vweird.f32 %v3546
    %vm3562 = vweird.f32 %v3556
    %vm3563 = vmor %vm3561, %vm3562
    %v3564 = vsel %vm3563, %v3556, %v3560
    %v3565 = vand.u32 2147483647, %v3546
    %vm3566 = vcmp.eq.f32.partialorder %v3565, 8.507059e+37
    %v3567 = vand.u32 %v3546, 2147483648
    %v3568 = vor.u32 1.1754944e-38, %v3567
    %v3569 = vsel %vm3566, %v3568, %v3564
    %v3570 = vmul.f32 %v3537, %v3569
    %v3571 = vrcp.pop %v3549
    %v3572 = vmul.f32 %v3549, %v3571
    %v3573 = vsub.f32 1.0, %v3572
    %v3574 = vmul.f32 %v3571, %v3573
    %v3575 = vadd.f32 %v3571, %v3574
    %vm3576 = vweird.f32 %v3549
    %vm3577 = vweird.f32 %v3571
    %vm3578 = vmor %vm3576, %vm3577
    %v3579 = vsel %vm3578, %v3571, %v3575
    %v3580 = vand.u32 2147483647, %v3549
    %vm3581 = vcmp.eq.f32.partialorder %v3580, 8.507059e+37
    %v3582 = vand.u32 %v3549, 2147483648
    %v3583 = vor.u32 1.1754944e-38, %v3582
    %v3584 = vsel %vm3581, %v3583, %v3579
    %v3585 = vmul.f32 %v3539, %v3584
    %v3586 = vrcp.pop %v3552
    %v3587 = vmul.f32 %v3552, %v3586
    %v3588 = vsub.f32 1.0, %v3587
    %v3589 = vmul.f32 %v3586, %v3588
    %v3590 = vadd.f32 %v3586, %v3589
    %vm3591 = vweird.f32 %v3552
    %vm3592 = vweird.f32 %v3586
    %vm3593 = vmor %vm3591, %vm3592
    %v3594 = vsel %vm3593, %v3586, %v3590
    %v3595 = vand.u32 2147483647, %v3552
    %vm3596 = vcmp.eq.f32.partialorder %v3595, 8.507059e+37
    %v3597 = vand.u32 %v3552, 2147483648
    %v3598 = vor.u32 1.1754944e-38, %v3597
    %v3599 = vsel %vm3596, %v3598, %v3594
    %v3600 = vmul.f32 %v3541, %v3599
    %v3601 = vrcp.pop %v3555
    %v3602 = vmul.f32 %v3555, %v3601
    %v3603 = vsub.f32 1.0, %v3602
    %v3604 = vmul.f32 %v3601, %v3603
    %v3605 = vadd.f32 %v3601, %v3604
    %vm3606 = vweird.f32 %v3555
    %vm3607 = vweird.f32 %v3601
    %vm3608 = vmor %vm3606, %vm3607
    %v3609 = vsel %vm3608, %v3601, %v3605
    %v3610 = vand.u32 2147483647, %v3555
    %vm3611 = vcmp.eq.f32.partialorder %v3610, 8.507059e+37
    %v3612 = vand.u32 %v3555, 2147483648
    %v3613 = vor.u32 1.1754944e-38, %v3612
    %v3614 = vsel %vm3611, %v3613, %v3609
    %v3615 = vmul.f32 %v3543, %v3614
    %3616 = vrot.lane.b32.xlu0 %v2687, 40
    %v3617 = vpop.permute.xlu0 %3616
    %3618 = vrot.lane.b32.xlu0 %v2690, 40
    %v3619 = vpop.permute.xlu0 %3618
    %v3623 = vsel %vm129, %v3570, 0
    %v3626 = vsel %vm129, %v3585, 0
    %3628 = vmatpush.msra.mxu0 0.0
    %3629 = vmatpush.msra.mxu0 0.0
    %3630 = vmatpush.msra.mxu0 0.0
    %3631 = vmatpush.msra.mxu0 0.0
    %3632 = vmatpush.msra.mxu0 0.0
    %3633 = vmatpush.msra.mxu0 0.0
    %3634 = vmatpush.msra.mxu0 0.0
    %3635 = vmatpush.msra.mxu0 0.0
    %3636 = vmatpush.msra.mxu0 0.0
    %3637 = vmatpush.msra.mxu0 0.0
    %3638 = vmatpush.msra.mxu0 0.0
    %3639 = vmatpush.msra.mxu0 0.0
    %3640 = vmatpush.msra.mxu0 0.0
    %3641 = vmatpush.msra.mxu0 0.0
    %3642 = vmatpush.msra.mxu0 %v3619
    %3643 = vmatpush.msra.mxu0 %v3617
    %3644 = vmatmul.f32.gmra.mxu0 %v3623
    %v3645 = vpop.f32.mrf.mxu0
    %v3646 = vadd.f32 0.0, %v3645
    %3647 = vmatmul.f32.gmra.mxu0 %v3626
    %v3648 = vpop.f32.mrf.mxu0
    %v3649 = vadd.f32 0.0, %v3648
    %3650 = vdwg.mxu0
    %3651 = vrot.lane.b32.xlu0 %v2693, 40
    %v3652 = vpop.permute.xlu0 %3651
    %3653 = vrot.lane.b32.xlu0 %v2696, 40
    %v3654 = vpop.permute.xlu0 %3653
    %v3658 = vsel %vm129, %v3600, 0
    %v3661 = vsel %vm129, %v3615, 0
    %3663 = vmatpush.msra.mxu0 0.0
    %3664 = vmatpush.msra.mxu0 0.0
    %3665 = vmatpush.msra.mxu0 0.0
    %3666 = vmatpush.msra.mxu0 0.0
    %3667 = vmatpush.msra.mxu0 0.0
    %3668 = vmatpush.msra.mxu0 0.0
    %3669 = vmatpush.msra.mxu0 0.0
    %3670 = vmatpush.msra.mxu0 0.0
    %3671 = vmatpush.msra.mxu0 0.0
    %3672 = vmatpush.msra.mxu0 0.0
    %3673 = vmatpush.msra.mxu0 0.0
    %3674 = vmatpush.msra.mxu0 0.0
    %3675 = vmatpush.msra.mxu0 0.0
    %3676 = vmatpush.msra.mxu0 0.0
    %3677 = vmatpush.msra.mxu0 %v3654
    %3678 = vmatpush.msra.mxu0 %v3652
    %3679 = vmatmul.f32.gmra.mxu0 %v3658
    %v3680 = vpop.f32.mrf.mxu0
    %v3681 = vadd.f32 0.0, %v3680
    %3682 = vmatmul.f32.gmra.mxu0 %v3661
    %v3683 = vpop.f32.mrf.mxu0
    %v3684 = vadd.f32 0.0, %v3683
    %3685 = vdwg.mxu0
    %3690 = vrot.lane.b32.xlu0 %v3150, 8
    %v3691 = vpop.permute.xlu0 %3690
    %3692 = vrot.lane.b32.xlu0 %v3153, 8
    %v3693 = vpop.permute.xlu0 %3692
    %3694 = vrot.lane.b32.xlu0 %v3185, 8
    %v3695 = vpop.permute.xlu0 %3694
    %3696 = vrot.lane.b32.xlu0 %v3188, 8
    %v3697 = vpop.permute.xlu0 %3696
    %3706 = vrot.lane.b32.xlu0 %v3398, 16
    %v3707 = vpop.permute.xlu0 %3706
    %3708 = vrot.lane.b32.xlu0 %v3401, 16
    %v3709 = vpop.permute.xlu0 %3708
    %3710 = vrot.lane.b32.xlu0 %v3433, 16
    %v3711 = vpop.permute.xlu0 %3710
    %3712 = vrot.lane.b32.xlu0 %v3436, 16
    %v3713 = vpop.permute.xlu0 %3712
    %3722 = vrot.lane.b32.xlu0 %v3646, 24
    %v3723 = vpop.permute.xlu0 %3722
    %3724 = vrot.lane.b32.xlu0 %v3649, 24
    %v3725 = vpop.permute.xlu0 %3724
    %3726 = vrot.lane.b32.xlu0 %v3681, 24
    %v3727 = vpop.permute.xlu0 %3726
    %3728 = vrot.lane.b32.xlu0 %v3684, 24
    %v3729 = vpop.permute.xlu0 %3728
    %v3734 = vsel %vm327, %v2902, %v3691
    %v3735 = vsel %vm327, %v2905, %v3693
    %v3736 = vsel %vm327, %v2937, %v3695
    %v3737 = vsel %vm327, %v2940, %v3697
    %v3738 = vsel %vm129, %v3734, %v3707
    %v3739 = vsel %vm129, %v3735, %v3709
    %v3740 = vsel %vm129, %v3736, %v3711
    %v3741 = vsel %vm129, %v3737, %v3713
    %v3742 = vsel %vm1043, %v3738, %v3723
    %v3743 = vsel %vm1043, %v3739, %v3725
    %v3744 = vsel %vm1043, %v3740, %v3727
    %v3745 = vsel %vm1043, %v3741, %v3729
    %3750 = vrot.lane.b32.xlu0 %v2524, 32
    %v3751 = vpop.permute.xlu0 %3750
    %3752 = vrot.lane.b32.xlu0 %v2526, 32
    %v3753 = vpop.permute.xlu0 %3752
    %3754 = vrot.lane.b32.xlu0 %v2528, 32
    %v3755 = vpop.permute.xlu0 %3754
    %3756 = vrot.lane.b32.xlu0 %v2530, 32
    %v3757 = vpop.permute.xlu0 %3756
    %v3763 = vsel %vm208, %v3742, 0
    %v3766 = vsel %vm208, %v3743, 0
    %v3769 = vsel %vm208, %v3744, 0
    %v3772 = vsel %vm208, %v3745, 0
    %3774 = vmatpush.msra.mxu0 0.0
    %3775 = vmatpush.msra.mxu0 0.0
    %3776 = vmatpush.msra.mxu0 0.0
    %3777 = vmatpush.msra.mxu0 0.0
    %3778 = vmatpush.msra.mxu0 0.0
    %3779 = vmatpush.msra.mxu0 0.0
    %3780 = vmatpush.msra.mxu0 0.0
    %3781 = vmatpush.msra.mxu0 0.0
    %3782 = vmatpush.msra.mxu0 0.0
    %3783 = vmatpush.msra.mxu0 0.0
    %3784 = vmatpush.msra.mxu0 0.0
    %3785 = vmatpush.msra.mxu0 0.0
    %3786 = vmatpush.msra.mxu0 %v3757
    %3787 = vmatpush.msra.mxu0 %v3755
    %3788 = vmatpush.msra.mxu0 %v3753
    %3789 = vmatpush.msra.mxu0 %v3751
    %3790 = vmatmul.f32.gmra.mxu0 %v3763
    %v3791 = vpop.f32.mrf.mxu0
    %v3792 = vadd.f32 0.0, %v3791
    %3793 = vmatmul.f32.gmra.mxu0 %v3766
    %v3794 = vpop.f32.mrf.mxu0
    %v3795 = vadd.f32 0.0, %v3794
    %3796 = vmatmul.f32.gmra.mxu0 %v3769
    %v3797 = vpop.f32.mrf.mxu0
    %v3798 = vadd.f32 0.0, %v3797
    %3799 = vmatmul.f32.gmra.mxu0 %v3772
    %v3800 = vpop.f32.mrf.mxu0
    %v3801 = vadd.f32 0.0, %v3800
    %3802 = vdwg.mxu0
    %v3803 = vadd.f32 %v2519, %v3792
    %v3804 = vadd.f32 %v2520, %v3795
    %v3805 = vadd.f32 %v2521, %v3798
    %v3806 = vadd.f32 %v2522, %v3801
    %3807 = vrot.lane.b32.xlu0 %v2523, 96
    %v3808 = vpop.permute.xlu0 %3807
    %v3809 = vrot.slane %v3808, 1
    %v3810 = vperm.slane %v3809, 0
    %v3812 = vadd.f32 %v3803, %v3810
    %v3813 = vadd.f32 %v3804, %v3810
    %v3814 = vadd.f32 %v3805, %v3810
    %v3815 = vadd.f32 %v3806, %v3810
    %v3816 = vsel %vm208, %v3812, 0.0
    %3817 = vadd.xlane.f32.xlu0 %v3816
    %v3818 = vpop.xlane.xlu0 %3817
    %v3819 = vsel %vm208, %v3813, 0.0
    %3820 = vadd.xlane.f32.xlu0 %v3819
    %v3821 = vpop.xlane.xlu0 %3820
    %v3822 = vsel %vm208, %v3814, 0.0
    %3823 = vadd.xlane.f32.xlu0 %v3822
    %v3824 = vpop.xlane.xlu0 %3823
    %v3825 = vsel %vm208, %v3815, 0.0
    %3826 = vadd.xlane.f32.xlu0 %v3825
    %v3827 = vpop.xlane.xlu0 %3826
    %v3828 = vmul.f32 %v3818, %v218
    %v3829 = vmul.f32 %v3821, %v218
    %v3830 = vmul.f32 %v3824, %v218
    %v3831 = vmul.f32 %v3827, %v218
    %v3832 = vsub.f32 %v3812, %v3828
    %v3833 = vsub.f32 %v3813, %v3829
    %v3834 = vsub.f32 %v3814, %v3830
    %v3835 = vsub.f32 %v3815, %v3831
    %v3836 = vmul.f32 %v3832, %v3832
    %v3837 = vmul.f32 %v3833, %v3833
    %v3838 = vmul.f32 %v3834, %v3834
    %v3839 = vmul.f32 %v3835, %v3835
    %v3840 = vsel %vm208, %v3836, 0.0
    %3841 = vadd.xlane.f32.xlu0 %v3840
    %v3842 = vpop.xlane.xlu0 %3841
    %v3843 = vsel %vm208, %v3837, 0.0
    %3844 = vadd.xlane.f32.xlu0 %v3843
    %v3845 = vpop.xlane.xlu0 %3844
    %v3846 = vsel %vm208, %v3838, 0.0
    %3847 = vadd.xlane.f32.xlu0 %v3846
    %v3848 = vpop.xlane.xlu0 %3847
    %v3849 = vsel %vm208, %v3839, 0.0
    %3850 = vadd.xlane.f32.xlu0 %v3849
    %v3851 = vpop.xlane.xlu0 %3850
    %v3852 = vmul.f32 %v3842, %v218
    %v3853 = vmul.f32 %v3845, %v218
    %v3854 = vmul.f32 %v3848, %v218
    %v3855 = vmul.f32 %v3851, %v218
    %v3856 = vadd.f32 %v3852, 1e-05
    %v3857 = vadd.f32 %v3853, 1e-05
    %v3858 = vadd.f32 %v3854, 1e-05
    %v3859 = vadd.f32 %v3855, 1e-05
    %v3860 = vrsqrt.pop %v3856
    %v3861 = vmul.f32 %v3860, %v3856
    %v3862 = vmul.f32 %v3861, %v3860
    %v3863 = vmul.f32 0.5, %v3862
    %v3864 = vsub.f32 1.5, %v3863
    %v3865 = vmul.f32 %v3860, %v3864
    %vm3866 = vweird.f32 %v3856
    %vm3867 = vweird.f32 %v3860
    %vm3868 = vmor %vm3866, %vm3867
    %v3869 = vsel %vm3868, %v3860, %v3865
    %v3870 = vrsqrt.pop %v3857
    %v3871 = vmul.f32 %v3870, %v3857
    %v3872 = vmul.f32 %v3871, %v3870
    %v3873 = vmul.f32 0.5, %v3872
    %v3874 = vsub.f32 1.5, %v3873
    %v3875 = vmul.f32 %v3870, %v3874
    %vm3876 = vweird.f32 %v3857
    %vm3877 = vweird.f32 %v3870
    %vm3878 = vmor %vm3876, %vm3877
    %v3879 = vsel %vm3878, %v3870, %v3875
    %v3880 = vrsqrt.pop %v3858
    %v3881 = vmul.f32 %v3880, %v3858
    %v3882 = vmul.f32 %v3881, %v3880
    %v3883 = vmul.f32 0.5, %v3882
    %v3884 = vsub.f32 1.5, %v3883
    %v3885 = vmul.f32 %v3880, %v3884
    %vm3886 = vweird.f32 %v3858
    %vm3887 = vweird.f32 %v3880
    %vm3888 = vmor %vm3886, %vm3887
    %v3889 = vsel %vm3888, %v3880, %v3885
    %v3890 = vrsqrt.pop %v3859
    %v3891 = vmul.f32 %v3890, %v3859
    %v3892 = vmul.f32 %v3891, %v3890
    %v3893 = vmul.f32 0.5, %v3892
    %v3894 = vsub.f32 1.5, %v3893
    %v3895 = vmul.f32 %v3890, %v3894
    %vm3896 = vweird.f32 %v3859
    %vm3897 = vweird.f32 %v3890
    %vm3898 = vmor %vm3896, %vm3897
    %v3899 = vsel %vm3898, %v3890, %v3895
    %v3900 = vmul.f32 %v3832, %v3869
    %v3901 = vmul.f32 %v3833, %v3879
    %v3902 = vmul.f32 %v3834, %v3889
    %v3903 = vmul.f32 %v3835, %v3899
    %3904 = vrot.lane.b32.xlu0 %v2523, 64
    %v3905 = vpop.permute.xlu0 %3904
    %v3906 = vrot.slane %v3905, 1
    %v3907 = vperm.slane %v3906, 0
    %v3909 = vmul.f32 %v3900, %v3907
    %v3910 = vmul.f32 %v3901, %v3907
    %v3911 = vmul.f32 %v3902, %v3907
    %v3912 = vmul.f32 %v3903, %v3907
    %3913 = vrot.lane.b32.xlu0 %v2523, 32
    %v3914 = vpop.permute.xlu0 %3913
    %v3915 = vrot.slane %v3914, 1
    %v3916 = vperm.slane %v3915, 0
    %v3918 = vadd.f32 %v3909, %v3916
    %v3919 = vadd.f32 %v3910, %v3916
    %v3920 = vadd.f32 %v3911, %v3916
    %v3921 = vadd.f32 %v3912, %v3916
    %v3922 = vrot.slane %v2523, 2
    %v3923 = vperm.slane %v3922, 0
    %v3926 = vsel %vm208, %v3918, 0
    %v3929 = vsel %vm208, %v3919, 0
    %v3932 = vsel %vm208, %v3920, 0
    %v3935 = vsel %vm208, %v3921, 0
    %3937 = vmatpush.msra.mxu0 0.0
    %3938 = vmatpush.msra.mxu0 0.0
    %3939 = vmatpush.msra.mxu0 0.0
    %3940 = vmatpush.msra.mxu0 0.0
    %3941 = vmatpush.msra.mxu0 0.0
    %3942 = vmatpush.msra.mxu0 0.0
    %3943 = vmatpush.msra.mxu0 0.0
    %3944 = vmatpush.msra.mxu0 0.0
    %3945 = vmatpush.msra.mxu0 0.0
    %3946 = vmatpush.msra.mxu0 0.0
    %3947 = vmatpush.msra.mxu0 0.0
    %3948 = vmatpush.msra.mxu0 0.0
    %3949 = vmatpush.msra.mxu0 %v2531
    %3950 = vmatpush.msra.mxu0 %v2529
    %3951 = vmatpush.msra.mxu0 %v2527
    %3952 = vmatpush.msra.mxu0 %v2525
    %3953 = vmatmul.f32.gmra.mxu0 %v3926
    %v3954 = vpop.f32.mrf.mxu0
    %v3955 = vadd.f32 %v3923, %v3954
    %3956 = vmatmul.f32.gmra.mxu0 %v3929
    %v3957 = vpop.f32.mrf.mxu0
    %v3958 = vadd.f32 %v3923, %v3957
    %3959 = vmatmul.f32.gmra.mxu0 %v3932
    %v3960 = vpop.f32.mrf.mxu0
    %v3961 = vadd.f32 %v3923, %v3960
    %3962 = vmatmul.f32.gmra.mxu0 %v3935
    %v3963 = vpop.f32.mrf.mxu0
    %v3964 = vadd.f32 %v3923, %v3963
    %3965 = vdwg.mxu0
    %v3966 = vmul.f32 %v3955, 0.5
    %v3967 = vmul.f32 %v3958, 0.5
    %v3968 = vmul.f32 %v3961, 0.5
    %v3969 = vmul.f32 %v3964, 0.5
    %v3970 = vmul.f32 %v3955, 0.044715
    %v3971 = vmul.f32 %v3958, 0.044715
    %v3972 = vmul.f32 %v3961, 0.044715
    %v3973 = vmul.f32 %v3964, 0.044715
    %v3974 = vmul.f32 %v3970, %v3955
    %v3975 = vmul.f32 %v3971, %v3958
    %v3976 = vmul.f32 %v3972, %v3961
    %v3977 = vmul.f32 %v3973, %v3964
    %v3978 = vmul.f32 %v3974, %v3955
    %v3979 = vmul.f32 %v3975, %v3958
    %v3980 = vmul.f32 %v3976, %v3961
    %v3981 = vmul.f32 %v3977, %v3964
    %v3982 = vadd.f32 %v3955, %v3978
    %v3983 = vadd.f32 %v3958, %v3979
    %v3984 = vadd.f32 %v3961, %v3980
    %v3985 = vadd.f32 %v3964, %v3981
    %v3986 = vmul.f32 %v3982, 0.7978846
    %v3987 = vmul.f32 %v3983, 0.7978846
    %v3988 = vmul.f32 %v3984, 0.7978846
    %v3989 = vmul.f32 %v3985, 0.7978846
    %v3990 = vtanh.pop %v3986
    %v3991 = vtanh.pop %v3987
    %v3992 = vtanh.pop %v3988
    %v3993 = vtanh.pop %v3989
    %v3994 = vadd.f32 %v3990, 1.0
    %v3995 = vadd.f32 %v3991, 1.0
    %v3996 = vadd.f32 %v3992, 1.0
    %v3997 = vadd.f32 %v3993, 1.0
    %v3998 = vmul.f32 %v3966, %v3994
    %v3999 = vmul.f32 %v3967, %v3995
    %v4000 = vmul.f32 %v3968, %v3996
    %v4001 = vmul.f32 %v3969, %v3997
    %v4002 = vrot.slane %v2523, 3
    %v4003 = vperm.slane %v4002, 0
    %4005 = vmatpush.msra.mxu0 %v2547
    %4006 = vmatpush.msra.mxu0 %v2546
    %4007 = vmatpush.msra.mxu0 %v2545
    %4008 = vmatpush.msra.mxu0 %v2544
    %4009 = vmatpush.msra.mxu0 %v2543
    %4010 = vmatpush.msra.mxu0 %v2542
    %4011 = vmatpush.msra.mxu0 %v2541
    %4012 = vmatpush.msra.mxu0 %v2540
    %4013 = vmatpush.msra.mxu0 %v2539
    %4014 = vmatpush.msra.mxu0 %v2538
    %4015 = vmatpush.msra.mxu0 %v2537
    %4016 = vmatpush.msra.mxu0 %v2536
    %4017 = vmatpush.msra.mxu0 %v2535
    %4018 = vmatpush.msra.mxu0 %v2534
    %4019 = vmatpush.msra.mxu0 %v2533
    %4020 = vmatpush.msra.mxu0 %v2532
    %4021 = vmatmul.f32.gmra.mxu0 %v3998
    %v4022 = vpop.f32.mrf.mxu0
    %v4023 = vadd.f32 %v4003, %v4022
    %4024 = vmatmul.f32.gmra.mxu0 %v3999
    %v4025 = vpop.f32.mrf.mxu0
    %v4026 = vadd.f32 %v4003, %v4025
    %4027 = vmatmul.f32.gmra.mxu0 %v4000
    %v4028 = vpop.f32.mrf.mxu0
    %v4029 = vadd.f32 %v4003, %v4028
    %4030 = vmatmul.f32.gmra.mxu0 %v4001
    %v4031 = vpop.f32.mrf.mxu0
    %v4032 = vadd.f32 %v4003, %v4031
    %4033 = vdwg.mxu0
    %v4034 = vadd.f32 %v3812, %v4023
    %v4035 = vadd.f32 %v3813, %v4026
    %v4036 = vadd.f32 %v3814, %v4029
    %v4037 = vadd.f32 %v3815, %v4032
    %v4038 = vld [vmem:[%s17] sm:$0x1]
    %v4039 = vsel %vm208, %v4034, 0.0
    %4040 = vadd.xlane.f32.xlu0 %v4039
    %v4041 = vpop.xlane.xlu0 %4040
    %v4042 = vsel %vm208, %v4035, 0.0
    %4043 = vadd.xlane.f32.xlu0 %v4042
    %v4044 = vpop.xlane.xlu0 %4043
    %v4045 = vsel %vm208, %v4036, 0.0
    %4046 = vadd.xlane.f32.xlu0 %v4045
    %v4047 = vpop.xlane.xlu0 %4046
    %v4048 = vsel %vm208, %v4037, 0.0
    %4049 = vadd.xlane.f32.xlu0 %v4048
    %v4050 = vpop.xlane.xlu0 %4049
    %v4051 = vmul.f32 %v4041, %v218
    %v4052 = vmul.f32 %v4044, %v218
    %v4053 = vmul.f32 %v4047, %v218
    %v4054 = vmul.f32 %v4050, %v218
    %v4055 = vsub.f32 %v4034, %v4051
    %v4056 = vsub.f32 %v4035, %v4052
    %v4057 = vsub.f32 %v4036, %v4053
    %v4058 = vsub.f32 %v4037, %v4054
    %v4059 = vmul.f32 %v4055, %v4055
    %v4060 = vmul.f32 %v4056, %v4056
    %v4061 = vmul.f32 %v4057, %v4057
    %v4062 = vmul.f32 %v4058, %v4058
    %v4063 = vsel %vm208, %v4059, 0.0
    %4064 = vadd.xlane.f32.xlu0 %v4063
    %v4065 = vpop.xlane.xlu0 %4064
    %v4066 = vsel %vm208, %v4060, 0.0
    %4067 = vadd.xlane.f32.xlu0 %v4066
    %v4068 = vpop.xlane.xlu0 %4067
    %v4069 = vsel %vm208, %v4061, 0.0
    %4070 = vadd.xlane.f32.xlu0 %v4069
    %v4071 = vpop.xlane.xlu0 %4070
    %v4072 = vsel %vm208, %v4062, 0.0
    %4073 = vadd.xlane.f32.xlu0 %v4072
    %v4074 = vpop.xlane.xlu0 %4073
    %v4075 = vmul.f32 %v4065, %v218
    %v4076 = vmul.f32 %v4068, %v218
    %v4077 = vmul.f32 %v4071, %v218
    %v4078 = vmul.f32 %v4074, %v218
    %v4079 = vadd.f32 %v4075, 1e-05
    %v4080 = vadd.f32 %v4076, 1e-05
    %v4081 = vadd.f32 %v4077, 1e-05
    %v4082 = vadd.f32 %v4078, 1e-05
    %v4083 = vrsqrt.pop %v4079
    %v4084 = vmul.f32 %v4083, %v4079
    %v4085 = vmul.f32 %v4084, %v4083
    %v4086 = vmul.f32 0.5, %v4085
    %v4087 = vsub.f32 1.5, %v4086
    %v4088 = vmul.f32 %v4083, %v4087
    %vm4089 = vweird.f32 %v4079
    %vm4090 = vweird.f32 %v4083
    %vm4091 = vmor %vm4089, %vm4090
    %v4092 = vsel %vm4091, %v4083, %v4088
    %v4093 = vrsqrt.pop %v4080
    %v4094 = vmul.f32 %v4093, %v4080
    %v4095 = vmul.f32 %v4094, %v4093
    %v4096 = vmul.f32 0.5, %v4095
    %v4097 = vsub.f32 1.5, %v4096
    %v4098 = vmul.f32 %v4093, %v4097
    %vm4099 = vweird.f32 %v4080
    %vm4100 = vweird.f32 %v4093
    %vm4101 = vmor %vm4099, %vm4100
    %v4102 = vsel %vm4101, %v4093, %v4098
    %v4103 = vrsqrt.pop %v4081
    %v4104 = vmul.f32 %v4103, %v4081
    %v4105 = vmul.f32 %v4104, %v4103
    %v4106 = vmul.f32 0.5, %v4105
    %v4107 = vsub.f32 1.5, %v4106
    %v4108 = vmul.f32 %v4103, %v4107
    %vm4109 = vweird.f32 %v4081
    %vm4110 = vweird.f32 %v4103
    %vm4111 = vmor %vm4109, %vm4110
    %v4112 = vsel %vm4111, %v4103, %v4108
    %v4113 = vrsqrt.pop %v4082
    %v4114 = vmul.f32 %v4113, %v4082
    %v4115 = vmul.f32 %v4114, %v4113
    %v4116 = vmul.f32 0.5, %v4115
    %v4117 = vsub.f32 1.5, %v4116
    %v4118 = vmul.f32 %v4113, %v4117
    %vm4119 = vweird.f32 %v4082
    %vm4120 = vweird.f32 %v4113
    %vm4121 = vmor %vm4119, %vm4120
    %v4122 = vsel %vm4121, %v4113, %v4118
    %v4123 = vmul.f32 %v4055, %v4092
    %v4124 = vmul.f32 %v4056, %v4102
    %v4125 = vmul.f32 %v4057, %v4112
    %v4126 = vmul.f32 %v4058, %v4122
    %v4128 = vperm.slane %v4038, 0
    %v4130 = vmul.f32 %v4123, %v4128
    %v4131 = vmul.f32 %v4124, %v4128
    %v4132 = vmul.f32 %v4125, %v4128
    %v4133 = vmul.f32 %v4126, %v4128
    %4134 = vrot.lane.b32.xlu0 %v4128, 96
    %v4135 = vpop.permute.xlu0 %4134
    %v4137 = vadd.f32 %v4130, %v4135
    %v4138 = vadd.f32 %v4131, %v4135
    %v4139 = vadd.f32 %v4132, %v4135
    %v4140 = vadd.f32 %v4133, %v4135
    %v4141 = vld [vmem:[%s18] sm:$0xff]
    %v4142 = vld [vmem:[%s18 + $0x8] sm:$0xff]
    %v4143 = vld [vmem:[%s18 + $0x10] sm:$0xff]
    %v4144 = vld [vmem:[%s18 + $0x18] sm:$0xff]
    %v4145 = vld [vmem:[%s18 + $0x20] sm:$0x1]
    %v4146 = vperm.slane %v4145, 0
    %v4148 = vsel %vm208, %v4137, 0
    %v4151 = vsel %vm208, %v4138, 0
    %v4154 = vsel %vm208, %v4139, 0
    %v4157 = vsel %vm208, %v4140, 0
    %4159 = vmatpush.msra.mxu0 0.0
    %4160 = vmatpush.msra.mxu0 0.0
    %4161 = vmatpush.msra.mxu0 0.0
    %4162 = vmatpush.msra.mxu0 0.0
    %4163 = vmatpush.msra.mxu0 0.0
    %4164 = vmatpush.msra.mxu0 0.0
    %4165 = vmatpush.msra.mxu0 0.0
    %4166 = vmatpush.msra.mxu0 0.0
    %4167 = vmatpush.msra.mxu0 0.0
    %4168 = vmatpush.msra.mxu0 0.0
    %4169 = vmatpush.msra.mxu0 0.0
    %4170 = vmatpush.msra.mxu0 0.0
    %4171 = vmatpush.msra.mxu0 %v4144
    %4172 = vmatpush.msra.mxu0 %v4143
    %4173 = vmatpush.msra.mxu0 %v4142
    %4174 = vmatpush.msra.mxu0 %v4141
    %4175 = vmatmul.f32.gmra.mxu0 %v4148
    %v4176 = vpop.f32.mrf.mxu0
    %v4177 = vadd.f32 %v4146, %v4176
    %4178 = vmatmul.f32.gmra.mxu0 %v4151
    %v4179 = vpop.f32.mrf.mxu0
    %v4180 = vadd.f32 %v4146, %v4179
    %4181 = vmatmul.f32.gmra.mxu0 %v4154
    %v4182 = vpop.f32.mrf.mxu0
    %v4183 = vadd.f32 %v4146, %v4182
    %4184 = vmatmul.f32.gmra.mxu0 %v4157
    %v4185 = vpop.f32.mrf.mxu0
    %v4186 = vadd.f32 %v4146, %v4185
    %4187 = vdwg.mxu0
    %v4188 = vld [vmem:[%s19] sm:$0xff]
    %v4189 = vld [vmem:[%s19 + $0x8] sm:$0xff]
    %v4190 = vld [vmem:[%s19 + $0x10] sm:$0xff]
    %v4191 = vld [vmem:[%s19 + $0x18] sm:$0xff]
    %v4192 = vsub.f32 %v4177, %v4188
    %v4193 = vsub.f32 %v4180, %v4189
    %v4194 = vsub.f32 %v4183, %v4190
    %v4195 = vsub.f32 %v4186, %v4191
    %v4196 = vmul.f32 %v4192, %v4192
    %v4197 = vmul.f32 %v4193, %v4193
    %v4198 = vmul.f32 %v4194, %v4194
    %v4199 = vmul.f32 %v4195, %v4195
    %v4200 = vsel %vm296, %v4196, 0.0
    %4201 = vadd.xlane.f32.xlu0 %v4200
    %v4202 = vpop.xlane.xlu0 %4201
    %v4203 = vsel %vm296, %v4197, 0.0
    %4204 = vadd.xlane.f32.xlu0 %v4203
    %v4205 = vpop.xlane.xlu0 %4204
    %v4206 = vsel %vm296, %v4198, 0.0
    %4207 = vadd.xlane.f32.xlu0 %v4206
    %v4208 = vpop.xlane.xlu0 %4207
    %v4209 = vsel %vm296, %v4199, 0.0
    %4210 = vadd.xlane.f32.xlu0 %v4209
    %v4211 = vpop.xlane.xlu0 %4210
    %v4212 = vrcp.pop 64.0
    %v4213 = vmul.f32 64.0, %v4212
    %v4214 = vsub.f32 1.0, %v4213
    %v4215 = vmul.f32 %v4212, %v4214
    %v4216 = vadd.f32 %v4212, %v4215
    %vm4217 = vweird.f32 %v4212
    %v4218 = vsel %vm4217, %v4212, %v4216
    %v4219 = vmul.f32 %v4202, %v4218
    %v4220 = vmul.f32 %v4205, %v4218
    %v4221 = vmul.f32 %v4208, %v4218
    %v4222 = vmul.f32 %v4211, %v4218
    %v4224 = vperm.slane %v2416, 0
    %v4225 = vlaneseq
    %v4226 = vshrl.u32 %v4225, 7
    %4228 = vset.pattern.permute.xlu0 %v4226
    %4229 = vperm.xlu0 %4228, %v4224
    %v4230 = vpop.permute.xlu0 %4229
    %v4231 = vlaneseq
    %v4232 = vshrl.u32 %v4231, 7
    %v4233 = vadd.s32 %v4232, 8
    %4234 = vset.pattern.permute.xlu0 %v4233
    %4235 = vperm.xlu0 %4234, %v4224
    %v4236 = vpop.permute.xlu0 %4235
    %v4237 = vperm.slane %v2416, 1
    %v4238 = vlaneseq
    %v4239 = vshrl.u32 %v4238, 7
    %4241 = vset.pattern.permute.xlu0 %v4239
    %4242 = vperm.xlu0 %4241, %v4237
    %v4243 = vpop.permute.xlu0 %4242
    %v4244 = vlaneseq
    %v4245 = vshrl.u32 %v4244, 7
    %v4246 = vadd.s32 %v4245, 8
    %4247 = vset.pattern.permute.xlu0 %v4246
    %4248 = vperm.xlu0 %4247, %v4237
    %v4249 = vpop.permute.xlu0 %4248
    %v4254 = vmul.f32 %v4219, %v4230
    %v4255 = vmul.f32 %v4220, %v4236
    %v4256 = vmul.f32 %v4221, %v4243
    %v4257 = vmul.f32 %v4222, %v4249
    %4262 = vset.pattern.permute.xlu0 0
    %4263 = vperm.xlu0 %4262, %v4254
    %v4264 = vpop.permute.xlu0 %4263
    %4265 = vset.pattern.permute.xlu0 0
    %4266 = vperm.xlu0 %4265, %v4255
    %v4267 = vpop.permute.xlu0 %4266
    %4268 = vset.pattern.permute.xlu0 0
    %4269 = vperm.xlu0 %4268, %v4256
    %v4270 = vpop.permute.xlu0 %4269
    %4271 = vset.pattern.permute.xlu0 0
    %4272 = vperm.xlu0 %4271, %v4257
    %v4273 = vpop.permute.xlu0 %4272
    %v4274 = vlaneseq
    %v4275 = vand.u32 %v4274, 127
    %v4276 = vperm.slane %v4264, %v4275
    %v4277 = vadd.s32 %v4275, 4294967288
    %v4278 = vperm.slane %v4267, %v4277
    %vm4279 = vcmask 130112
    %v4280 = vsel %vm4279, %v4278, %v4276
    %v4281 = vperm.slane %v4270, %v4275
    %v4282 = vperm.slane %v4273, %v4277
    %v4283 = vsel %vm4279, %v4282, %v4281
    %vm4284 = vcmask 1041409
    %v4285 = vsel %vm4284, %v4283, %v4280
    %vm4287 = vcmask 123904
    %v4288 = vsel %vm4287, %v4285, 0.0
    %4289 = vadd.xlane.f32.xlu0 %v4288
    %v4290 = vpop.xlane.xlu0 %4289
    %v4291 = vrot.slane %v4290, 4
    %v4292 = vadd.f32 %v4290, %v4291
    %v4293 = vrot.slane %v4292, 2
    %v4294 = vadd.f32 %v4292, %v4293
    %v4295 = vrot.slane %v4294, 1
    %v4296 = vadd.f32 %v4294, %v4295
    %s4297 = vtos %v4296
    %v4298 = vstv %s4297
    %v4299 = vsel %vm4287, %v2416, 0.0
    %4300 = vadd.xlane.f32.xlu0 %v4299
    %v4301 = vpop.xlane.xlu0 %4300
    %v4302 = vrot.slane %v4301, 4
    %v4303 = vadd.f32 %v4301, %v4302
    %v4304 = vrot.slane %v4303, 2
    %v4305 = vadd.f32 %v4303, %v4304
    %v4306 = vrot.slane %v4305, 1
    %v4307 = vadd.f32 %v4305, %v4306
    %s4308 = vtos %v4307
    %v4309 = vstv %s4308
    %v4310 = vrcp.pop %v4309
    %v4311 = vmul.f32 %v4309, %v4310
    %v4312 = vsub.f32 1.0, %v4311
    %v4313 = vmul.f32 %v4310, %v4312
    %v4314 = vadd.f32 %v4310, %v4313
    %vm4315 = vweird.f32 %v4309
    %vm4316 = vweird.f32 %v4310
    %vm4317 = vmor %vm4315, %vm4316
    %v4318 = vsel %vm4317, %v4310, %v4314
    %v4319 = vand.u32 2147483647, %v4309
    %vm4320 = vcmp.eq.f32.partialorder %v4319, 8.507059e+37
    %v4321 = vand.u32 %v4309, 2147483648
    %v4322 = vor.u32 1.1754944e-38, %v4321
    %v4323 = vsel %vm4320, %v4322, %v4318
    %v4324 = vmul.f32 %v4298, %v4323
    %vm4325 = vcmask 0
    %4326 = vst.msk [vmem:[#allocation2] sm:$0x1] %vm4325, %v4324
    %v4329 = vrot.slane %v4183, 7
    %v4330 = vsel %vm4284, %v4329, %v4177
    %v4332 = vrot.slane %v4177, 1
    %v4333 = vsel %vm4284, %v4183, %v4332
    %4334 = vrot.lane.b32.xlu0 %v4333, 64
    %v4335 = vpop.permute.xlu0 %4334
    %v4337 = vrot.slane %v4177, 2
    %v4338 = vrot.slane %v4183, 1
    %v4339 = vsel %vm4284, %v4338, %v4337
    %v4341 = vrot.slane %v4177, 3
    %v4342 = vrot.slane %v4183, 2
    %v4343 = vsel %vm4284, %v4342, %v4341
    %4344 = vrot.lane.b32.xlu0 %v4343, 64
    %v4345 = vpop.permute.xlu0 %4344
    %v4347 = vrot.slane %v4177, 4
    %v4348 = vrot.slane %v4183, 3
    %v4349 = vsel %vm4284, %v4348, %v4347
    %v4351 = vrot.slane %v4177, 5
    %v4352 = vrot.slane %v4183, 4
    %v4353 = vsel %vm4284, %v4352, %v4351
    %4354 = vrot.lane.b32.xlu0 %v4353, 64
    %v4355 = vpop.permute.xlu0 %4354
    %v4357 = vrot.slane %v4177, 6
    %v4358 = vrot.slane %v4183, 5
    %v4359 = vsel %vm4284, %v4358, %v4357
    %v4361 = vrot.slane %v4177, 7
    %v4362 = vrot.slane %v4183, 6
    %v4363 = vsel %vm4284, %v4362, %v4361
    %4364 = vrot.lane.b32.xlu0 %v4363, 64
    %v4365 = vpop.permute.xlu0 %4364
    %v4369 = vrot.slane %v4186, 7
    %v4370 = vsel %vm4284, %v4369, %v4180
    %v4372 = vrot.slane %v4180, 1
    %v4373 = vsel %vm4284, %v4186, %v4372
    %4374 = vrot.lane.b32.xlu0 %v4373, 64
    %v4375 = vpop.permute.xlu0 %4374
    %v4377 = vrot.slane %v4180, 2
    %v4378 = vrot.slane %v4186, 1
    %v4379 = vsel %vm4284, %v4378, %v4377
    %v4381 = vrot.slane %v4180, 3
    %v4382 = vrot.slane %v4186, 2
    %v4383 = vsel %vm4284, %v4382, %v4381
    %4384 = vrot.lane.b32.xlu0 %v4383, 64
    %v4385 = vpop.permute.xlu0 %4384
    %v4387 = vrot.slane %v4180, 4
    %v4388 = vrot.slane %v4186, 3
    %v4389 = vsel %vm4284, %v4388, %v4387
    %v4391 = vrot.slane %v4180, 5
    %v4392 = vrot.slane %v4186, 4
    %v4393 = vsel %vm4284, %v4392, %v4391
    %4394 = vrot.lane.b32.xlu0 %v4393, 64
    %v4395 = vpop.permute.xlu0 %4394
    %v4397 = vrot.slane %v4180, 6
    %v4398 = vrot.slane %v4186, 5
    %v4399 = vsel %vm4284, %v4398, %v4397
    %v4401 = vrot.slane %v4180, 7
    %v4402 = vrot.slane %v4186, 6
    %v4403 = vsel %vm4284, %v4402, %v4401
    %4404 = vrot.lane.b32.xlu0 %v4403, 64
    %v4405 = vpop.permute.xlu0 %4404
    %v4407 = vsel %vm296, %v4330, %v4335
    %v4408 = vsel %vm296, %v4339, %v4345
    %v4409 = vsel %vm296, %v4349, %v4355
    %v4410 = vsel %vm296, %v4359, %v4365
    %v4411 = vsel %vm296, %v4370, %v4375
    %v4412 = vsel %vm296, %v4379, %v4385
    %v4413 = vsel %vm296, %v4389, %v4395
    %v4414 = vsel %vm296, %v4399, %v4405
    %v4423 = vrot.slane %v4408, 6
    %v4424 = vrot.slane %v4409, 4
    %v4425 = vrot.slane %v4410, 2
    %v4426 = vrot.slane %v4412, 6
    %v4427 = vrot.slane %v4413, 4
    %v4428 = vrot.slane %v4414, 2
    %vm4429 = vcmask 1041408
    %v4430 = vsel %vm4429, %v4407, %v4423
    %vm4431 = vcmask 1045508
    %v4432 = vsel %vm4431, %v4424, %v4425
    %v4433 = vsel %vm439, %v4430, %v4432
    %v4434 = vsel %vm4429, %v4411, %v4426
    %v4435 = vsel %vm4431, %v4427, %v4428
    %v4436 = vsel %vm439, %v4434, %v4435
    %4439 = vst [vmem:[%s20] sm:$0xff] %v4433
    %4440 = vst [vmem:[%s20 + $0x8] sm:$0xff] %v4436
    // Predicated region
    $region82: #{mae_forward.1} parent=1 // pred_check
      _
    $region83: #{mae_forward.1} parent=1 // pred_check_branch
      %4442 = sbr.rel (0) target = $region85
    $region84: #{mae_forward.1} parent=1 // pred_region
      _
    $region85: #{mae_forward.1} parent=1 // pred_fallthru
      _
    // Predicated region
    $region86: #{mae_forward.1} parent=1 // pred_check
      _
    $region87: #{mae_forward.1} parent=1 // pred_check_branch
      %4444 = sbr.rel (0) target = $region89
    $region88: #{mae_forward.1} parent=1 // pred_region
      %4446 = vsyncadd [#allocation3], 0
      %s4448 = sshll.u32 [#allocation2], 4
      %s4449 = int_to_ptr.vmem [resolvable:$true] %s4448
      %s4450 = sshll.u32 %s21, 4
      %s4451 = int_to_ptr.hbm [resolvable:$true] %s4450
      %4453 = dma.vmem_to_hbm [thread:$0]  %s4449, 16, %s4451, [#allocation3]
    $region89: #{mae_forward.1} parent=1 // pred_fallthru
      _
    // Predicated region
    $region90: #{mae_forward.1} parent=1 // pred_check
      _
    $region91: #{mae_forward.1} parent=1 // pred_check_branch
      %4455 = sbr.rel (0) target = $region93
    $region92: #{mae_forward.1} parent=1 // pred_region
      _
    $region93: #{mae_forward.1} parent=1 // pred_fallthru
      _
    // Predicated region
    $region94: #{mae_forward.1} parent=1 // pred_check
      _
    $region95: #{mae_forward.1} parent=1 // pred_check_branch
      %4457 = sbr.rel (0) target = $region97
    $region96: #{mae_forward.1} parent=1 // pred_region
      %4459 = dma.done [#allocation3], 16
    $region97: #{mae_forward.1} parent=1 // pred_fallthru
      _
    %4460 = vsyncpa [#allocation3], 1

</llo_original>
